<compile_context>
chip_gen: v7x
topology: tpu7x:2x2x1
jax: 0.10.0
libtpu: 0.0.40
codegen_flags: <defaults>
</compile_context>

<pallas_src>
import functools

import jax
import jax.numpy as jnp
from jax.experimental import pallas as pl
from jax.experimental.pallas import tpu as pltpu

LANE = 128   # pad channel / node (contraction) dims to this
SUB = 8      # pad small leading dims (num_graphs, packed vector rows) to this


def _round_up(n, m):
    return ((n + m - 1) // m) * m


# ----------------------------- fused Pallas kernel -------------------------------

def fused_graph_resnet_kernel(
    a_ref, pool_ref, x_ref, whead_ref, vhead_ref, wblk_ref, vblk_ref, out_ref,
    *, num_blocks, n_real, cp,
):
    f32 = jnp.float32
    a = a_ref[...]                      # [Np, Np]  normalized adjacency (zero padded)
    inv_n = 1.0 / float(n_real)         # static real node count

    whead = whead_ref[...]              # [cp, 3cp] = [W_conv1 | W_hidden1 | W_hidden2]
    vhead = vhead_ref[...]              # [8,  cp ] rows: b_conv1, b_hidden1, b_hidden2
    b1, h1b, h2b = vhead[0:1], vhead[1:2], vhead[2:3]

    def bn_relu(h, gamma, beta):
        # nn.BatchNorm1d, training mode (batch stats, biased var, eps=1e-5) + ReLU.
        # h always comes straight from an A-aggregation, so its padded node rows are
        # exactly zero; dividing by the REAL node count keeps mean / E[x^2] exact.
        mean = jnp.sum(h, axis=0, keepdims=True) * inv_n
        ex2 = jnp.sum(h * h, axis=0, keepdims=True) * inv_n
        var = jnp.maximum(ex2 - mean * mean, 0.0)
        y = (h - mean) * (jax.lax.rsqrt(var + 1e-5) * gamma) + beta
        return jnp.maximum(y, 0.0)

    # x = conv1(x, edge_index).relu()     ->  (A @ X) @ W1 + b1, fused ReLU
    ax = jnp.dot(a, x_ref[...], preferred_element_type=f32)
    x = jnp.maximum(jnp.dot(ax, whead[:, :cp], preferred_element_type=f32) + b1, 0.0)

    # residual blocks (statically unrolled; num_blocks is tiny)
    for blk in range(num_blocks):
        wall = wblk_ref[blk]             # [cp, 3cp] = [W1 | W3 | W2]
        vv = vblk_ref[blk]               # [8,  cp ] rows: b3, g1, be1, g2, be2
        b3, g1, be1, g2, be2 = vv[0:1], vv[1:2], vv[2:3], vv[3:4], vv[4:5]

        # shared aggregation for block conv1 & conv3:  A @ (x @ [W1 | W3])
        hw = jnp.dot(a, jnp.dot(x, wall[:, : 2 * cp], preferred_element_type=f32),
                     preferred_element_type=f32)                       # [Np, 2cp]
        x3 = hw[:, cp:] + b3                 # conv3 output (+ bias, no BN follows)
        h = bn_relu(hw[:, :cp], g1, be1)     # conv1 bias absorbed by bn1 mean-sub
        # conv2 (bias absorbed by bn2) -> bn2 -> relu
        h = jnp.dot(a, jnp.dot(h, wall[:, 2 * cp:], preferred_element_type=f32),
                    preferred_element_type=f32)
        h = bn_relu(h, g2, be2)
        x = h + x3                           # h.relu() + conv3(x); h already >= 0

    # global_mean_pool -> mol_hidden1 -> relu -> mol_hidden2
    g = jnp.dot(pool_ref[...], x, preferred_element_type=f32)
    g = jnp.maximum(
        jnp.dot(g, whead[:, cp:2 * cp], preferred_element_type=f32) + h1b, 0.0)
    out_ref[...] = jnp.dot(g, whead[:, 2 * cp:], preferred_element_type=f32) + h2b


# ----------------------------- wrapper (padding + pallas_call) -------------------------------

def _pad2(x, rows, cols):
    out = jnp.zeros((rows, cols), jnp.float32)
    return out.at[: x.shape[0], : x.shape[1]].set(x.astype(jnp.float32))


def pack_params(params, cp=LANE):
    whead = jnp.concatenate([
        _pad2(params["conv1"]["w"], cp, cp),
        _pad2(params["mol_hidden1"]["w"], cp, cp),
        _pad2(params["mol_hidden2"]["w"], cp, cp)], axis=1)              # [cp, 3cp]
    vhead = jnp.concatenate([
        _pad2(params["conv1"]["b"], 1, cp),
        _pad2(params["mol_hidden1"]["b"], 1, cp),
        _pad2(params["mol_hidden2"]["b"], 1, cp),
        jnp.zeros((SUB - 3, cp), jnp.float32)], axis=0)                  # [8, cp]
    wblk, vblk = [], []
    for blk in params["blocks"]:
        wblk.append(jnp.concatenate([
            _pad2(blk["conv1"]["w"], cp, cp),
            _pad2(blk["conv3"]["w"], cp, cp),
            _pad2(blk["conv2"]["w"], cp, cp)], axis=1))                  # [cp, 3cp]
        vblk.append(jnp.concatenate([
            _pad2(blk["conv3"]["b"], 1, cp),
            _pad2(blk["bn1"]["gamma"], 1, cp),
            _pad2(blk["bn1"]["beta"], 1, cp),
            _pad2(blk["bn2"]["gamma"], 1, cp),
            _pad2(blk["bn2"]["beta"], 1, cp),
            jnp.zeros((SUB - 5, cp), jnp.float32)], axis=0))             # [8, cp]
    if wblk:
        wblk = jnp.stack(wblk)               # [nb, cp, 3cp]
        vblk = jnp.stack(vblk)               # [nb, 8, cp]
    else:                                    # dummy (unused when num_blocks == 0)
        wblk = jnp.zeros((1, cp, 3 * cp), jnp.float32)
        vblk = jnp.zeros((1, SUB, cp), jnp.float32)
    return whead, vhead, wblk, vblk


def graph_resnet_forward(params, x, a_norm, pool_mat, *, nout):
    n = x.shape[0]
    num_graphs = pool_mat.shape[0]
    num_blocks = len(params["blocks"])
    n_pad = _round_up(max(n, 1), LANE)       # node dim is both lane and contraction dim
    g_pad = _round_up(max(num_graphs, 1), SUB)
    cp = LANE

    # lane-dense, zero-padded operands (exactness argued in the header comment)
    a_p = _pad2(a_norm, n_pad, n_pad)
    pool_p = _pad2(pool_mat, g_pad, n_pad)
    x_p = _pad2(x, n_pad, cp)
    whead, vhead, wblk, vblk = pack_params(params, cp)

    args = (a_p, pool_p, x_p, whead, vhead, wblk, vblk)
    vmem = pl.BlockSpec(memory_space=pltpu.MemorySpace.VMEM)
    kern = functools.partial(fused_graph_resnet_kernel,
                             num_blocks=num_blocks, n_real=n, cp=cp)
    # TODO(synk): for large graphs (dense A no longer fits VMEM, esp. v7x's 64 MiB)
    # the aggregations should be tiled with a node-axis grid marked "parallel";
    # at this scale one full-VMEM block per array is fastest.
    out_p = pl.pallas_call(
        kern,
        out_shape=jax.ShapeDtypeStruct((g_pad, cp), jnp.float32),
        in_specs=[vmem] * len(args),
        out_specs=vmem,
    )(*args)
    return out_p[:num_graphs, :nout]


# ----------------------------- glue (plain JAX, outside kernel) -------------------------------

def build_normalized_adj(edge_index, num_nodes):
    # GCNConv default: add remaining self-loops, symmetric norm D^-1/2 (A+I) D^-1/2.
    src = edge_index[0]
    dst = edge_index[1]
    a = jnp.zeros((num_nodes, num_nodes), jnp.float32)
    a = a.at[dst, src].add(1.0)              # duplicate edges sum, like PyG message agg
    diag = jnp.diagonal(a)
    a = a + jnp.diag(jnp.where(diag > 0, 0.0, 1.0))   # self-loops only where missing
    deg = jnp.sum(a, axis=1)
    dinv = jnp.where(deg > 0, jax.lax.rsqrt(deg), 0.0)
    return a * dinv[:, None] * dinv[None, :]


def build_mean_pool_matrix(batch, num_graphs):
    onehot = (batch[None, :] == jnp.arange(num_graphs)[:, None]).astype(jnp.float32)
    counts = jnp.maximum(jnp.sum(onehot, axis=1, keepdims=True), 1.0)
    return onehot / counts


def glorot(key, shape):
    fan_in, fan_out = shape
    limit = jnp.sqrt(6.0 / (fan_in + fan_out))
    return jax.random.uniform(key, shape, jnp.float32, -limit, limit)


def init_params(key, num_node_features, num_blocks, block_channels, nout, nhid):
    def vec(k, c):   # small random vectors so bias / BN-affine handling is exercised
        return 0.1 * jax.random.normal(k, (1, c), jnp.float32)

    params = {}
    key, k, kb = jax.random.split(key, 3)
    params["conv1"] = {"w": glorot(k, (num_node_features, block_channels[0])),
                       "b": vec(kb, block_channels[0])}
    params["blocks"] = []
    for i in range(num_blocks):
        cin, cout = block_channels[i], block_channels[i + 1]
        mid = cin + (cout - cin) // 2
        key, k1, k2, k3, kv = jax.random.split(key, 5)
        v = jax.random.split(kv, 7)
        params["blocks"].append({
            "conv1": {"w": glorot(k1, (cin, mid)), "b": vec(v[0], mid)},
            "conv2": {"w": glorot(k2, (mid, cout)), "b": vec(v[1], cout)},
            "conv3": {"w": glorot(k3, (cin, cout)), "b": vec(v[2], cout)},
            "bn1": {"gamma": 1.0 + vec(v[3], mid), "beta": vec(v[4], mid)},
            "bn2": {"gamma": 1.0 + vec(v[5], cout), "beta": vec(v[6], cout)},
        })
    key, k1, k2, kb1, kb2 = jax.random.split(key, 5)
    params["mol_hidden1"] = {"w": glorot(k1, (block_channels[-1], nhid)), "b": vec(kb1, nhid)}
    params["mol_hidden2"] = {"w": glorot(k2, (nhid, nout)), "b": vec(kb2, nout)}
    return params


def graph_resnet_reference(params, x, a_norm, pool_mat):
    # Pure-JAX reference mirroring the PyTorch forward (training-mode BatchNorm).
    def gcn(h, w, b):
        return a_norm @ (h @ w) + b

    def bn(h, gamma, beta):
        mean = jnp.mean(h, axis=0, keepdims=True)
        var = jnp.mean((h - mean) ** 2, axis=0, keepdims=True)
        return (h - mean) * jax.lax.rsqrt(var + 1e-5) * gamma + beta

    h = jax.nn.relu(gcn(x, params["conv1"]["w"], params["conv1"]["b"]))
    for blk in params["blocks"]:
        t = gcn(h, blk["conv1"]["w"], blk["conv1"]["b"])
        t = jax.nn.relu(bn(t, blk["bn1"]["gamma"], blk["bn1"]["beta"]))
        t = gcn(t, blk["conv2"]["w"], blk["conv2"]["b"])
        t = jax.nn.relu(bn(t, blk["bn2"]["gamma"], blk["bn2"]["beta"]))
        x3 = gcn(h, blk["conv3"]["w"], blk["conv3"]["b"])
        h = jax.nn.relu(t) + x3
    g = pool_mat @ h
    g = jax.nn.relu(g @ params["mol_hidden1"]["w"] + params["mol_hidden1"]["b"])
    return g @ params["mol_hidden2"]["w"] + params["mol_hidden2"]["b"]


# ----------------------------- main -------------------------------

if __name__ == "__main__":
    key = jax.random.PRNGKey(0)

    num_node_features = 8
    num_blocks = 2
    block_channels = [16, 24, 32]
    nhid = 32
    nout = 16

    nodes_per_graph = 6
    num_graphs = 2
    N = nodes_per_graph * num_graphs

    # edge_index: bidirectional ring within each graph
    src, dst = [], []
    for g in range(num_graphs):
        base = g * nodes_per_graph
        for i in range(nodes_per_graph):
            j = (i + 1) % nodes_per_graph
            src += [base + i, base + j]
            dst += [base + j, base + i]
    edge_index = jnp.array([src, dst], dtype=jnp.int32)
    batch = jnp.repeat(jnp.arange(num_graphs, dtype=jnp.int32), nodes_per_graph)

    key, kx, kp = jax.random.split(key, 3)
    x = jax.random.normal(kx, (N, num_node_features), jnp.float32)
    params = init_params(kp, num_node_features, num_blocks, block_channels, nout, nhid)

    a_norm = build_normalized_adj(edge_index, N)
    pool_mat = build_mean_pool_matrix(batch, num_graphs)

    out = graph_resnet_forward(params, x, a_norm, pool_mat, nout=nout)
    out = jax.block_until_ready(out)
    assert out.shape == (num_graphs, nout), out.shape
    assert bool(jnp.all(jnp.isfinite(out)))

    ref = graph_resnet_reference(params, x, a_norm, pool_mat)
    err = float(jnp.max(jnp.abs(out - ref)))
    assert err < 5e-2, f"mismatch vs pure-JAX reference: {err}"

    print("KERNEL_OK")
</pallas_src>

<mosaic_0001>
module attributes {stable_mosaic.version = 11 : i64} {
  func.func @fused_graph_resnet_kernel(%arg0: memref<128x128xf32, #tpu.memory_space<vmem>>, %arg1: memref<8x128xf32, #tpu.memory_space<vmem>>, %arg2: memref<128x128xf32, #tpu.memory_space<vmem>>, %arg3: memref<128x384xf32, #tpu.memory_space<vmem>>, %arg4: memref<8x128xf32, #tpu.memory_space<vmem>>, %arg5: memref<2x128x384xf32, #tpu.memory_space<vmem>>, %arg6: memref<2x8x128xf32, #tpu.memory_space<vmem>>, %arg7: memref<8x128xf32, #tpu.memory_space<vmem>>) attributes {dimension_semantics = [], scalar_prefetch = 0 : i64, scratch_operands = 0 : i64, tpu.core_type = #tpu.core_type<tc>} {
    %c0 = arith.constant 0 : index
    %c0_0 = arith.constant 0 : index
    %0 = vector.load %arg0[%c0, %c0_0] : memref<128x128xf32, #tpu.memory_space<vmem>>, vector<128x128xf32>
    %c0_1 = arith.constant 0 : index
    %c0_2 = arith.constant 0 : index
    %1 = vector.load %arg3[%c0_1, %c0_2] : memref<128x384xf32, #tpu.memory_space<vmem>>, vector<128x384xf32>
    %c0_3 = arith.constant 0 : index
    %c0_4 = arith.constant 0 : index
    %2 = vector.load %arg4[%c0_3, %c0_4] : memref<8x128xf32, #tpu.memory_space<vmem>>, vector<8x128xf32>
    %3 = vector.extract_strided_slice %2 {offsets = [0, 0], sizes = [1, 128], strides = [1, 1]} : vector<8x128xf32> to vector<1x128xf32>
    %4 = vector.extract_strided_slice %2 {offsets = [1, 0], sizes = [1, 128], strides = [1, 1]} : vector<8x128xf32> to vector<1x128xf32>
    %5 = vector.extract_strided_slice %2 {offsets = [2, 0], sizes = [1, 128], strides = [1, 1]} : vector<8x128xf32> to vector<1x128xf32>
    %c0_5 = arith.constant 0 : index
    %c0_6 = arith.constant 0 : index
    %6 = vector.load %arg2[%c0_5, %c0_6] : memref<128x128xf32, #tpu.memory_space<vmem>>, vector<128x128xf32>
    %cst = arith.constant dense<0.000000e+00> : vector<128x128xf32>
    %7 = tpu.matmul %0, %6, %cst {dimension_numbers = #tpu.dot_dimension_numbers<[1], [0], [0], [1], [0, 0, 1, 1], [], []>} : vector<128x128xf32>, vector<128x128xf32>, vector<128x128xf32> -> vector<128x128xf32>
    %8 = vector.extract_strided_slice %1 {offsets = [0, 0], sizes = [128, 128], strides = [1, 1]} : vector<128x384xf32> to vector<128x128xf32>
    %cst_7 = arith.constant dense<0.000000e+00> : vector<128x128xf32>
    %9 = tpu.matmul %7, %8, %cst_7 {dimension_numbers = #tpu.dot_dimension_numbers<[1], [0], [0], [1], [0, 0, 1, 1], [], []>} : vector<128x128xf32>, vector<128x128xf32>, vector<128x128xf32> -> vector<128x128xf32>
    %10 = vector.broadcast %3 : vector<1x128xf32> to vector<128x128xf32>
    %11 = arith.addf %9, %10 : vector<128x128xf32>
    %cst_8 = arith.constant 0.000000e+00 : f32
    %12 = vector.broadcast %cst_8 : f32 to vector<128x128xf32>
    %13 = arith.maximumf %11, %12 : vector<128x128xf32>
    %c0_9 = arith.constant 0 : index
    %c0_10 = arith.constant 0 : index
    %c0_11 = arith.constant 0 : index
    %14 = vector.load %arg5[%c0_9, %c0_10, %c0_11] : memref<2x128x384xf32, #tpu.memory_space<vmem>>, vector<1x128x384xf32>
    %15 = vector.shape_cast %14 : vector<1x128x384xf32> to vector<128x384xf32>
    %c0_12 = arith.constant 0 : index
    %c0_13 = arith.constant 0 : index
    %c0_14 = arith.constant 0 : index
    %16 = vector.load %arg6[%c0_12, %c0_13, %c0_14] : memref<2x8x128xf32, #tpu.memory_space<vmem>>, vector<1x8x128xf32>
    %17 = vector.shape_cast %16 : vector<1x8x128xf32> to vector<8x128xf32>
    %18 = vector.extract_strided_slice %17 {offsets = [0, 0], sizes = [1, 128], strides = [1, 1]} : vector<8x128xf32> to vector<1x128xf32>
    %19 = vector.extract_strided_slice %17 {offsets = [1, 0], sizes = [1, 128], strides = [1, 1]} : vector<8x128xf32> to vector<1x128xf32>
    %20 = vector.extract_strided_slice %17 {offsets = [2, 0], sizes = [1, 128], strides = [1, 1]} : vector<8x128xf32> to vector<1x128xf32>
    %21 = vector.extract_strided_slice %17 {offsets = [3, 0], sizes = [1, 128], strides = [1, 1]} : vector<8x128xf32> to vector<1x128xf32>
    %22 = vector.extract_strided_slice %17 {offsets = [4, 0], sizes = [1, 128], strides = [1, 1]} : vector<8x128xf32> to vector<1x128xf32>
    %23 = vector.extract_strided_slice %15 {offsets = [0, 0], sizes = [128, 256], strides = [1, 1]} : vector<128x384xf32> to vector<128x256xf32>
    %cst_15 = arith.constant dense<0.000000e+00> : vector<128x256xf32>
    %24 = tpu.matmul %13, %23, %cst_15 {dimension_numbers = #tpu.dot_dimension_numbers<[1], [0], [0], [1], [0, 0, 1, 1], [], []>} : vector<128x128xf32>, vector<128x256xf32>, vector<128x256xf32> -> vector<128x256xf32>
    %cst_16 = arith.constant dense<0.000000e+00> : vector<128x256xf32>
    %25 = tpu.matmul %0, %24, %cst_16 {dimension_numbers = #tpu.dot_dimension_numbers<[1], [0], [0], [1], [0, 0, 1, 1], [], []>} : vector<128x128xf32>, vector<128x256xf32>, vector<128x256xf32> -> vector<128x256xf32>
    %26 = vector.extract_strided_slice %25 {offsets = [0, 128], sizes = [128, 128], strides = [1, 1]} : vector<128x256xf32> to vector<128x128xf32>
    %27 = vector.broadcast %18 : vector<1x128xf32> to vector<128x128xf32>
    %28 = arith.addf %26, %27 : vector<128x128xf32>
    %29 = vector.extract_strided_slice %25 {offsets = [0, 0], sizes = [128, 128], strides = [1, 1]} : vector<128x256xf32> to vector<128x128xf32>
    %cst_17 = arith.constant dense<0.000000e+00> : vector<128xf32>
    %30 = vector.multi_reduction <add>, %29, %cst_17 [0] : vector<128x128xf32> to vector<128xf32>
    %31 = vector.shape_cast %30 : vector<128xf32> to vector<1x128xf32>
    %cst_18 = arith.constant 0.0833333358 : f32
    %32 = vector.broadcast %cst_18 : f32 to vector<1x128xf32>
    %33 = arith.mulf %31, %32 : vector<1x128xf32>
    %34 = arith.mulf %29, %29 : vector<128x128xf32>
    %cst_19 = arith.constant dense<0.000000e+00> : vector<128xf32>
    %35 = vector.multi_reduction <add>, %34, %cst_19 [0] : vector<128x128xf32> to vector<128xf32>
    %36 = vector.shape_cast %35 : vector<128xf32> to vector<1x128xf32>
    %cst_20 = arith.constant 0.0833333358 : f32
    %37 = vector.broadcast %cst_20 : f32 to vector<1x128xf32>
    %38 = arith.mulf %36, %37 : vector<1x128xf32>
    %39 = arith.mulf %33, %33 : vector<1x128xf32>
    %40 = arith.subf %38, %39 : vector<1x128xf32>
    %cst_21 = arith.constant 0.000000e+00 : f32
    %41 = vector.broadcast %cst_21 : f32 to vector<1x128xf32>
    %42 = arith.maximumf %40, %41 : vector<1x128xf32>
    %43 = vector.broadcast %33 : vector<1x128xf32> to vector<128x128xf32>
    %44 = arith.subf %29, %43 : vector<128x128xf32>
    %cst_22 = arith.constant 9.99999974E-6 : f32
    %45 = vector.broadcast %cst_22 : f32 to vector<1x128xf32>
    %46 = arith.addf %42, %45 : vector<1x128xf32>
    %47 = math.rsqrt %46 : vector<1x128xf32>
    %48 = arith.mulf %47, %19 : vector<1x128xf32>
    %49 = vector.broadcast %48 : vector<1x128xf32> to vector<128x128xf32>
    %50 = arith.mulf %44, %49 : vector<128x128xf32>
    %51 = vector.broadcast %20 : vector<1x128xf32> to vector<128x128xf32>
    %52 = arith.addf %50, %51 : vector<128x128xf32>
    %cst_23 = arith.constant 0.000000e+00 : f32
    %53 = vector.broadcast %cst_23 : f32 to vector<128x128xf32>
    %54 = arith.maximumf %52, %53 : vector<128x128xf32>
    %55 = vector.extract_strided_slice %15 {offsets = [0, 256], sizes = [128, 128], strides = [1, 1]} : vector<128x384xf32> to vector<128x128xf32>
    %cst_24 = arith.constant dense<0.000000e+00> : vector<128x128xf32>
    %56 = tpu.matmul %54, %55, %cst_24 {dimension_numbers = #tpu.dot_dimension_numbers<[1], [0], [0], [1], [0, 0, 1, 1], [], []>} : vector<128x128xf32>, vector<128x128xf32>, vector<128x128xf32> -> vector<128x128xf32>
    %cst_25 = arith.constant dense<0.000000e+00> : vector<128x128xf32>
    %57 = tpu.matmul %0, %56, %cst_25 {dimension_numbers = #tpu.dot_dimension_numbers<[1], [0], [0], [1], [0, 0, 1, 1], [], []>} : vector<128x128xf32>, vector<128x128xf32>, vector<128x128xf32> -> vector<128x128xf32>
    %cst_26 = arith.constant dense<0.000000e+00> : vector<128xf32>
    %58 = vector.multi_reduction <add>, %57, %cst_26 [0] : vector<128x128xf32> to vector<128xf32>
    %59 = vector.shape_cast %58 : vector<128xf32> to vector<1x128xf32>
    %cst_27 = arith.constant 0.0833333358 : f32
    %60 = vector.broadcast %cst_27 : f32 to vector<1x128xf32>
    %61 = arith.mulf %59, %60 : vector<1x128xf32>
    %62 = arith.mulf %57, %57 : vector<128x128xf32>
    %cst_28 = arith.constant dense<0.000000e+00> : vector<128xf32>
    %63 = vector.multi_reduction <add>, %62, %cst_28 [0] : vector<128x128xf32> to vector<128xf32>
    %64 = vector.shape_cast %63 : vector<128xf32> to vector<1x128xf32>
    %cst_29 = arith.constant 0.0833333358 : f32
    %65 = vector.broadcast %cst_29 : f32 to vector<1x128xf32>
    %66 = arith.mulf %64, %65 : vector<1x128xf32>
    %67 = arith.mulf %61, %61 : vector<1x128xf32>
    %68 = arith.subf %66, %67 : vector<1x128xf32>
    %cst_30 = arith.constant 0.000000e+00 : f32
    %69 = vector.broadcast %cst_30 : f32 to vector<1x128xf32>
    %70 = arith.maximumf %68, %69 : vector<1x128xf32>
    %71 = vector.broadcast %61 : vector<1x128xf32> to vector<128x128xf32>
    %72 = arith.subf %57, %71 : vector<128x128xf32>
    %cst_31 = arith.constant 9.99999974E-6 : f32
    %73 = vector.broadcast %cst_31 : f32 to vector<1x128xf32>
    %74 = arith.addf %70, %73 : vector<1x128xf32>
    %75 = math.rsqrt %74 : vector<1x128xf32>
    %76 = arith.mulf %75, %21 : vector<1x128xf32>
    %77 = vector.broadcast %76 : vector<1x128xf32> to vector<128x128xf32>
    %78 = arith.mulf %72, %77 : vector<128x128xf32>
    %79 = vector.broadcast %22 : vector<1x128xf32> to vector<128x128xf32>
    %80 = arith.addf %78, %79 : vector<128x128xf32>
    %cst_32 = arith.constant 0.000000e+00 : f32
    %81 = vector.broadcast %cst_32 : f32 to vector<128x128xf32>
    %82 = arith.maximumf %80, %81 : vector<128x128xf32>
    %83 = arith.addf %82, %28 : vector<128x128xf32>
    %c1 = arith.constant 1 : index
    %c0_33 = arith.constant 0 : index
    %c0_34 = arith.constant 0 : index
    %84 = vector.load %arg5[%c1, %c0_33, %c0_34] : memref<2x128x384xf32, #tpu.memory_space<vmem>>, vector<1x128x384xf32>
    %85 = vector.shape_cast %84 : vector<1x128x384xf32> to vector<128x384xf32>
    %c1_35 = arith.constant 1 : index
    %c0_36 = arith.constant 0 : index
    %c0_37 = arith.constant 0 : index
    %86 = vector.load %arg6[%c1_35, %c0_36, %c0_37] : memref<2x8x128xf32, #tpu.memory_space<vmem>>, vector<1x8x128xf32>
    %87 = vector.shape_cast %86 : vector<1x8x128xf32> to vector<8x128xf32>
    %88 = vector.extract_strided_slice %87 {offsets = [0, 0], sizes = [1, 128], strides = [1, 1]} : vector<8x128xf32> to vector<1x128xf32>
    %89 = vector.extract_strided_slice %87 {offsets = [1, 0], sizes = [1, 128], strides = [1, 1]} : vector<8x128xf32> to vector<1x128xf32>
    %90 = vector.extract_strided_slice %87 {offsets = [2, 0], sizes = [1, 128], strides = [1, 1]} : vector<8x128xf32> to vector<1x128xf32>
    %91 = vector.extract_strided_slice %87 {offsets = [3, 0], sizes = [1, 128], strides = [1, 1]} : vector<8x128xf32> to vector<1x128xf32>
    %92 = vector.extract_strided_slice %87 {offsets = [4, 0], sizes = [1, 128], strides = [1, 1]} : vector<8x128xf32> to vector<1x128xf32>
    %93 = vector.extract_strided_slice %85 {offsets = [0, 0], sizes = [128, 256], strides = [1, 1]} : vector<128x384xf32> to vector<128x256xf32>
    %cst_38 = arith.constant dense<0.000000e+00> : vector<128x256xf32>
    %94 = tpu.matmul %83, %93, %cst_38 {dimension_numbers = #tpu.dot_dimension_numbers<[1], [0], [0], [1], [0, 0, 1, 1], [], []>} : vector<128x128xf32>, vector<128x256xf32>, vector<128x256xf32> -> vector<128x256xf32>
    %cst_39 = arith.constant dense<0.000000e+00> : vector<128x256xf32>
    %95 = tpu.matmul %0, %94, %cst_39 {dimension_numbers = #tpu.dot_dimension_numbers<[1], [0], [0], [1], [0, 0, 1, 1], [], []>} : vector<128x128xf32>, vector<128x256xf32>, vector<128x256xf32> -> vector<128x256xf32>
    %96 = vector.extract_strided_slice %95 {offsets = [0, 128], sizes = [128, 128], strides = [1, 1]} : vector<128x256xf32> to vector<128x128xf32>
    %97 = vector.broadcast %88 : vector<1x128xf32> to vector<128x128xf32>
    %98 = arith.addf %96, %97 : vector<128x128xf32>
    %99 = vector.extract_strided_slice %95 {offsets = [0, 0], sizes = [128, 128], strides = [1, 1]} : vector<128x256xf32> to vector<128x128xf32>
    %cst_40 = arith.constant dense<0.000000e+00> : vector<128xf32>
    %100 = vector.multi_reduction <add>, %99, %cst_40 [0] : vector<128x128xf32> to vector<128xf32>
    %101 = vector.shape_cast %100 : vector<128xf32> to vector<1x128xf32>
    %cst_41 = arith.constant 0.0833333358 : f32
    %102 = vector.broadcast %cst_41 : f32 to vector<1x128xf32>
    %103 = arith.mulf %101, %102 : vector<1x128xf32>
    %104 = arith.mulf %99, %99 : vector<128x128xf32>
    %cst_42 = arith.constant dense<0.000000e+00> : vector<128xf32>
    %105 = vector.multi_reduction <add>, %104, %cst_42 [0] : vector<128x128xf32> to vector<128xf32>
    %106 = vector.shape_cast %105 : vector<128xf32> to vector<1x128xf32>
    %cst_43 = arith.constant 0.0833333358 : f32
    %107 = vector.broadcast %cst_43 : f32 to vector<1x128xf32>
    %108 = arith.mulf %106, %107 : vector<1x128xf32>
    %109 = arith.mulf %103, %103 : vector<1x128xf32>
    %110 = arith.subf %108, %109 : vector<1x128xf32>
    %cst_44 = arith.constant 0.000000e+00 : f32
    %111 = vector.broadcast %cst_44 : f32 to vector<1x128xf32>
    %112 = arith.maximumf %110, %111 : vector<1x128xf32>
    %113 = vector.broadcast %103 : vector<1x128xf32> to vector<128x128xf32>
    %114 = arith.subf %99, %113 : vector<128x128xf32>
    %cst_45 = arith.constant 9.99999974E-6 : f32
    %115 = vector.broadcast %cst_45 : f32 to vector<1x128xf32>
    %116 = arith.addf %112, %115 : vector<1x128xf32>
    %117 = math.rsqrt %116 : vector<1x128xf32>
    %118 = arith.mulf %117, %89 : vector<1x128xf32>
    %119 = vector.broadcast %118 : vector<1x128xf32> to vector<128x128xf32>
    %120 = arith.mulf %114, %119 : vector<128x128xf32>
    %121 = vector.broadcast %90 : vector<1x128xf32> to vector<128x128xf32>
    %122 = arith.addf %120, %121 : vector<128x128xf32>
    %cst_46 = arith.constant 0.000000e+00 : f32
    %123 = vector.broadcast %cst_46 : f32 to vector<128x128xf32>
    %124 = arith.maximumf %122, %123 : vector<128x128xf32>
    %125 = vector.extract_strided_slice %85 {offsets = [0, 256], sizes = [128, 128], strides = [1, 1]} : vector<128x384xf32> to vector<128x128xf32>
    %cst_47 = arith.constant dense<0.000000e+00> : vector<128x128xf32>
    %126 = tpu.matmul %124, %125, %cst_47 {dimension_numbers = #tpu.dot_dimension_numbers<[1], [0], [0], [1], [0, 0, 1, 1], [], []>} : vector<128x128xf32>, vector<128x128xf32>, vector<128x128xf32> -> vector<128x128xf32>
    %cst_48 = arith.constant dense<0.000000e+00> : vector<128x128xf32>
    %127 = tpu.matmul %0, %126, %cst_48 {dimension_numbers = #tpu.dot_dimension_numbers<[1], [0], [0], [1], [0, 0, 1, 1], [], []>} : vector<128x128xf32>, vector<128x128xf32>, vector<128x128xf32> -> vector<128x128xf32>
    %cst_49 = arith.constant dense<0.000000e+00> : vector<128xf32>
    %128 = vector.multi_reduction <add>, %127, %cst_49 [0] : vector<128x128xf32> to vector<128xf32>
    %129 = vector.shape_cast %128 : vector<128xf32> to vector<1x128xf32>
    %cst_50 = arith.constant 0.0833333358 : f32
    %130 = vector.broadcast %cst_50 : f32 to vector<1x128xf32>
    %131 = arith.mulf %129, %130 : vector<1x128xf32>
    %132 = arith.mulf %127, %127 : vector<128x128xf32>
    %cst_51 = arith.constant dense<0.000000e+00> : vector<128xf32>
    %133 = vector.multi_reduction <add>, %132, %cst_51 [0] : vector<128x128xf32> to vector<128xf32>
    %134 = vector.shape_cast %133 : vector<128xf32> to vector<1x128xf32>
    %cst_52 = arith.constant 0.0833333358 : f32
    %135 = vector.broadcast %cst_52 : f32 to vector<1x128xf32>
    %136 = arith.mulf %134, %135 : vector<1x128xf32>
    %137 = arith.mulf %131, %131 : vector<1x128xf32>
    %138 = arith.subf %136, %137 : vector<1x128xf32>
    %cst_53 = arith.constant 0.000000e+00 : f32
    %139 = vector.broadcast %cst_53 : f32 to vector<1x128xf32>
    %140 = arith.maximumf %138, %139 : vector<1x128xf32>
    %141 = vector.broadcast %131 : vector<1x128xf32> to vector<128x128xf32>
    %142 = arith.subf %127, %141 : vector<128x128xf32>
    %cst_54 = arith.constant 9.99999974E-6 : f32
    %143 = vector.broadcast %cst_54 : f32 to vector<1x128xf32>
    %144 = arith.addf %140, %143 : vector<1x128xf32>
    %145 = math.rsqrt %144 : vector<1x128xf32>
    %146 = arith.mulf %145, %91 : vector<1x128xf32>
    %147 = vector.broadcast %146 : vector<1x128xf32> to vector<128x128xf32>
    %148 = arith.mulf %142, %147 : vector<128x128xf32>
    %149 = vector.broadcast %92 : vector<1x128xf32> to vector<128x128xf32>
    %150 = arith.addf %148, %149 : vector<128x128xf32>
    %cst_55 = arith.constant 0.000000e+00 : f32
    %151 = vector.broadcast %cst_55 : f32 to vector<128x128xf32>
    %152 = arith.maximumf %150, %151 : vector<128x128xf32>
    %153 = arith.addf %152, %98 : vector<128x128xf32>
    %c0_56 = arith.constant 0 : index
    %c0_57 = arith.constant 0 : index
    %154 = vector.load %arg1[%c0_56, %c0_57] : memref<8x128xf32, #tpu.memory_space<vmem>>, vector<8x128xf32>
    %cst_58 = arith.constant dense<0.000000e+00> : vector<8x128xf32>
    %155 = tpu.matmul %154, %153, %cst_58 {dimension_numbers = #tpu.dot_dimension_numbers<[1], [0], [0], [1], [0, 0, 1, 1], [], []>} : vector<8x128xf32>, vector<128x128xf32>, vector<8x128xf32> -> vector<8x128xf32>
    %156 = vector.extract_strided_slice %1 {offsets = [0, 128], sizes = [128, 128], strides = [1, 1]} : vector<128x384xf32> to vector<128x128xf32>
    %cst_59 = arith.constant dense<0.000000e+00> : vector<8x128xf32>
    %157 = tpu.matmul %155, %156, %cst_59 {dimension_numbers = #tpu.dot_dimension_numbers<[1], [0], [0], [1], [0, 0, 1, 1], [], []>} : vector<8x128xf32>, vector<128x128xf32>, vector<8x128xf32> -> vector<8x128xf32>
    %158 = vector.broadcast %4 : vector<1x128xf32> to vector<8x128xf32>
    %159 = arith.addf %157, %158 : vector<8x128xf32>
    %cst_60 = arith.constant 0.000000e+00 : f32
    %160 = vector.broadcast %cst_60 : f32 to vector<8x128xf32>
    %161 = arith.maximumf %159, %160 : vector<8x128xf32>
    %162 = vector.extract_strided_slice %1 {offsets = [0, 256], sizes = [128, 128], strides = [1, 1]} : vector<128x384xf32> to vector<128x128xf32>
    %cst_61 = arith.constant dense<0.000000e+00> : vector<8x128xf32>
    %163 = tpu.matmul %161, %162, %cst_61 {dimension_numbers = #tpu.dot_dimension_numbers<[1], [0], [0], [1], [0, 0, 1, 1], [], []>} : vector<8x128xf32>, vector<128x128xf32>, vector<8x128xf32> -> vector<8x128xf32>
    %164 = vector.broadcast %5 : vector<1x128xf32> to vector<8x128xf32>
    %165 = arith.addf %163, %164 : vector<8x128xf32>
    %c0_62 = arith.constant 0 : index
    %c0_63 = arith.constant 0 : index
    %166 = vector.load %arg7[%c0_62, %c0_63] : memref<8x128xf32, #tpu.memory_space<vmem>>, vector<8x128xf32>
    tpu.vector_store %arg7[%c0_62, %c0_63], %165 {strides = array<i32>} : memref<8x128xf32, #tpu.memory_space<vmem>>, vector<8x128xf32>,
    return
  }
}

</mosaic_0001>

<llo_original>
// kernel: tpu_custom_call.1
$region0: #{tpu_custom_call.1}
  #allocation0 [shape = 'u32[]', space=smem, size = 0x4, offset = 0x4, fixed_abs, tag = 'smem constant byte address 0x4 - core index']
  #allocation1 [shape = 'u32[144,128]{1,0:T(1,128)}', space=vmem, size = 0x12000, scoped, tag = 'internal scratch']
  %s0 = inlined_call_operand.hbm [shape: f32[128,128], index: 0, kind: input, shape index: {}]
  %s1 = inlined_call_operand.hbm [shape: f32[8,128], index: 1, kind: input, shape index: {}]
  %s2 = inlined_call_operand.hbm [shape: f32[128,128], index: 2, kind: input, shape index: {}]
  %s3 = inlined_call_operand.hbm [shape: f32[128,384], index: 3, kind: input, shape index: {}]
  %s4 = inlined_call_operand.hbm [shape: f32[8,128], index: 4, kind: input, shape index: {}]
  %s5 = inlined_call_operand.hbm [shape: f32[2,128,384], index: 5, kind: input, shape index: {}]
  %s6 = inlined_call_operand.vmem [shape: f32[2,8,128], index: 6, kind: input, shape index: {}]
  %s7 = inlined_call_operand.hbm [shape: f32[8,128], index: 7, kind: output, shape index: {}]
  %s8 = sld [smem:[#allocation0]]
  $region62: #{tpu_custom_call.1} parent=0
    _
  %s10 = ssub.s32 1, %s8
  %s11 = scalar_select 0, %s10, %s8
  $region1: #{tpu_custom_call.1} parent=0
    #allocation2 [shape = 'u8[65536]{0}', space=vmem, size = 0x10000, scoped, tag = 'input window, operand 0, single buffered']
    #allocation3 [shape = 's32[1]{0}', space=sflag, size = 0x4, scoped, tag = 'scoped memory for tpu_custom_call.1']
    #allocation4 [shape = 's32[1]{0}', space=sflag, size = 0x4, scoped, tag = 'scoped memory for tpu_custom_call.1']
    #allocation5 [shape = 'u8[4096]{0}', space=vmem, size = 0x1000, scoped, tag = 'input window, operand 1, single buffered']
    #allocation6 [shape = 's32[1]{0}', space=sflag, size = 0x4, scoped, tag = 'scoped memory for tpu_custom_call.1']
    #allocation7 [shape = 'u8[65536]{0}', space=vmem, size = 0x10000, scoped, tag = 'input window, operand 2, single buffered']
    #allocation8 [shape = 'u8[196608]{0}', space=vmem, size = 0x30000, scoped, tag = 'input window, operand 3, single buffered']
    #allocation9 [shape = 's32[1]{0}', space=sflag, size = 0x4, scoped, tag = 'scoped memory for tpu_custom_call.1']
    #allocation10 [shape = 'u8[4096]{0}', space=vmem, size = 0x1000, scoped, tag = 'input window, operand 4, single buffered']
    #allocation11 [shape = 'u8[393216]{0}', space=vmem, size = 0x60000, scoped, tag = 'input window, operand 5, single buffered']
    #allocation12 [shape = 's32[1]{0}', space=sflag, size = 0x4, scoped, tag = 'scoped memory for tpu_custom_call.1']
    #allocation13 [shape = 'u8[4096]{0}', space=vmem, size = 0x1000, scoped, tag = 'output window, operand 0, single buffered']
    %12 = vsyncpa [#allocation3], 0
    %13 = vsyncpa [#allocation6], 0
    %14 = vsyncpa [#allocation9], 0
    %15 = vsyncpa [#allocation12], 0
    %16 = vsyncpa [#allocation4], 0
    // Predicated region
    $region2: #{tpu_custom_call.1} parent=1 // pred_check
      _
    $region3: #{tpu_custom_call.1} parent=1 // pred_check_branch
      %18 = sbr.rel (0) target = $region5
    $region4: #{tpu_custom_call.1} parent=1 // pred_region
      %s20 = ssub.s32 2048, 2048
      %21 = vsyncadd [#allocation3], %s20
      %s22 = sshll.u32 [#allocation2], 4
      %s23 = int_to_ptr.vmem [resolvable:$true] %s22
      %28 = dma.hbm_to_vmem [thread:$0]  %s0, 2048, %s23, [#allocation3], 128, 128, 8
    $region5: #{tpu_custom_call.1} parent=1 // pred_fallthru
      _
    // Predicated region
    $region6: #{tpu_custom_call.1} parent=1 // pred_check
      _
    $region7: #{tpu_custom_call.1} parent=1 // pred_check_branch
      %30 = sbr.rel (0) target = $region9
    $region8: #{tpu_custom_call.1} parent=1 // pred_region
      %s32 = ssub.s32 128, 128
      %33 = vsyncadd [#allocation6], %s32
      %s35 = sshll.u32 [#allocation5], 4
      %s36 = int_to_ptr.vmem [resolvable:$true] %s35
      %38 = dma.hbm_to_vmem [thread:$0]  %s1, 128, %s36, [#allocation6]
    $region9: #{tpu_custom_call.1} parent=1 // pred_fallthru
      _
    // Predicated region
    $region10: #{tpu_custom_call.1} parent=1 // pred_check
      _
    $region11: #{tpu_custom_call.1} parent=1 // pred_check_branch
      %40 = sbr.rel (0) target = $region13
    $region12: #{tpu_custom_call.1} parent=1 // pred_region
      %s42 = ssub.s32 2048, 2048
      %43 = vsyncadd [#allocation6], %s42
      %s44 = sshll.u32 [#allocation7], 4
      %s45 = int_to_ptr.vmem [resolvable:$true] %s44
      %50 = dma.hbm_to_vmem [thread:$0]  %s2, 2048, %s45, [#allocation6], 128, 128, 8
    $region13: #{tpu_custom_call.1} parent=1 // pred_fallthru
      _
    // Predicated region
    $region14: #{tpu_custom_call.1} parent=1 // pred_check
      _
    $region15: #{tpu_custom_call.1} parent=1 // pred_check_branch
      %52 = sbr.rel (0) target = $region17
    $region16: #{tpu_custom_call.1} parent=1 // pred_region
      %s54 = ssub.s32 6144, 6144
      %55 = vsyncadd [#allocation9], %s54
      %s56 = sshll.u32 [#allocation8], 4
      %s57 = int_to_ptr.vmem [resolvable:$true] %s56
      %62 = dma.hbm_to_vmem [thread:$0]  %s3, 6144, %s57, [#allocation9], 384, 384, 24
    $region17: #{tpu_custom_call.1} parent=1 // pred_fallthru
      _
    // Predicated region
    $region18: #{tpu_custom_call.1} parent=1 // pred_check
      _
    $region19: #{tpu_custom_call.1} parent=1 // pred_check_branch
      %64 = sbr.rel (0) target = $region21
    $region20: #{tpu_custom_call.1} parent=1 // pred_region
      %s66 = ssub.s32 128, 128
      %67 = vsyncadd [#allocation9], %s66
      %s69 = sshll.u32 [#allocation10], 4
      %s70 = int_to_ptr.vmem [resolvable:$true] %s69
      %72 = dma.hbm_to_vmem [thread:$0]  %s4, 128, %s70, [#allocation9]
    $region21: #{tpu_custom_call.1} parent=1 // pred_fallthru
      _
    // Predicated region
    $region22: #{tpu_custom_call.1} parent=1 // pred_check
      _
    $region23: #{tpu_custom_call.1} parent=1 // pred_check_branch
      %74 = sbr.rel (0) target = $region25
    $region24: #{tpu_custom_call.1} parent=1 // pred_region
      %s76 = ssub.s32 12288, 12288
      %77 = vsyncadd [#allocation12], %s76
      %s78 = sshll.u32 [#allocation11], 4
      %s79 = int_to_ptr.vmem [resolvable:$true] %s78
      %84 = dma.hbm_to_vmem [thread:$0]  %s5, 12288, %s79, [#allocation12], 384, 384, 24
    $region25: #{tpu_custom_call.1} parent=1 // pred_fallthru
      _
    // Predicated region
    $region26: #{tpu_custom_call.1} parent=1 // pred_check
      _
    $region27: #{tpu_custom_call.1} parent=1 // pred_check_branch
      %86 = sbr.rel (0) target = $region29
    $region28: #{tpu_custom_call.1} parent=1 // pred_region
      _
    $region29: #{tpu_custom_call.1} parent=1 // pred_fallthru
      _
    // Predicated region
    $region30: #{tpu_custom_call.1} parent=1 // pred_check
      _
    $region31: #{tpu_custom_call.1} parent=1 // pred_check_branch
      %88 = sbr.rel (0) target = $region33
    $region32: #{tpu_custom_call.1} parent=1 // pred_region
      %89 = dma.done [#allocation3], 2048
    $region33: #{tpu_custom_call.1} parent=1 // pred_fallthru
      _
    // Predicated region
    $region34: #{tpu_custom_call.1} parent=1 // pred_check
      _
    $region35: #{tpu_custom_call.1} parent=1 // pred_check_branch
      %91 = sbr.rel (0) target = $region37
    $region36: #{tpu_custom_call.1} parent=1 // pred_region
      %92 = dma.done [#allocation6], 128
    $region37: #{tpu_custom_call.1} parent=1 // pred_fallthru
      _
    // Predicated region
    $region38: #{tpu_custom_call.1} parent=1 // pred_check
      _
    $region39: #{tpu_custom_call.1} parent=1 // pred_check_branch
      %94 = sbr.rel (0) target = $region41
    $region40: #{tpu_custom_call.1} parent=1 // pred_region
      %95 = dma.done [#allocation6], 2048
    $region41: #{tpu_custom_call.1} parent=1 // pred_fallthru
      _
    // Predicated region
    $region42: #{tpu_custom_call.1} parent=1 // pred_check
      _
    $region43: #{tpu_custom_call.1} parent=1 // pred_check_branch
      %97 = sbr.rel (0) target = $region45
    $region44: #{tpu_custom_call.1} parent=1 // pred_region
      %98 = dma.done [#allocation9], 6144
    $region45: #{tpu_custom_call.1} parent=1 // pred_fallthru
      _
    // Predicated region
    $region46: #{tpu_custom_call.1} parent=1 // pred_check
      _
    $region47: #{tpu_custom_call.1} parent=1 // pred_check_branch
      %100 = sbr.rel (0) target = $region49
    $region48: #{tpu_custom_call.1} parent=1 // pred_region
      %101 = dma.done [#allocation9], 128
    $region49: #{tpu_custom_call.1} parent=1 // pred_fallthru
      _
    // Predicated region
    $region50: #{tpu_custom_call.1} parent=1 // pred_check
      _
    $region51: #{tpu_custom_call.1} parent=1 // pred_check_branch
      %103 = sbr.rel (0) target = $region53
    $region52: #{tpu_custom_call.1} parent=1 // pred_region
      %104 = dma.done [#allocation12], 12288
    $region53: #{tpu_custom_call.1} parent=1 // pred_fallthru
      _
    %v105 = vld [vmem:[#allocation2] sm:$0xff]
    %v106 = vld [vmem:[#allocation2 + $0x8] sm:$0xff]
    %v107 = vld [vmem:[#allocation2 + $0x10] sm:$0xff]
    %v108 = vld [vmem:[#allocation2 + $0x18] sm:$0xff]
    %v109 = vld [vmem:[#allocation2 + $0x20] sm:$0xff]
    %v110 = vld [vmem:[#allocation2 + $0x28] sm:$0xff]
    %v111 = vld [vmem:[#allocation2 + $0x30] sm:$0xff]
    %v112 = vld [vmem:[#allocation2 + $0x38] sm:$0xff]
    %v113 = vld [vmem:[#allocation2 + $0x40] sm:$0xff]
    %v114 = vld [vmem:[#allocation2 + $0x48] sm:$0xff]
    %v115 = vld [vmem:[#allocation2 + $0x50] sm:$0xff]
    %v116 = vld [vmem:[#allocation2 + $0x58] sm:$0xff]
    %v117 = vld [vmem:[#allocation2 + $0x60] sm:$0xff]
    %v118 = vld [vmem:[#allocation2 + $0x68] sm:$0xff]
    %v119 = vld [vmem:[#allocation2 + $0x70] sm:$0xff]
    %v120 = vld [vmem:[#allocation2 + $0x78] sm:$0xff]
    %v121 = vld [vmem:[#allocation8] sm:$0xff]
    %v122 = vld [vmem:[#allocation8 + $0x8] sm:$0xff]
    %v123 = vld [vmem:[#allocation8 + $0x10] sm:$0xff]
    %v124 = vld [vmem:[#allocation8 + $0x18] sm:$0xff]
    %v125 = vld [vmem:[#allocation8 + $0x20] sm:$0xff]
    %v126 = vld [vmem:[#allocation8 + $0x28] sm:$0xff]
    %v127 = vld [vmem:[#allocation8 + $0x30] sm:$0xff]
    %v128 = vld [vmem:[#allocation8 + $0x38] sm:$0xff]
    %v129 = vld [vmem:[#allocation8 + $0x40] sm:$0xff]
    %v130 = vld [vmem:[#allocation8 + $0x48] sm:$0xff]
    %v131 = vld [vmem:[#allocation8 + $0x50] sm:$0xff]
    %v132 = vld [vmem:[#allocation8 + $0x58] sm:$0xff]
    %v133 = vld [vmem:[#allocation8 + $0x60] sm:$0xff]
    %v134 = vld [vmem:[#allocation8 + $0x68] sm:$0xff]
    %v135 = vld [vmem:[#allocation8 + $0x70] sm:$0xff]
    %v136 = vld [vmem:[#allocation8 + $0x78] sm:$0xff]
    %v137 = vld [vmem:[#allocation8 + $0x80] sm:$0xff]
    %v138 = vld [vmem:[#allocation8 + $0x88] sm:$0xff]
    %v139 = vld [vmem:[#allocation8 + $0x90] sm:$0xff]
    %v140 = vld [vmem:[#allocation8 + $0x98] sm:$0xff]
    %v141 = vld [vmem:[#allocation8 + $0xa0] sm:$0xff]
    %v142 = vld [vmem:[#allocation8 + $0xa8] sm:$0xff]
    %v143 = vld [vmem:[#allocation8 + $0xb0] sm:$0xff]
    %v144 = vld [vmem:[#allocation8 + $0xb8] sm:$0xff]
    %v145 = vld [vmem:[#allocation8 + $0xc0] sm:$0xff]
    %v146 = vld [vmem:[#allocation8 + $0xc8] sm:$0xff]
    %v147 = vld [vmem:[#allocation8 + $0xd0] sm:$0xff]
    %v148 = vld [vmem:[#allocation8 + $0xd8] sm:$0xff]
    %v149 = vld [vmem:[#allocation8 + $0xe0] sm:$0xff]
    %v150 = vld [vmem:[#allocation8 + $0xe8] sm:$0xff]
    %v151 = vld [vmem:[#allocation8 + $0xf0] sm:$0xff]
    %v152 = vld [vmem:[#allocation8 + $0xf8] sm:$0xff]
    %v153 = vld [vmem:[#allocation8 + $0x100] sm:$0xff]
    %v154 = vld [vmem:[#allocation8 + $0x108] sm:$0xff]
    %v155 = vld [vmem:[#allocation8 + $0x110] sm:$0xff]
    %v156 = vld [vmem:[#allocation8 + $0x118] sm:$0xff]
    %v157 = vld [vmem:[#allocation8 + $0x120] sm:$0xff]
    %v158 = vld [vmem:[#allocation8 + $0x128] sm:$0xff]
    %v159 = vld [vmem:[#allocation8 + $0x130] sm:$0xff]
    %v160 = vld [vmem:[#allocation8 + $0x138] sm:$0xff]
    %v161 = vld [vmem:[#allocation8 + $0x140] sm:$0xff]
    %v162 = vld [vmem:[#allocation8 + $0x148] sm:$0xff]
    %v163 = vld [vmem:[#allocation8 + $0x150] sm:$0xff]
    %v164 = vld [vmem:[#allocation8 + $0x158] sm:$0xff]
    %v165 = vld [vmem:[#allocation8 + $0x160] sm:$0xff]
    %v166 = vld [vmem:[#allocation8 + $0x168] sm:$0xff]
    %v167 = vld [vmem:[#allocation8 + $0x170] sm:$0xff]
    %v168 = vld [vmem:[#allocation8 + $0x178] sm:$0xff]
    %v169 = vld [vmem:[#allocation10] sm:$0xff]
    %v170 = vld [vmem:[#allocation7] sm:$0xff]
    %v171 = vld [vmem:[#allocation7 + $0x8] sm:$0xff]
    %v172 = vld [vmem:[#allocation7 + $0x10] sm:$0xff]
    %v173 = vld [vmem:[#allocation7 + $0x18] sm:$0xff]
    %v174 = vld [vmem:[#allocation7 + $0x20] sm:$0xff]
    %v175 = vld [vmem:[#allocation7 + $0x28] sm:$0xff]
    %v176 = vld [vmem:[#allocation7 + $0x30] sm:$0xff]
    %v177 = vld [vmem:[#allocation7 + $0x38] sm:$0xff]
    %v178 = vld [vmem:[#allocation7 + $0x40] sm:$0xff]
    %v179 = vld [vmem:[#allocation7 + $0x48] sm:$0xff]
    %v180 = vld [vmem:[#allocation7 + $0x50] sm:$0xff]
    %v181 = vld [vmem:[#allocation7 + $0x58] sm:$0xff]
    %v182 = vld [vmem:[#allocation7 + $0x60] sm:$0xff]
    %v183 = vld [vmem:[#allocation7 + $0x68] sm:$0xff]
    %v184 = vld [vmem:[#allocation7 + $0x70] sm:$0xff]
    %v185 = vld [vmem:[#allocation7 + $0x78] sm:$0xff]
    %186 = vmatprep.subr.mxu0 0.0
    %187 = vmatpush1.msra.mxu0 %v170
    %188 = vmatprep.subr.mxu0 0.0
    %189 = vmatpush1.msra.mxu0 %v171
    %190 = vmatprep.subr.mxu0 0.0
    %191 = vmatpush1.msra.mxu0 %v172
    %192 = vmatprep.subr.mxu0 0.0
    %193 = vmatpush1.msra.mxu0 %v173
    %194 = vmatprep.subr.mxu0 0.0
    %195 = vmatpush1.msra.mxu0 %v174
    %196 = vmatprep.subr.mxu0 0.0
    %197 = vmatpush1.msra.mxu0 %v175
    %198 = vmatprep.subr.mxu0 0.0
    %199 = vmatpush1.msra.mxu0 %v176
    %200 = vmatprep.subr.mxu0 0.0
    %201 = vmatpush1.msra.mxu0 %v177
    %202 = vmatprep.subr.mxu0 0.0
    %203 = vmatpush1.msra.mxu0 %v178
    %204 = vmatprep.subr.mxu0 0.0
    %205 = vmatpush1.msra.mxu0 %v179
    %206 = vmatprep.subr.mxu0 0.0
    %207 = vmatpush1.msra.mxu0 %v180
    %208 = vmatprep.subr.mxu0 0.0
    %209 = vmatpush1.msra.mxu0 %v181
    %210 = vmatprep.subr.mxu0 0.0
    %211 = vmatpush1.msra.mxu0 %v182
    %212 = vmatprep.subr.mxu0 0.0
    %213 = vmatpush1.msra.mxu0 %v183
    %214 = vmatprep.subr.mxu0 0.0
    %215 = vmatpush1.msra.mxu0 %v184
    %216 = vmatprep.subr.mxu0 0.0
    %217 = vmatpush1.msra.mxu0 %v185
    %218 = vmatprep.subr.mxu0 0.0
    %219 = vmatpush1.msra.mxu0 0.0
    %220 = vmatprep.subr.mxu0 0.0
    %221 = vmatpush1.msra.mxu0 0.0
    %222 = vmatprep.subr.mxu0 0.0
    %223 = vmatpush1.msra.mxu0 0.0
    %224 = vmatprep.subr.mxu0 0.0
    %225 = vmatpush1.msra.mxu0 0.0
    %226 = vmatprep.subr.mxu0 0.0
    %227 = vmatpush1.msra.mxu0 0.0
    %228 = vmatprep.subr.mxu0 0.0
    %229 = vmatpush1.msra.mxu0 0.0
    %230 = vmatprep.subr.mxu0 0.0
    %231 = vmatpush1.msra.mxu0 0.0
    %232 = vmatprep.subr.mxu0 0.0
    %233 = vmatpush1.msra.mxu0 0.0
    %234 = vmatprep.subr.mxu0 0.0
    %235 = vmatpush1.msra.mxu0 0.0
    %236 = vmatprep.subr.mxu0 0.0
    %237 = vmatpush1.msra.mxu0 0.0
    %238 = vmatprep.subr.mxu0 0.0
    %239 = vmatpush1.msra.mxu0 0.0
    %240 = vmatprep.subr.mxu0 0.0
    %241 = vmatpush1.msra.mxu0 0.0
    %242 = vmatprep.subr.mxu0 0.0
    %243 = vmatpush1.msra.mxu0 0.0
    %244 = vmatprep.subr.mxu0 0.0
    %245 = vmatpush1.msra.mxu0 0.0
    %246 = vmatprep.subr.mxu0 0.0
    %247 = vmatpush1.msra.mxu0 0.0
    %248 = vmatprep.subr.mxu0 0.0
    %249 = vmatpush1.msra.mxu0 0.0
    %250 = vmatprep.mubr.f32.mxu0 0.0
    %251 = vmatmul.mubr.f32.gmra.mrb[0].mxu0 %v105
    %v252 = vpop.f32.mrb[0].mxu0
    %v253 = vadd.f32 0.0, %v252
    %v254 = vpop.f32.mrb[0].mxu0
    %255 = vmatprep.mubr.f32.mxu0 0.0
    %256 = vmatmul.mubr.f32.gmra.mrb[0].mxu0 %v106
    %v257 = vpop.f32.mrb[0].mxu0
    %v258 = vadd.f32 0.0, %v257
    %v259 = vpop.f32.mrb[0].mxu0
    %260 = vmatprep.mubr.f32.mxu0 0.0
    %261 = vmatmul.mubr.f32.gmra.mrb[0].mxu0 %v107
    %v262 = vpop.f32.mrb[0].mxu0
    %v263 = vadd.f32 0.0, %v262
    %v264 = vpop.f32.mrb[0].mxu0
    %265 = vmatprep.mubr.f32.mxu0 0.0
    %266 = vmatmul.mubr.f32.gmra.mrb[0].mxu0 %v108
    %v267 = vpop.f32.mrb[0].mxu0
    %v268 = vadd.f32 0.0, %v267
    %v269 = vpop.f32.mrb[0].mxu0
    %270 = vmatprep.mubr.f32.mxu0 0.0
    %271 = vmatmul.mubr.f32.gmra.mrb[0].mxu0 %v109
    %v272 = vpop.f32.mrb[0].mxu0
    %v273 = vadd.f32 0.0, %v272
    %v274 = vpop.f32.mrb[0].mxu0
    %275 = vmatprep.mubr.f32.mxu0 0.0
    %276 = vmatmul.mubr.f32.gmra.mrb[0].mxu0 %v110
    %v277 = vpop.f32.mrb[0].mxu0
    %v278 = vadd.f32 0.0, %v277
    %v279 = vpop.f32.mrb[0].mxu0
    %280 = vmatprep.mubr.f32.mxu0 0.0
    %281 = vmatmul.mubr.f32.gmra.mrb[0].mxu0 %v111
    %v282 = vpop.f32.mrb[0].mxu0
    %v283 = vadd.f32 0.0, %v282
    %v284 = vpop.f32.mrb[0].mxu0
    %285 = vmatprep.mubr.f32.mxu0 0.0
    %286 = vmatmul.mubr.f32.gmra.mrb[0].mxu0 %v112
    %v287 = vpop.f32.mrb[0].mxu0
    %v288 = vadd.f32 0.0, %v287
    %v289 = vpop.f32.mrb[0].mxu0
    %290 = vmatprep.mubr.f32.mxu0 0.0
    %291 = vmatmul.mubr.f32.gmra.mrb[0].mxu0 %v113
    %v292 = vpop.f32.mrb[0].mxu0
    %v293 = vadd.f32 0.0, %v292
    %v294 = vpop.f32.mrb[0].mxu0
    %295 = vmatprep.mubr.f32.mxu0 0.0
    %296 = vmatmul.mubr.f32.gmra.mrb[0].mxu0 %v114
    %v297 = vpop.f32.mrb[0].mxu0
    %v298 = vadd.f32 0.0, %v297
    %v299 = vpop.f32.mrb[0].mxu0
    %300 = vmatprep.mubr.f32.mxu0 0.0
    %301 = vmatmul.mubr.f32.gmra.mrb[0].mxu0 %v115
    %v302 = vpop.f32.mrb[0].mxu0
    %v303 = vadd.f32 0.0, %v302
    %v304 = vpop.f32.mrb[0].mxu0
    %305 = vmatprep.mubr.f32.mxu0 0.0
    %306 = vmatmul.mubr.f32.gmra.mrb[0].mxu0 %v116
    %v307 = vpop.f32.mrb[0].mxu0
    %v308 = vadd.f32 0.0, %v307
    %v309 = vpop.f32.mrb[0].mxu0
    %310 = vmatprep.mubr.f32.mxu0 0.0
    %311 = vmatmul.mubr.f32.gmra.mrb[0].mxu0 %v117
    %v312 = vpop.f32.mrb[0].mxu0
    %v313 = vadd.f32 0.0, %v312
    %v314 = vpop.f32.mrb[0].mxu0
    %315 = vmatprep.mubr.f32.mxu0 0.0
    %316 = vmatmul.mubr.f32.gmra.mrb[0].mxu0 %v118
    %v317 = vpop.f32.mrb[0].mxu0
    %v318 = vadd.f32 0.0, %v317
    %v319 = vpop.f32.mrb[0].mxu0
    %320 = vmatprep.mubr.f32.mxu0 0.0
    %321 = vmatmul.mubr.f32.gmra.mrb[0].mxu0 %v119
    %v322 = vpop.f32.mrb[0].mxu0
    %v323 = vadd.f32 0.0, %v322
    %v324 = vpop.f32.mrb[0].mxu0
    %325 = vmatprep.mubr.f32.mxu0 0.0
    %326 = vmatmul.mubr.f32.gmra.mrb[0].mxu0 %v120
    %v327 = vpop.f32.mrb[0].mxu0
    %v328 = vadd.f32 0.0, %v327
    %v329 = vpop.f32.mrb[0].mxu0
    %330 = vdwg.mxu0
    %v331 = vlaneseq
    %v332 = vshrl.u32 %v331, 7
    %v333 = vsub.s32 0, %v332
    %v334 = vrot.slane %v169, %v333
    %335 = vmatprep.subr.mxu0 0.0
    %336 = vmatpush1.msra.mxu0 %v121
    %337 = vmatprep.subr.mxu0 0.0
    %338 = vmatpush1.msra.mxu0 %v124
    %339 = vmatprep.subr.mxu0 0.0
    %340 = vmatpush1.msra.mxu0 %v127
    %341 = vmatprep.subr.mxu0 0.0
    %342 = vmatpush1.msra.mxu0 %v130
    %343 = vmatprep.subr.mxu0 0.0
    %344 = vmatpush1.msra.mxu0 %v133
    %345 = vmatprep.subr.mxu0 0.0
    %346 = vmatpush1.msra.mxu0 %v136
    %347 = vmatprep.subr.mxu0 0.0
    %348 = vmatpush1.msra.mxu0 %v139
    %349 = vmatprep.subr.mxu0 0.0
    %350 = vmatpush1.msra.mxu0 %v142
    %351 = vmatprep.subr.mxu0 0.0
    %352 = vmatpush1.msra.mxu0 %v145
    %353 = vmatprep.subr.mxu0 0.0
    %354 = vmatpush1.msra.mxu0 %v148
    %355 = vmatprep.subr.mxu0 0.0
    %356 = vmatpush1.msra.mxu0 %v151
    %357 = vmatprep.subr.mxu0 0.0
    %358 = vmatpush1.msra.mxu0 %v154
    %359 = vmatprep.subr.mxu0 0.0
    %360 = vmatpush1.msra.mxu0 %v157
    %361 = vmatprep.subr.mxu0 0.0
    %362 = vmatpush1.msra.mxu0 %v160
    %363 = vmatprep.subr.mxu0 0.0
    %364 = vmatpush1.msra.mxu0 %v163
    %365 = vmatprep.subr.mxu0 0.0
    %366 = vmatpush1.msra.mxu0 %v166
    %367 = vmatprep.subr.mxu0 0.0
    %368 = vmatpush1.msra.mxu0 0.0
    %369 = vmatprep.subr.mxu0 0.0
    %370 = vmatpush1.msra.mxu0 0.0
    %371 = vmatprep.subr.mxu0 0.0
    %372 = vmatpush1.msra.mxu0 0.0
    %373 = vmatprep.subr.mxu0 0.0
    %374 = vmatpush1.msra.mxu0 0.0
    %375 = vmatprep.subr.mxu0 0.0
    %376 = vmatpush1.msra.mxu0 0.0
    %377 = vmatprep.subr.mxu0 0.0
    %378 = vmatpush1.msra.mxu0 0.0
    %379 = vmatprep.subr.mxu0 0.0
    %380 = vmatpush1.msra.mxu0 0.0
    %381 = vmatprep.subr.mxu0 0.0
    %382 = vmatpush1.msra.mxu0 0.0
    %383 = vmatprep.subr.mxu0 0.0
    %384 = vmatpush1.msra.mxu0 0.0
    %385 = vmatprep.subr.mxu0 0.0
    %386 = vmatpush1.msra.mxu0 0.0
    %387 = vmatprep.subr.mxu0 0.0
    %388 = vmatpush1.msra.mxu0 0.0
    %389 = vmatprep.subr.mxu0 0.0
    %390 = vmatpush1.msra.mxu0 0.0
    %391 = vmatprep.subr.mxu0 0.0
    %392 = vmatpush1.msra.mxu0 0.0
    %393 = vmatprep.subr.mxu0 0.0
    %394 = vmatpush1.msra.mxu0 0.0
    %395 = vmatprep.subr.mxu0 0.0
    %396 = vmatpush1.msra.mxu0 0.0
    %397 = vmatprep.subr.mxu0 0.0
    %398 = vmatpush1.msra.mxu0 0.0
    %399 = vmatprep.mubr.f32.mxu0 0.0
    %400 = vmatmul.mubr.f32.gmra.mrb[0].mxu0 %v253
    %v401 = vpop.f32.mrb[0].mxu0
    %v402 = vadd.f32 %v334, %v401
    %v403 = vpop.f32.mrb[0].mxu0
    %404 = vmatprep.mubr.f32.mxu0 0.0
    %405 = vmatmul.mubr.f32.gmra.mrb[0].mxu0 %v258
    %v406 = vpop.f32.mrb[0].mxu0
    %v407 = vadd.f32 %v334, %v406
    %v408 = vpop.f32.mrb[0].mxu0
    %409 = vmatprep.mubr.f32.mxu0 0.0
    %410 = vmatmul.mubr.f32.gmra.mrb[0].mxu0 %v263
    %v411 = vpop.f32.mrb[0].mxu0
    %v412 = vadd.f32 %v334, %v411
    %v413 = vpop.f32.mrb[0].mxu0
    %414 = vmatprep.mubr.f32.mxu0 0.0
    %415 = vmatmul.mubr.f32.gmra.mrb[0].mxu0 %v268
    %v416 = vpop.f32.mrb[0].mxu0
    %v417 = vadd.f32 %v334, %v416
    %v418 = vpop.f32.mrb[0].mxu0
    %419 = vmatprep.mubr.f32.mxu0 0.0
    %420 = vmatmul.mubr.f32.gmra.mrb[0].mxu0 %v273
    %v421 = vpop.f32.mrb[0].mxu0
    %v422 = vadd.f32 %v334, %v421
    %v423 = vpop.f32.mrb[0].mxu0
    %424 = vmatprep.mubr.f32.mxu0 0.0
    %425 = vmatmul.mubr.f32.gmra.mrb[0].mxu0 %v278
    %v426 = vpop.f32.mrb[0].mxu0
    %v427 = vadd.f32 %v334, %v426
    %v428 = vpop.f32.mrb[0].mxu0
    %429 = vmatprep.mubr.f32.mxu0 0.0
    %430 = vmatmul.mubr.f32.gmra.mrb[0].mxu0 %v283
    %v431 = vpop.f32.mrb[0].mxu0
    %v432 = vadd.f32 %v334, %v431
    %v433 = vpop.f32.mrb[0].mxu0
    %434 = vmatprep.mubr.f32.mxu0 0.0
    %435 = vmatmul.mubr.f32.gmra.mrb[0].mxu0 %v288
    %v436 = vpop.f32.mrb[0].mxu0
    %v437 = vadd.f32 %v334, %v436
    %v438 = vpop.f32.mrb[0].mxu0
    %439 = vmatprep.mubr.f32.mxu0 0.0
    %440 = vmatmul.mubr.f32.gmra.mrb[0].mxu0 %v293
    %v441 = vpop.f32.mrb[0].mxu0
    %v442 = vadd.f32 %v334, %v441
    %v443 = vpop.f32.mrb[0].mxu0
    %444 = vmatprep.mubr.f32.mxu0 0.0
    %445 = vmatmul.mubr.f32.gmra.mrb[0].mxu0 %v298
    %v446 = vpop.f32.mrb[0].mxu0
    %v447 = vadd.f32 %v334, %v446
    %v448 = vpop.f32.mrb[0].mxu0
    %449 = vmatprep.mubr.f32.mxu0 0.0
    %450 = vmatmul.mubr.f32.gmra.mrb[0].mxu0 %v303
    %v451 = vpop.f32.mrb[0].mxu0
    %v452 = vadd.f32 %v334, %v451
    %v453 = vpop.f32.mrb[0].mxu0
    %454 = vmatprep.mubr.f32.mxu0 0.0
    %455 = vmatmul.mubr.f32.gmra.mrb[0].mxu0 %v308
    %v456 = vpop.f32.mrb[0].mxu0
    %v457 = vadd.f32 %v334, %v456
    %v458 = vpop.f32.mrb[0].mxu0
    %459 = vmatprep.mubr.f32.mxu0 0.0
    %460 = vmatmul.mubr.f32.gmra.mrb[0].mxu0 %v313
    %v461 = vpop.f32.mrb[0].mxu0
    %v462 = vadd.f32 %v334, %v461
    %v463 = vpop.f32.mrb[0].mxu0
    %464 = vmatprep.mubr.f32.mxu0 0.0
    %465 = vmatmul.mubr.f32.gmra.mrb[0].mxu0 %v318
    %v466 = vpop.f32.mrb[0].mxu0
    %v467 = vadd.f32 %v334, %v466
    %v468 = vpop.f32.mrb[0].mxu0
    %469 = vmatprep.mubr.f32.mxu0 0.0
    %470 = vmatmul.mubr.f32.gmra.mrb[0].mxu0 %v323
    %v471 = vpop.f32.mrb[0].mxu0
    %v472 = vadd.f32 %v334, %v471
    %v473 = vpop.f32.mrb[0].mxu0
    %474 = vmatprep.mubr.f32.mxu0 0.0
    %475 = vmatmul.mubr.f32.gmra.mrb[0].mxu0 %v328
    %v476 = vpop.f32.mrb[0].mxu0
    %v477 = vadd.f32 %v334, %v476
    %v478 = vpop.f32.mrb[0].mxu0
    %479 = vdwg.mxu0
    %v480 = vmax.f32 %v402, 0.0
    %v481 = vmax.f32 %v407, 0.0
    %v482 = vmax.f32 %v412, 0.0
    %v483 = vmax.f32 %v417, 0.0
    %v484 = vmax.f32 %v422, 0.0
    %v485 = vmax.f32 %v427, 0.0
    %v486 = vmax.f32 %v432, 0.0
    %v487 = vmax.f32 %v437, 0.0
    %v488 = vmax.f32 %v442, 0.0
    %v489 = vmax.f32 %v447, 0.0
    %v490 = vmax.f32 %v452, 0.0
    %v491 = vmax.f32 %v457, 0.0
    %v492 = vmax.f32 %v462, 0.0
    %v493 = vmax.f32 %v467, 0.0
    %v494 = vmax.f32 %v472, 0.0
    %v495 = vmax.f32 %v477, 0.0
    %v496 = vld [vmem:[#allocation11] sm:$0xff]
    %v497 = vld [vmem:[#allocation11 + $0x8] sm:$0xff]
    %v498 = vld [vmem:[#allocation11 + $0x10] sm:$0xff]
    %v499 = vld [vmem:[#allocation11 + $0x18] sm:$0xff]
    %v500 = vld [vmem:[#allocation11 + $0x20] sm:$0xff]
    %v501 = vld [vmem:[#allocation11 + $0x28] sm:$0xff]
    %v502 = vld [vmem:[#allocation11 + $0x30] sm:$0xff]
    %v503 = vld [vmem:[#allocation11 + $0x38] sm:$0xff]
    %v504 = vld [vmem:[#allocation11 + $0x40] sm:$0xff]
    %v505 = vld [vmem:[#allocation11 + $0x48] sm:$0xff]
    %v506 = vld [vmem:[#allocation11 + $0x50] sm:$0xff]
    %v507 = vld [vmem:[#allocation11 + $0x58] sm:$0xff]
    %v508 = vld [vmem:[#allocation11 + $0x60] sm:$0xff]
    %v509 = vld [vmem:[#allocation11 + $0x68] sm:$0xff]
    %v510 = vld [vmem:[#allocation11 + $0x70] sm:$0xff]
    %v511 = vld [vmem:[#allocation11 + $0x78] sm:$0xff]
    %v512 = vld [vmem:[#allocation11 + $0x80] sm:$0xff]
    %v513 = vld [vmem:[#allocation11 + $0x88] sm:$0xff]
    %v514 = vld [vmem:[#allocation11 + $0x90] sm:$0xff]
    %v515 = vld [vmem:[#allocation11 + $0x98] sm:$0xff]
    %v516 = vld [vmem:[#allocation11 + $0xa0] sm:$0xff]
    %v517 = vld [vmem:[#allocation11 + $0xa8] sm:$0xff]
    %v518 = vld [vmem:[#allocation11 + $0xb0] sm:$0xff]
    %v519 = vld [vmem:[#allocation11 + $0xb8] sm:$0xff]
    %v520 = vld [vmem:[#allocation11 + $0xc0] sm:$0xff]
    %v521 = vld [vmem:[#allocation11 + $0xc8] sm:$0xff]
    %v522 = vld [vmem:[#allocation11 + $0xd0] sm:$0xff]
    %v523 = vld [vmem:[#allocation11 + $0xd8] sm:$0xff]
    %v524 = vld [vmem:[#allocation11 + $0xe0] sm:$0xff]
    %v525 = vld [vmem:[#allocation11 + $0xe8] sm:$0xff]
    %v526 = vld [vmem:[#allocation11 + $0xf0] sm:$0xff]
    %v527 = vld [vmem:[#allocation11 + $0xf8] sm:$0xff]
    %v528 = vld [vmem:[#allocation11 + $0x100] sm:$0xff]
    %v529 = vld [vmem:[#allocation11 + $0x108] sm:$0xff]
    %v530 = vld [vmem:[#allocation11 + $0x110] sm:$0xff]
    %v531 = vld [vmem:[#allocation11 + $0x118] sm:$0xff]
    %v532 = vld [vmem:[#allocation11 + $0x120] sm:$0xff]
    %v533 = vld [vmem:[#allocation11 + $0x128] sm:$0xff]
    %v534 = vld [vmem:[#allocation11 + $0x130] sm:$0xff]
    %v535 = vld [vmem:[#allocation11 + $0x138] sm:$0xff]
    %v536 = vld [vmem:[#allocation11 + $0x140] sm:$0xff]
    %v537 = vld [vmem:[#allocation11 + $0x148] sm:$0xff]
    %v538 = vld [vmem:[#allocation11 + $0x150] sm:$0xff]
    %v539 = vld [vmem:[#allocation11 + $0x158] sm:$0xff]
    %v540 = vld [vmem:[#allocation11 + $0x160] sm:$0xff]
    %v541 = vld [vmem:[#allocation11 + $0x168] sm:$0xff]
    %v542 = vld [vmem:[#allocation11 + $0x170] sm:$0xff]
    %v543 = vld [vmem:[#allocation11 + $0x178] sm:$0xff]
    %v544 = vld [vmem:[%s6] sm:$0xff]
    %545 = vmatprep.subr.mxu0 %v497
    %546 = vmatpush1.msra.mxu0 %v496
    %547 = vmatprep.subr.mxu0 %v500
    %548 = vmatpush1.msra.mxu0 %v499
    %549 = vmatprep.subr.mxu0 %v503
    %550 = vmatpush1.msra.mxu0 %v502
    %551 = vmatprep.subr.mxu0 %v506
    %552 = vmatpush1.msra.mxu0 %v505
    %553 = vmatprep.subr.mxu0 %v509
    %554 = vmatpush1.msra.mxu0 %v508
    %555 = vmatprep.subr.mxu0 %v512
    %556 = vmatpush1.msra.mxu0 %v511
    %557 = vmatprep.subr.mxu0 %v515
    %558 = vmatpush1.msra.mxu0 %v514
    %559 = vmatprep.subr.mxu0 %v518
    %560 = vmatpush1.msra.mxu0 %v517
    %561 = vmatprep.subr.mxu0 %v521
    %562 = vmatpush1.msra.mxu0 %v520
    %563 = vmatprep.subr.mxu0 %v524
    %564 = vmatpush1.msra.mxu0 %v523
    %565 = vmatprep.subr.mxu0 %v527
    %566 = vmatpush1.msra.mxu0 %v526
    %567 = vmatprep.subr.mxu0 %v530
    %568 = vmatpush1.msra.mxu0 %v529
    %569 = vmatprep.subr.mxu0 %v533
    %570 = vmatpush1.msra.mxu0 %v532
    %571 = vmatprep.subr.mxu0 %v536
    %572 = vmatpush1.msra.mxu0 %v535
    %573 = vmatprep.subr.mxu0 %v539
    %574 = vmatpush1.msra.mxu0 %v538
    %575 = vmatprep.subr.mxu0 %v542
    %576 = vmatpush1.msra.mxu0 %v541
    %577 = vmatprep.subr.mxu0 0.0
    %578 = vmatpush1.msra.mxu0 0.0
    %579 = vmatprep.subr.mxu0 0.0
    %580 = vmatpush1.msra.mxu0 0.0
    %581 = vmatprep.subr.mxu0 0.0
    %582 = vmatpush1.msra.mxu0 0.0
    %583 = vmatprep.subr.mxu0 0.0
    %584 = vmatpush1.msra.mxu0 0.0
    %585 = vmatprep.subr.mxu0 0.0
    %586 = vmatpush1.msra.mxu0 0.0
    %587 = vmatprep.subr.mxu0 0.0
    %588 = vmatpush1.msra.mxu0 0.0
    %589 = vmatprep.subr.mxu0 0.0
    %590 = vmatpush1.msra.mxu0 0.0
    %591 = vmatprep.subr.mxu0 0.0
    %592 = vmatpush1.msra.mxu0 0.0
    %593 = vmatprep.subr.mxu0 0.0
    %594 = vmatpush1.msra.mxu0 0.0
    %595 = vmatprep.subr.mxu0 0.0
    %596 = vmatpush1.msra.mxu0 0.0
    %597 = vmatprep.subr.mxu0 0.0
    %598 = vmatpush1.msra.mxu0 0.0
    %599 = vmatprep.subr.mxu0 0.0
    %600 = vmatpush1.msra.mxu0 0.0
    %601 = vmatprep.subr.mxu0 0.0
    %602 = vmatpush1.msra.mxu0 0.0
    %603 = vmatprep.subr.mxu0 0.0
    %604 = vmatpush1.msra.mxu0 0.0
    %605 = vmatprep.subr.mxu0 0.0
    %606 = vmatpush1.msra.mxu0 0.0
    %607 = vmatprep.subr.mxu0 0.0
    %608 = vmatpush1.msra.mxu0 0.0
    %609 = vmatprep.mubr.f32.mxu0 0.0
    %610 = vmatmul.mubr.f32.gmra.mrb[0].mxu0 %v480
    %v611 = vpop.f32.mrb[0].mxu0
    %v612 = vadd.f32 0.0, %v611
    %v613 = vpop.f32.mrb[0].mxu0
    %v614 = vadd.f32 0.0, %v613
    %615 = vmatprep.mubr.f32.mxu0 0.0
    %616 = vmatmul.mubr.f32.gmra.mrb[0].mxu0 %v481
    %v617 = vpop.f32.mrb[0].mxu0
    %v618 = vadd.f32 0.0, %v617
    %v619 = vpop.f32.mrb[0].mxu0
    %v620 = vadd.f32 0.0, %v619
    %621 = vmatprep.mubr.f32.mxu0 0.0
    %622 = vmatmul.mubr.f32.gmra.mrb[0].mxu0 %v482
    %v623 = vpop.f32.mrb[0].mxu0
    %v624 = vadd.f32 0.0, %v623
    %v625 = vpop.f32.mrb[0].mxu0
    %v626 = vadd.f32 0.0, %v625
    %627 = vmatprep.mubr.f32.mxu0 0.0
    %628 = vmatmul.mubr.f32.gmra.mrb[0].mxu0 %v483
    %v629 = vpop.f32.mrb[0].mxu0
    %v630 = vadd.f32 0.0, %v629
    %v631 = vpop.f32.mrb[0].mxu0
    %v632 = vadd.f32 0.0, %v631
    %633 = vmatprep.mubr.f32.mxu0 0.0
    %634 = vmatmul.mubr.f32.gmra.mrb[0].mxu0 %v484
    %v635 = vpop.f32.mrb[0].mxu0
    %v636 = vadd.f32 0.0, %v635
    %v637 = vpop.f32.mrb[0].mxu0
    %v638 = vadd.f32 0.0, %v637
    %639 = vmatprep.mubr.f32.mxu0 0.0
    %640 = vmatmul.mubr.f32.gmra.mrb[0].mxu0 %v485
    %v641 = vpop.f32.mrb[0].mxu0
    %v642 = vadd.f32 0.0, %v641
    %v643 = vpop.f32.mrb[0].mxu0
    %v644 = vadd.f32 0.0, %v643
    %645 = vmatprep.mubr.f32.mxu0 0.0
    %646 = vmatmul.mubr.f32.gmra.mrb[0].mxu0 %v486
    %v647 = vpop.f32.mrb[0].mxu0
    %v648 = vadd.f32 0.0, %v647
    %v649 = vpop.f32.mrb[0].mxu0
    %v650 = vadd.f32 0.0, %v649
    %651 = vmatprep.mubr.f32.mxu0 0.0
    %652 = vmatmul.mubr.f32.gmra.mrb[0].mxu0 %v487
    %v653 = vpop.f32.mrb[0].mxu0
    %v654 = vadd.f32 0.0, %v653
    %v655 = vpop.f32.mrb[0].mxu0
    %v656 = vadd.f32 0.0, %v655
    %657 = vmatprep.mubr.f32.mxu0 0.0
    %658 = vmatmul.mubr.f32.gmra.mrb[0].mxu0 %v488
    %v659 = vpop.f32.mrb[0].mxu0
    %v660 = vadd.f32 0.0, %v659
    %v661 = vpop.f32.mrb[0].mxu0
    %v662 = vadd.f32 0.0, %v661
    %663 = vmatprep.mubr.f32.mxu0 0.0
    %664 = vmatmul.mubr.f32.gmra.mrb[0].mxu0 %v489
    %v665 = vpop.f32.mrb[0].mxu0
    %v666 = vadd.f32 0.0, %v665
    %v667 = vpop.f32.mrb[0].mxu0
    %v668 = vadd.f32 0.0, %v667
    %669 = vmatprep.mubr.f32.mxu0 0.0
    %670 = vmatmul.mubr.f32.gmra.mrb[0].mxu0 %v490
    %v671 = vpop.f32.mrb[0].mxu0
    %v672 = vadd.f32 0.0, %v671
    %v673 = vpop.f32.mrb[0].mxu0
    %v674 = vadd.f32 0.0, %v673
    %675 = vmatprep.mubr.f32.mxu0 0.0
    %676 = vmatmul.mubr.f32.gmra.mrb[0].mxu0 %v491
    %v677 = vpop.f32.mrb[0].mxu0
    %v678 = vadd.f32 0.0, %v677
    %v679 = vpop.f32.mrb[0].mxu0
    %v680 = vadd.f32 0.0, %v679
    %681 = vmatprep.mubr.f32.mxu0 0.0
    %682 = vmatmul.mubr.f32.gmra.mrb[0].mxu0 %v492
    %v683 = vpop.f32.mrb[0].mxu0
    %v684 = vadd.f32 0.0, %v683
    %v685 = vpop.f32.mrb[0].mxu0
    %v686 = vadd.f32 0.0, %v685
    %687 = vmatprep.mubr.f32.mxu0 0.0
    %688 = vmatmul.mubr.f32.gmra.mrb[0].mxu0 %v493
    %v689 = vpop.f32.mrb[0].mxu0
    %v690 = vadd.f32 0.0, %v689
    %v691 = vpop.f32.mrb[0].mxu0
    %v692 = vadd.f32 0.0, %v691
    %693 = vmatprep.mubr.f32.mxu0 0.0
    %694 = vmatmul.mubr.f32.gmra.mrb[0].mxu0 %v494
    %v695 = vpop.f32.mrb[0].mxu0
    %v696 = vadd.f32 0.0, %v695
    %v697 = vpop.f32.mrb[0].mxu0
    %v698 = vadd.f32 0.0, %v697
    %699 = vmatprep.mubr.f32.mxu0 0.0
    %700 = vmatmul.mubr.f32.gmra.mrb[0].mxu0 %v495
    %v701 = vpop.f32.mrb[0].mxu0
    %v702 = vadd.f32 0.0, %v701
    %v703 = vpop.f32.mrb[0].mxu0
    %v704 = vadd.f32 0.0, %v703
    %705 = vdwg.mxu0
    %706 = vmatprep.subr.mxu0 %v614
    %707 = vmatpush1.msra.mxu0 %v612
    %708 = vmatprep.subr.mxu0 %v620
    %709 = vmatpush1.msra.mxu0 %v618
    %710 = vmatprep.subr.mxu0 %v626
    %711 = vmatpush1.msra.mxu0 %v624
    %712 = vmatprep.subr.mxu0 %v632
    %713 = vmatpush1.msra.mxu0 %v630
    %714 = vmatprep.subr.mxu0 %v638
    %715 = vmatpush1.msra.mxu0 %v636
    %716 = vmatprep.subr.mxu0 %v644
    %717 = vmatpush1.msra.mxu0 %v642
    %718 = vmatprep.subr.mxu0 %v650
    %719 = vmatpush1.msra.mxu0 %v648
    %720 = vmatprep.subr.mxu0 %v656
    %721 = vmatpush1.msra.mxu0 %v654
    %722 = vmatprep.subr.mxu0 %v662
    %723 = vmatpush1.msra.mxu0 %v660
    %724 = vmatprep.subr.mxu0 %v668
    %725 = vmatpush1.msra.mxu0 %v666
    %726 = vmatprep.subr.mxu0 %v674
    %727 = vmatpush1.msra.mxu0 %v672
    %728 = vmatprep.subr.mxu0 %v680
    %729 = vmatpush1.msra.mxu0 %v678
    %730 = vmatprep.subr.mxu0 %v686
    %731 = vmatpush1.msra.mxu0 %v684
    %732 = vmatprep.subr.mxu0 %v692
    %733 = vmatpush1.msra.mxu0 %v690
    %734 = vmatprep.subr.mxu0 %v698
    %735 = vmatpush1.msra.mxu0 %v696
    %736 = vmatprep.subr.mxu0 %v704
    %737 = vmatpush1.msra.mxu0 %v702
    %738 = vmatprep.subr.mxu0 0.0
    %739 = vmatpush1.msra.mxu0 0.0
    %740 = vmatprep.subr.mxu0 0.0
    %741 = vmatpush1.msra.mxu0 0.0
    %742 = vmatprep.subr.mxu0 0.0
    %743 = vmatpush1.msra.mxu0 0.0
    %744 = vmatprep.subr.mxu0 0.0
    %745 = vmatpush1.msra.mxu0 0.0
    %746 = vmatprep.subr.mxu0 0.0
    %747 = vmatpush1.msra.mxu0 0.0
    %748 = vmatprep.subr.mxu0 0.0
    %749 = vmatpush1.msra.mxu0 0.0
    %750 = vmatprep.subr.mxu0 0.0
    %751 = vmatpush1.msra.mxu0 0.0
    %752 = vmatprep.subr.mxu0 0.0
    %753 = vmatpush1.msra.mxu0 0.0
    %754 = vmatprep.subr.mxu0 0.0
    %755 = vmatpush1.msra.mxu0 0.0
    %756 = vmatprep.subr.mxu0 0.0
    %757 = vmatpush1.msra.mxu0 0.0
    %758 = vmatprep.subr.mxu0 0.0
    %759 = vmatpush1.msra.mxu0 0.0
    %760 = vmatprep.subr.mxu0 0.0
    %761 = vmatpush1.msra.mxu0 0.0
    %762 = vmatprep.subr.mxu0 0.0
    %763 = vmatpush1.msra.mxu0 0.0
    %764 = vmatprep.subr.mxu0 0.0
    %765 = vmatpush1.msra.mxu0 0.0
    %766 = vmatprep.subr.mxu0 0.0
    %767 = vmatpush1.msra.mxu0 0.0
    %768 = vmatprep.subr.mxu0 0.0
    %769 = vmatpush1.msra.mxu0 0.0
    %770 = vmatprep.mubr.f32.mxu0 0.0
    %771 = vmatmul.mubr.f32.gmra.mrb[0].mxu0 %v105
    %v772 = vpop.f32.mrb[0].mxu0
    %v773 = vadd.f32 0.0, %v772
    %v774 = vpop.f32.mrb[0].mxu0
    %v775 = vadd.f32 0.0, %v774
    %776 = vmatprep.mubr.f32.mxu0 0.0
    %777 = vmatmul.mubr.f32.gmra.mrb[0].mxu0 %v106
    %v778 = vpop.f32.mrb[0].mxu0
    %v779 = vadd.f32 0.0, %v778
    %v780 = vpop.f32.mrb[0].mxu0
    %v781 = vadd.f32 0.0, %v780
    %782 = vmatprep.mubr.f32.mxu0 0.0
    %783 = vmatmul.mubr.f32.gmra.mrb[0].mxu0 %v107
    %v784 = vpop.f32.mrb[0].mxu0
    %v785 = vadd.f32 0.0, %v784
    %v786 = vpop.f32.mrb[0].mxu0
    %v787 = vadd.f32 0.0, %v786
    %788 = vmatprep.mubr.f32.mxu0 0.0
    %789 = vmatmul.mubr.f32.gmra.mrb[0].mxu0 %v108
    %v790 = vpop.f32.mrb[0].mxu0
    %v791 = vadd.f32 0.0, %v790
    %v792 = vpop.f32.mrb[0].mxu0
    %v793 = vadd.f32 0.0, %v792
    %794 = vmatprep.mubr.f32.mxu0 0.0
    %795 = vmatmul.mubr.f32.gmra.mrb[0].mxu0 %v109
    %v796 = vpop.f32.mrb[0].mxu0
    %v797 = vadd.f32 0.0, %v796
    %v798 = vpop.f32.mrb[0].mxu0
    %v799 = vadd.f32 0.0, %v798
    %800 = vmatprep.mubr.f32.mxu0 0.0
    %801 = vmatmul.mubr.f32.gmra.mrb[0].mxu0 %v110
    %v802 = vpop.f32.mrb[0].mxu0
    %v803 = vadd.f32 0.0, %v802
    %v804 = vpop.f32.mrb[0].mxu0
    %v805 = vadd.f32 0.0, %v804
    %806 = vmatprep.mubr.f32.mxu0 0.0
    %807 = vmatmul.mubr.f32.gmra.mrb[0].mxu0 %v111
    %v808 = vpop.f32.mrb[0].mxu0
    %v809 = vadd.f32 0.0, %v808
    %v810 = vpop.f32.mrb[0].mxu0
    %v811 = vadd.f32 0.0, %v810
    %812 = vmatprep.mubr.f32.mxu0 0.0
    %813 = vmatmul.mubr.f32.gmra.mrb[0].mxu0 %v112
    %v814 = vpop.f32.mrb[0].mxu0
    %v815 = vadd.f32 0.0, %v814
    %v816 = vpop.f32.mrb[0].mxu0
    %v817 = vadd.f32 0.0, %v816
    %818 = vmatprep.mubr.f32.mxu0 0.0
    %819 = vmatmul.mubr.f32.gmra.mrb[0].mxu0 %v113
    %v820 = vpop.f32.mrb[0].mxu0
    %v821 = vadd.f32 0.0, %v820
    %v822 = vpop.f32.mrb[0].mxu0
    %v823 = vadd.f32 0.0, %v822
    %824 = vmatprep.mubr.f32.mxu0 0.0
    %825 = vmatmul.mubr.f32.gmra.mrb[0].mxu0 %v114
    %v826 = vpop.f32.mrb[0].mxu0
    %v827 = vadd.f32 0.0, %v826
    %v828 = vpop.f32.mrb[0].mxu0
    %v829 = vadd.f32 0.0, %v828
    %830 = vmatprep.mubr.f32.mxu0 0.0
    %831 = vmatmul.mubr.f32.gmra.mrb[0].mxu0 %v115
    %v832 = vpop.f32.mrb[0].mxu0
    %v833 = vadd.f32 0.0, %v832
    %v834 = vpop.f32.mrb[0].mxu0
    %v835 = vadd.f32 0.0, %v834
    %836 = vmatprep.mubr.f32.mxu0 0.0
    %837 = vmatmul.mubr.f32.gmra.mrb[0].mxu0 %v116
    %v838 = vpop.f32.mrb[0].mxu0
    %v839 = vadd.f32 0.0, %v838
    %v840 = vpop.f32.mrb[0].mxu0
    %v841 = vadd.f32 0.0, %v840
    %842 = vmatprep.mubr.f32.mxu0 0.0
    %843 = vmatmul.mubr.f32.gmra.mrb[0].mxu0 %v117
    %v844 = vpop.f32.mrb[0].mxu0
    %v845 = vadd.f32 0.0, %v844
    %v846 = vpop.f32.mrb[0].mxu0
    %v847 = vadd.f32 0.0, %v846
    %848 = vmatprep.mubr.f32.mxu0 0.0
    %849 = vmatmul.mubr.f32.gmra.mrb[0].mxu0 %v118
    %v850 = vpop.f32.mrb[0].mxu0
    %v851 = vadd.f32 0.0, %v850
    %v852 = vpop.f32.mrb[0].mxu0
    %v853 = vadd.f32 0.0, %v852
    %854 = vmatprep.mubr.f32.mxu0 0.0
    %855 = vmatmul.mubr.f32.gmra.mrb[0].mxu0 %v119
    %v856 = vpop.f32.mrb[0].mxu0
    %v857 = vadd.f32 0.0, %v856
    %v858 = vpop.f32.mrb[0].mxu0
    %v859 = vadd.f32 0.0, %v858
    %860 = vmatprep.mubr.f32.mxu0 0.0
    %861 = vmatmul.mubr.f32.gmra.mrb[0].mxu0 %v120
    %v862 = vpop.f32.mrb[0].mxu0
    %v863 = vadd.f32 0.0, %v862
    %v864 = vpop.f32.mrb[0].mxu0
    %v865 = vadd.f32 0.0, %v864
    %866 = vdwg.mxu0
    %v867 = vlaneseq
    %v868 = vshrl.u32 %v867, 7
    %v869 = vsub.s32 0, %v868
    %v870 = vrot.slane %v544, %v869
    %v871 = vadd.f32 %v775, %v870
    %v872 = vadd.f32 %v781, %v870
    %v873 = vadd.f32 %v787, %v870
    %v874 = vadd.f32 %v793, %v870
    %v875 = vadd.f32 %v799, %v870
    %v876 = vadd.f32 %v805, %v870
    %v877 = vadd.f32 %v811, %v870
    %v878 = vadd.f32 %v817, %v870
    %v879 = vadd.f32 %v823, %v870
    %v880 = vadd.f32 %v829, %v870
    %v881 = vadd.f32 %v835, %v870
    %v882 = vadd.f32 %v841, %v870
    %v883 = vadd.f32 %v847, %v870
    %v884 = vadd.f32 %v853, %v870
    %v885 = vadd.f32 %v859, %v870
    %v886 = vadd.f32 %v865, %v870
    %v887 = vadd.f32 %v773, %v779
    %v888 = vadd.f32 %v887, %v785
    %v889 = vadd.f32 %v888, %v791
    %v890 = vadd.f32 %v889, %v797
    %v891 = vadd.f32 %v890, %v803
    %v892 = vadd.f32 %v891, %v809
    %v893 = vadd.f32 %v892, %v815
    %v894 = vadd.f32 %v893, %v821
    %v895 = vadd.f32 %v894, %v827
    %v896 = vadd.f32 %v895, %v833
    %v897 = vadd.f32 %v896, %v839
    %v898 = vadd.f32 %v897, %v845
    %v899 = vadd.f32 %v898, %v851
    %v900 = vadd.f32 %v899, %v857
    %v901 = vadd.f32 %v900, %v863
    %v902 = vrot.slane %v901, 4
    %v903 = vadd.f32 %v901, %v902
    %v904 = vrot.slane %v903, 2
    %v905 = vadd.f32 %v903, %v904
    %v906 = vrot.slane %v905, 1
    %v907 = vadd.f32 %v905, %v906
    %v908 = vmul.f32 %v907, 0.083333336
    %v909 = vmul.f32 %v773, %v773
    %v910 = vmul.f32 %v779, %v779
    %v911 = vmul.f32 %v785, %v785
    %v912 = vmul.f32 %v791, %v791
    %v913 = vmul.f32 %v797, %v797
    %v914 = vmul.f32 %v803, %v803
    %v915 = vmul.f32 %v809, %v809
    %v916 = vmul.f32 %v815, %v815
    %v917 = vmul.f32 %v821, %v821
    %v918 = vmul.f32 %v827, %v827
    %v919 = vmul.f32 %v833, %v833
    %v920 = vmul.f32 %v839, %v839
    %v921 = vmul.f32 %v845, %v845
    %v922 = vmul.f32 %v851, %v851
    %v923 = vmul.f32 %v857, %v857
    %v924 = vmul.f32 %v863, %v863
    %v925 = vadd.f32 %v909, %v910
    %v926 = vadd.f32 %v925, %v911
    %v927 = vadd.f32 %v926, %v912
    %v928 = vadd.f32 %v927, %v913
    %v929 = vadd.f32 %v928, %v914
    %v930 = vadd.f32 %v929, %v915
    %v931 = vadd.f32 %v930, %v916
    %v932 = vadd.f32 %v931, %v917
    %v933 = vadd.f32 %v932, %v918
    %v934 = vadd.f32 %v933, %v919
    %v935 = vadd.f32 %v934, %v920
    %v936 = vadd.f32 %v935, %v921
    %v937 = vadd.f32 %v936, %v922
    %v938 = vadd.f32 %v937, %v923
    %v939 = vadd.f32 %v938, %v924
    %v940 = vrot.slane %v939, 4
    %v941 = vadd.f32 %v939, %v940
    %v942 = vrot.slane %v941, 2
    %v943 = vadd.f32 %v941, %v942
    %v944 = vrot.slane %v943, 1
    %v945 = vadd.f32 %v943, %v944
    %v946 = vmul.f32 %v945, 0.083333336
    %v947 = vmul.f32 %v908, %v908
    %v948 = vsub.f32 %v946, %v947
    %v949 = vmax.f32 %v948, 0.0
    %v950 = vsub.f32 %v773, %v908
    %v951 = vsub.f32 %v779, %v908
    %v952 = vsub.f32 %v785, %v908
    %v953 = vsub.f32 %v791, %v908
    %v954 = vsub.f32 %v797, %v908
    %v955 = vsub.f32 %v803, %v908
    %v956 = vsub.f32 %v809, %v908
    %v957 = vsub.f32 %v815, %v908
    %v958 = vsub.f32 %v821, %v908
    %v959 = vsub.f32 %v827, %v908
    %v960 = vsub.f32 %v833, %v908
    %v961 = vsub.f32 %v839, %v908
    %v962 = vsub.f32 %v845, %v908
    %v963 = vsub.f32 %v851, %v908
    %v964 = vsub.f32 %v857, %v908
    %v965 = vsub.f32 %v863, %v908
    %v966 = vadd.f32 %v949, 1e-05
    %v967 = vrsqrt.pop %v966
    %v968 = vmul.f32 %v967, %v544
    %v969 = vlaneseq
    %v970 = vshrl.u32 %v969, 7
    %v971 = vsub.s32 1, %v970
    %v972 = vrot.slane %v968, %v971
    %v973 = vmul.f32 %v950, %v972
    %v974 = vmul.f32 %v951, %v972
    %v975 = vmul.f32 %v952, %v972
    %v976 = vmul.f32 %v953, %v972
    %v977 = vmul.f32 %v954, %v972
    %v978 = vmul.f32 %v955, %v972
    %v979 = vmul.f32 %v956, %v972
    %v980 = vmul.f32 %v957, %v972
    %v981 = vmul.f32 %v958, %v972
    %v982 = vmul.f32 %v959, %v972
    %v983 = vmul.f32 %v960, %v972
    %v984 = vmul.f32 %v961, %v972
    %v985 = vmul.f32 %v962, %v972
    %v986 = vmul.f32 %v963, %v972
    %v987 = vmul.f32 %v964, %v972
    %v988 = vmul.f32 %v965, %v972
    %v989 = vlaneseq
    %v990 = vshrl.u32 %v989, 7
    %v991 = vsub.s32 2, %v990
    %v992 = vrot.slane %v544, %v991
    %v993 = vadd.f32 %v973, %v992
    %v994 = vadd.f32 %v974, %v992
    %v995 = vadd.f32 %v975, %v992
    %v996 = vadd.f32 %v976, %v992
    %v997 = vadd.f32 %v977, %v992
    %v998 = vadd.f32 %v978, %v992
    %v999 = vadd.f32 %v979, %v992
    %v1000 = vadd.f32 %v980, %v992
    %v1001 = vadd.f32 %v981, %v992
    %v1002 = vadd.f32 %v982, %v992
    %v1003 = vadd.f32 %v983, %v992
    %v1004 = vadd.f32 %v984, %v992
    %v1005 = vadd.f32 %v985, %v992
    %v1006 = vadd.f32 %v986, %v992
    %v1007 = vadd.f32 %v987, %v992
    %v1008 = vadd.f32 %v988, %v992
    %v1009 = vmax.f32 %v993, 0.0
    %v1010 = vmax.f32 %v994, 0.0
    %v1011 = vmax.f32 %v995, 0.0
    %v1012 = vmax.f32 %v996, 0.0
    %v1013 = vmax.f32 %v997, 0.0
    %v1014 = vmax.f32 %v998, 0.0
    %v1015 = vmax.f32 %v999, 0.0
    %v1016 = vmax.f32 %v1000, 0.0
    %v1017 = vmax.f32 %v1001, 0.0
    %v1018 = vmax.f32 %v1002, 0.0
    %v1019 = vmax.f32 %v1003, 0.0
    %v1020 = vmax.f32 %v1004, 0.0
    %v1021 = vmax.f32 %v1005, 0.0
    %v1022 = vmax.f32 %v1006, 0.0
    %v1023 = vmax.f32 %v1007, 0.0
    %v1024 = vmax.f32 %v1008, 0.0
    %1025 = vmatprep.subr.mxu0 0.0
    %1026 = vmatpush1.msra.mxu0 %v498
    %1027 = vmatprep.subr.mxu0 0.0
    %1028 = vmatpush1.msra.mxu0 %v501
    %1029 = vmatprep.subr.mxu0 0.0
    %1030 = vmatpush1.msra.mxu0 %v504
    %1031 = vmatprep.subr.mxu0 0.0
    %1032 = vmatpush1.msra.mxu0 %v507
    %1033 = vmatprep.subr.mxu0 0.0
    %1034 = vmatpush1.msra.mxu0 %v510
    %1035 = vmatprep.subr.mxu0 0.0
    %1036 = vmatpush1.msra.mxu0 %v513
    %1037 = vmatprep.subr.mxu0 0.0
    %1038 = vmatpush1.msra.mxu0 %v516
    %1039 = vmatprep.subr.mxu0 0.0
    %1040 = vmatpush1.msra.mxu0 %v519
    %1041 = vmatprep.subr.mxu0 0.0
    %1042 = vmatpush1.msra.mxu0 %v522
    %1043 = vmatprep.subr.mxu0 0.0
    %1044 = vmatpush1.msra.mxu0 %v525
    %1045 = vmatprep.subr.mxu0 0.0
    %1046 = vmatpush1.msra.mxu0 %v528
    %1047 = vmatprep.subr.mxu0 0.0
    %1048 = vmatpush1.msra.mxu0 %v531
    %1049 = vmatprep.subr.mxu0 0.0
    %1050 = vmatpush1.msra.mxu0 %v534
    %1051 = vmatprep.subr.mxu0 0.0
    %1052 = vmatpush1.msra.mxu0 %v537
    %1053 = vmatprep.subr.mxu0 0.0
    %1054 = vmatpush1.msra.mxu0 %v540
    %1055 = vmatprep.subr.mxu0 0.0
    %1056 = vmatpush1.msra.mxu0 %v543
    %1057 = vmatprep.subr.mxu0 0.0
    %1058 = vmatpush1.msra.mxu0 0.0
    %1059 = vmatprep.subr.mxu0 0.0
    %1060 = vmatpush1.msra.mxu0 0.0
    %1061 = vmatprep.subr.mxu0 0.0
    %1062 = vmatpush1.msra.mxu0 0.0
    %1063 = vmatprep.subr.mxu0 0.0
    %1064 = vmatpush1.msra.mxu0 0.0
    %1065 = vmatprep.subr.mxu0 0.0
    %1066 = vmatpush1.msra.mxu0 0.0
    %1067 = vmatprep.subr.mxu0 0.0
    %1068 = vmatpush1.msra.mxu0 0.0
    %1069 = vmatprep.subr.mxu0 0.0
    %1070 = vmatpush1.msra.mxu0 0.0
    %1071 = vmatprep.subr.mxu0 0.0
    %1072 = vmatpush1.msra.mxu0 0.0
    %1073 = vmatprep.subr.mxu0 0.0
    %1074 = vmatpush1.msra.mxu0 0.0
    %1075 = vmatprep.subr.mxu0 0.0
    %1076 = vmatpush1.msra.mxu0 0.0
    %1077 = vmatprep.subr.mxu0 0.0
    %1078 = vmatpush1.msra.mxu0 0.0
    %1079 = vmatprep.subr.mxu0 0.0
    %1080 = vmatpush1.msra.mxu0 0.0
    %1081 = vmatprep.subr.mxu0 0.0
    %1082 = vmatpush1.msra.mxu0 0.0
    %1083 = vmatprep.subr.mxu0 0.0
    %1084 = vmatpush1.msra.mxu0 0.0
    %1085 = vmatprep.subr.mxu0 0.0
    %1086 = vmatpush1.msra.mxu0 0.0
    %1087 = vmatprep.subr.mxu0 0.0
    %1088 = vmatpush1.msra.mxu0 0.0
    %1089 = vmatprep.mubr.f32.mxu0 0.0
    %1090 = vmatmul.mubr.f32.gmra.mrb[0].mxu0 %v1009
    %v1091 = vpop.f32.mrb[0].mxu0
    %v1092 = vadd.f32 0.0, %v1091
    %v1093 = vpop.f32.mrb[0].mxu0
    %1094 = vmatprep.mubr.f32.mxu0 0.0
    %1095 = vmatmul.mubr.f32.gmra.mrb[0].mxu0 %v1010
    %v1096 = vpop.f32.mrb[0].mxu0
    %v1097 = vadd.f32 0.0, %v1096
    %v1098 = vpop.f32.mrb[0].mxu0
    %1099 = vmatprep.mubr.f32.mxu0 0.0
    %1100 = vmatmul.mubr.f32.gmra.mrb[0].mxu0 %v1011
    %v1101 = vpop.f32.mrb[0].mxu0
    %v1102 = vadd.f32 0.0, %v1101
    %v1103 = vpop.f32.mrb[0].mxu0
    %1104 = vmatprep.mubr.f32.mxu0 0.0
    %1105 = vmatmul.mubr.f32.gmra.mrb[0].mxu0 %v1012
    %v1106 = vpop.f32.mrb[0].mxu0
    %v1107 = vadd.f32 0.0, %v1106
    %v1108 = vpop.f32.mrb[0].mxu0
    %1109 = vmatprep.mubr.f32.mxu0 0.0
    %1110 = vmatmul.mubr.f32.gmra.mrb[0].mxu0 %v1013
    %v1111 = vpop.f32.mrb[0].mxu0
    %v1112 = vadd.f32 0.0, %v1111
    %v1113 = vpop.f32.mrb[0].mxu0
    %1114 = vmatprep.mubr.f32.mxu0 0.0
    %1115 = vmatmul.mubr.f32.gmra.mrb[0].mxu0 %v1014
    %v1116 = vpop.f32.mrb[0].mxu0
    %v1117 = vadd.f32 0.0, %v1116
    %v1118 = vpop.f32.mrb[0].mxu0
    %1119 = vmatprep.mubr.f32.mxu0 0.0
    %1120 = vmatmul.mubr.f32.gmra.mrb[0].mxu0 %v1015
    %v1121 = vpop.f32.mrb[0].mxu0
    %v1122 = vadd.f32 0.0, %v1121
    %v1123 = vpop.f32.mrb[0].mxu0
    %1124 = vmatprep.mubr.f32.mxu0 0.0
    %1125 = vmatmul.mubr.f32.gmra.mrb[0].mxu0 %v1016
    %v1126 = vpop.f32.mrb[0].mxu0
    %v1127 = vadd.f32 0.0, %v1126
    %v1128 = vpop.f32.mrb[0].mxu0
    %1129 = vmatprep.mubr.f32.mxu0 0.0
    %1130 = vmatmul.mubr.f32.gmra.mrb[0].mxu0 %v1017
    %v1131 = vpop.f32.mrb[0].mxu0
    %v1132 = vadd.f32 0.0, %v1131
    %v1133 = vpop.f32.mrb[0].mxu0
    %1134 = vmatprep.mubr.f32.mxu0 0.0
    %1135 = vmatmul.mubr.f32.gmra.mrb[0].mxu0 %v1018
    %v1136 = vpop.f32.mrb[0].mxu0
    %v1137 = vadd.f32 0.0, %v1136
    %v1138 = vpop.f32.mrb[0].mxu0
    %1139 = vmatprep.mubr.f32.mxu0 0.0
    %1140 = vmatmul.mubr.f32.gmra.mrb[0].mxu0 %v1019
    %v1141 = vpop.f32.mrb[0].mxu0
    %v1142 = vadd.f32 0.0, %v1141
    %v1143 = vpop.f32.mrb[0].mxu0
    %1144 = vmatprep.mubr.f32.mxu0 0.0
    %1145 = vmatmul.mubr.f32.gmra.mrb[0].mxu0 %v1020
    %v1146 = vpop.f32.mrb[0].mxu0
    %v1147 = vadd.f32 0.0, %v1146
    %v1148 = vpop.f32.mrb[0].mxu0
    %1149 = vmatprep.mubr.f32.mxu0 0.0
    %1150 = vmatmul.mubr.f32.gmra.mrb[0].mxu0 %v1021
    %v1151 = vpop.f32.mrb[0].mxu0
    %v1152 = vadd.f32 0.0, %v1151
    %v1153 = vpop.f32.mrb[0].mxu0
    %1154 = vmatprep.mubr.f32.mxu0 0.0
    %1155 = vmatmul.mubr.f32.gmra.mrb[0].mxu0 %v1022
    %v1156 = vpop.f32.mrb[0].mxu0
    %v1157 = vadd.f32 0.0, %v1156
    %v1158 = vpop.f32.mrb[0].mxu0
    %1159 = vmatprep.mubr.f32.mxu0 0.0
    %1160 = vmatmul.mubr.f32.gmra.mrb[0].mxu0 %v1023
    %v1161 = vpop.f32.mrb[0].mxu0
    %v1162 = vadd.f32 0.0, %v1161
    %v1163 = vpop.f32.mrb[0].mxu0
    %1164 = vmatprep.mubr.f32.mxu0 0.0
    %1165 = vmatmul.mubr.f32.gmra.mrb[0].mxu0 %v1024
    %v1166 = vpop.f32.mrb[0].mxu0
    %v1167 = vadd.f32 0.0, %v1166
    %v1168 = vpop.f32.mrb[0].mxu0
    %1169 = vdwg.mxu0
    %1170 = vmatprep.subr.mxu0 0.0
    %1171 = vmatpush1.msra.mxu0 %v1092
    %1172 = vmatprep.subr.mxu0 0.0
    %1173 = vmatpush1.msra.mxu0 %v1097
    %1174 = vmatprep.subr.mxu0 0.0
    %1175 = vmatpush1.msra.mxu0 %v1102
    %1176 = vmatprep.subr.mxu0 0.0
    %1177 = vmatpush1.msra.mxu0 %v1107
    %1178 = vmatprep.subr.mxu0 0.0
    %1179 = vmatpush1.msra.mxu0 %v1112
    %1180 = vmatprep.subr.mxu0 0.0
    %1181 = vmatpush1.msra.mxu0 %v1117
    %1182 = vmatprep.subr.mxu0 0.0
    %1183 = vmatpush1.msra.mxu0 %v1122
    %1184 = vmatprep.subr.mxu0 0.0
    %1185 = vmatpush1.msra.mxu0 %v1127
    %1186 = vmatprep.subr.mxu0 0.0
    %1187 = vmatpush1.msra.mxu0 %v1132
    %1188 = vmatprep.subr.mxu0 0.0
    %1189 = vmatpush1.msra.mxu0 %v1137
    %1190 = vmatprep.subr.mxu0 0.0
    %1191 = vmatpush1.msra.mxu0 %v1142
    %1192 = vmatprep.subr.mxu0 0.0
    %1193 = vmatpush1.msra.mxu0 %v1147
    %1194 = vmatprep.subr.mxu0 0.0
    %1195 = vmatpush1.msra.mxu0 %v1152
    %1196 = vmatprep.subr.mxu0 0.0
    %1197 = vmatpush1.msra.mxu0 %v1157
    %1198 = vmatprep.subr.mxu0 0.0
    %1199 = vmatpush1.msra.mxu0 %v1162
    %1200 = vmatprep.subr.mxu0 0.0
    %1201 = vmatpush1.msra.mxu0 %v1167
    %1202 = vmatprep.subr.mxu0 0.0
    %1203 = vmatpush1.msra.mxu0 0.0
    %1204 = vmatprep.subr.mxu0 0.0
    %1205 = vmatpush1.msra.mxu0 0.0
    %1206 = vmatprep.subr.mxu0 0.0
    %1207 = vmatpush1.msra.mxu0 0.0
    %1208 = vmatprep.subr.mxu0 0.0
    %1209 = vmatpush1.msra.mxu0 0.0
    %1210 = vmatprep.subr.mxu0 0.0
    %1211 = vmatpush1.msra.mxu0 0.0
    %1212 = vmatprep.subr.mxu0 0.0
    %1213 = vmatpush1.msra.mxu0 0.0
    %1214 = vmatprep.subr.mxu0 0.0
    %1215 = vmatpush1.msra.mxu0 0.0
    %1216 = vmatprep.subr.mxu0 0.0
    %1217 = vmatpush1.msra.mxu0 0.0
    %1218 = vmatprep.subr.mxu0 0.0
    %1219 = vmatpush1.msra.mxu0 0.0
    %1220 = vmatprep.subr.mxu0 0.0
    %1221 = vmatpush1.msra.mxu0 0.0
    %1222 = vmatprep.subr.mxu0 0.0
    %1223 = vmatpush1.msra.mxu0 0.0
    %1224 = vmatprep.subr.mxu0 0.0
    %1225 = vmatpush1.msra.mxu0 0.0
    %1226 = vmatprep.subr.mxu0 0.0
    %1227 = vmatpush1.msra.mxu0 0.0
    %1228 = vmatprep.subr.mxu0 0.0
    %1229 = vmatpush1.msra.mxu0 0.0
    %1230 = vmatprep.subr.mxu0 0.0
    %1231 = vmatpush1.msra.mxu0 0.0
    %1232 = vmatprep.subr.mxu0 0.0
    %1233 = vmatpush1.msra.mxu0 0.0
    %1234 = vmatprep.mubr.f32.mxu0 0.0
    %1235 = vmatmul.mubr.f32.gmra.mrb[0].mxu0 %v105
    %v1236 = vpop.f32.mrb[0].mxu0
    %v1237 = vadd.f32 0.0, %v1236
    %v1238 = vpop.f32.mrb[0].mxu0
    %1239 = vmatprep.mubr.f32.mxu0 0.0
    %1240 = vmatmul.mubr.f32.gmra.mrb[0].mxu0 %v106
    %v1241 = vpop.f32.mrb[0].mxu0
    %v1242 = vadd.f32 0.0, %v1241
    %v1243 = vpop.f32.mrb[0].mxu0
    %1244 = vmatprep.mubr.f32.mxu0 0.0
    %1245 = vmatmul.mubr.f32.gmra.mrb[0].mxu0 %v107
    %v1246 = vpop.f32.mrb[0].mxu0
    %v1247 = vadd.f32 0.0, %v1246
    %v1248 = vpop.f32.mrb[0].mxu0
    %1249 = vmatprep.mubr.f32.mxu0 0.0
    %1250 = vmatmul.mubr.f32.gmra.mrb[0].mxu0 %v108
    %v1251 = vpop.f32.mrb[0].mxu0
    %v1252 = vadd.f32 0.0, %v1251
    %v1253 = vpop.f32.mrb[0].mxu0
    %1254 = vmatprep.mubr.f32.mxu0 0.0
    %1255 = vmatmul.mubr.f32.gmra.mrb[0].mxu0 %v109
    %v1256 = vpop.f32.mrb[0].mxu0
    %v1257 = vadd.f32 0.0, %v1256
    %v1258 = vpop.f32.mrb[0].mxu0
    %1259 = vmatprep.mubr.f32.mxu0 0.0
    %1260 = vmatmul.mubr.f32.gmra.mrb[0].mxu0 %v110
    %v1261 = vpop.f32.mrb[0].mxu0
    %v1262 = vadd.f32 0.0, %v1261
    %v1263 = vpop.f32.mrb[0].mxu0
    %1264 = vmatprep.mubr.f32.mxu0 0.0
    %1265 = vmatmul.mubr.f32.gmra.mrb[0].mxu0 %v111
    %v1266 = vpop.f32.mrb[0].mxu0
    %v1267 = vadd.f32 0.0, %v1266
    %v1268 = vpop.f32.mrb[0].mxu0
    %1269 = vmatprep.mubr.f32.mxu0 0.0
    %1270 = vmatmul.mubr.f32.gmra.mrb[0].mxu0 %v112
    %v1271 = vpop.f32.mrb[0].mxu0
    %v1272 = vadd.f32 0.0, %v1271
    %v1273 = vpop.f32.mrb[0].mxu0
    %1274 = vmatprep.mubr.f32.mxu0 0.0
    %1275 = vmatmul.mubr.f32.gmra.mrb[0].mxu0 %v113
    %v1276 = vpop.f32.mrb[0].mxu0
    %v1277 = vadd.f32 0.0, %v1276
    %v1278 = vpop.f32.mrb[0].mxu0
    %1279 = vmatprep.mubr.f32.mxu0 0.0
    %1280 = vmatmul.mubr.f32.gmra.mrb[0].mxu0 %v114
    %v1281 = vpop.f32.mrb[0].mxu0
    %v1282 = vadd.f32 0.0, %v1281
    %v1283 = vpop.f32.mrb[0].mxu0
    %1284 = vmatprep.mubr.f32.mxu0 0.0
    %1285 = vmatmul.mubr.f32.gmra.mrb[0].mxu0 %v115
    %v1286 = vpop.f32.mrb[0].mxu0
    %v1287 = vadd.f32 0.0, %v1286
    %v1288 = vpop.f32.mrb[0].mxu0
    %1289 = vmatprep.mubr.f32.mxu0 0.0
    %1290 = vmatmul.mubr.f32.gmra.mrb[0].mxu0 %v116
    %v1291 = vpop.f32.mrb[0].mxu0
    %v1292 = vadd.f32 0.0, %v1291
    %v1293 = vpop.f32.mrb[0].mxu0
    %1294 = vmatprep.mubr.f32.mxu0 0.0
    %1295 = vmatmul.mubr.f32.gmra.mrb[0].mxu0 %v117
    %v1296 = vpop.f32.mrb[0].mxu0
    %v1297 = vadd.f32 0.0, %v1296
    %v1298 = vpop.f32.mrb[0].mxu0
    %1299 = vmatprep.mubr.f32.mxu0 0.0
    %1300 = vmatmul.mubr.f32.gmra.mrb[0].mxu0 %v118
    %v1301 = vpop.f32.mrb[0].mxu0
    %v1302 = vadd.f32 0.0, %v1301
    %v1303 = vpop.f32.mrb[0].mxu0
    %1304 = vmatprep.mubr.f32.mxu0 0.0
    %1305 = vmatmul.mubr.f32.gmra.mrb[0].mxu0 %v119
    %v1306 = vpop.f32.mrb[0].mxu0
    %v1307 = vadd.f32 0.0, %v1306
    %v1308 = vpop.f32.mrb[0].mxu0
    %1309 = vmatprep.mubr.f32.mxu0 0.0
    %1310 = vmatmul.mubr.f32.gmra.mrb[0].mxu0 %v120
    %v1311 = vpop.f32.mrb[0].mxu0
    %v1312 = vadd.f32 0.0, %v1311
    %v1313 = vpop.f32.mrb[0].mxu0
    %1314 = vdwg.mxu0
    %v1315 = vadd.f32 %v1237, %v1242
    %v1316 = vadd.f32 %v1315, %v1247
    %v1317 = vadd.f32 %v1316, %v1252
    %v1318 = vadd.f32 %v1317, %v1257
    %v1319 = vadd.f32 %v1318, %v1262
    %v1320 = vadd.f32 %v1319, %v1267
    %v1321 = vadd.f32 %v1320, %v1272
    %v1322 = vadd.f32 %v1321, %v1277
    %v1323 = vadd.f32 %v1322, %v1282
    %v1324 = vadd.f32 %v1323, %v1287
    %v1325 = vadd.f32 %v1324, %v1292
    %v1326 = vadd.f32 %v1325, %v1297
    %v1327 = vadd.f32 %v1326, %v1302
    %v1328 = vadd.f32 %v1327, %v1307
    %v1329 = vadd.f32 %v1328, %v1312
    %v1330 = vrot.slane %v1329, 4
    %v1331 = vadd.f32 %v1329, %v1330
    %v1332 = vrot.slane %v1331, 2
    %v1333 = vadd.f32 %v1331, %v1332
    %v1334 = vrot.slane %v1333, 1
    %v1335 = vadd.f32 %v1333, %v1334
    %v1336 = vmul.f32 %v1335, 0.083333336
    %v1337 = vmul.f32 %v1237, %v1237
    %v1338 = vmul.f32 %v1242, %v1242
    %v1339 = vmul.f32 %v1247, %v1247
    %v1340 = vmul.f32 %v1252, %v1252
    %v1341 = vmul.f32 %v1257, %v1257
    %v1342 = vmul.f32 %v1262, %v1262
    %v1343 = vmul.f32 %v1267, %v1267
    %v1344 = vmul.f32 %v1272, %v1272
    %v1345 = vmul.f32 %v1277, %v1277
    %v1346 = vmul.f32 %v1282, %v1282
    %v1347 = vmul.f32 %v1287, %v1287
    %v1348 = vmul.f32 %v1292, %v1292
    %v1349 = vmul.f32 %v1297, %v1297
    %v1350 = vmul.f32 %v1302, %v1302
    %v1351 = vmul.f32 %v1307, %v1307
    %v1352 = vmul.f32 %v1312, %v1312
    %v1353 = vadd.f32 %v1337, %v1338
    %v1354 = vadd.f32 %v1353, %v1339
    %v1355 = vadd.f32 %v1354, %v1340
    %v1356 = vadd.f32 %v1355, %v1341
    %v1357 = vadd.f32 %v1356, %v1342
    %v1358 = vadd.f32 %v1357, %v1343
    %v1359 = vadd.f32 %v1358, %v1344
    %v1360 = vadd.f32 %v1359, %v1345
    %v1361 = vadd.f32 %v1360, %v1346
    %v1362 = vadd.f32 %v1361, %v1347
    %v1363 = vadd.f32 %v1362, %v1348
    %v1364 = vadd.f32 %v1363, %v1349
    %v1365 = vadd.f32 %v1364, %v1350
    %v1366 = vadd.f32 %v1365, %v1351
    %v1367 = vadd.f32 %v1366, %v1352
    %v1368 = vrot.slane %v1367, 4
    %v1369 = vadd.f32 %v1367, %v1368
    %v1370 = vrot.slane %v1369, 2
    %v1371 = vadd.f32 %v1369, %v1370
    %v1372 = vrot.slane %v1371, 1
    %v1373 = vadd.f32 %v1371, %v1372
    %v1374 = vmul.f32 %v1373, 0.083333336
    %v1375 = vmul.f32 %v1336, %v1336
    %v1376 = vsub.f32 %v1374, %v1375
    %v1377 = vmax.f32 %v1376, 0.0
    %v1378 = vsub.f32 %v1237, %v1336
    %v1379 = vsub.f32 %v1242, %v1336
    %v1380 = vsub.f32 %v1247, %v1336
    %v1381 = vsub.f32 %v1252, %v1336
    %v1382 = vsub.f32 %v1257, %v1336
    %v1383 = vsub.f32 %v1262, %v1336
    %v1384 = vsub.f32 %v1267, %v1336
    %v1385 = vsub.f32 %v1272, %v1336
    %v1386 = vsub.f32 %v1277, %v1336
    %v1387 = vsub.f32 %v1282, %v1336
    %v1388 = vsub.f32 %v1287, %v1336
    %v1389 = vsub.f32 %v1292, %v1336
    %v1390 = vsub.f32 %v1297, %v1336
    %v1391 = vsub.f32 %v1302, %v1336
    %v1392 = vsub.f32 %v1307, %v1336
    %v1393 = vsub.f32 %v1312, %v1336
    %v1394 = vadd.f32 %v1377, 1e-05
    %v1395 = vrsqrt.pop %v1394
    %v1396 = vmul.f32 %v1395, %v544
    %v1397 = vlaneseq
    %v1398 = vshrl.u32 %v1397, 7
    %v1399 = vsub.s32 3, %v1398
    %v1400 = vrot.slane %v1396, %v1399
    %v1401 = vmul.f32 %v1378, %v1400
    %v1402 = vmul.f32 %v1379, %v1400
    %v1403 = vmul.f32 %v1380, %v1400
    %v1404 = vmul.f32 %v1381, %v1400
    %v1405 = vmul.f32 %v1382, %v1400
    %v1406 = vmul.f32 %v1383, %v1400
    %v1407 = vmul.f32 %v1384, %v1400
    %v1408 = vmul.f32 %v1385, %v1400
    %v1409 = vmul.f32 %v1386, %v1400
    %v1410 = vmul.f32 %v1387, %v1400
    %v1411 = vmul.f32 %v1388, %v1400
    %v1412 = vmul.f32 %v1389, %v1400
    %v1413 = vmul.f32 %v1390, %v1400
    %v1414 = vmul.f32 %v1391, %v1400
    %v1415 = vmul.f32 %v1392, %v1400
    %v1416 = vmul.f32 %v1393, %v1400
    %v1417 = vlaneseq
    %v1418 = vshrl.u32 %v1417, 7
    %v1419 = vsub.s32 4, %v1418
    %v1420 = vrot.slane %v544, %v1419
    %v1421 = vadd.f32 %v1401, %v1420
    %v1422 = vadd.f32 %v1402, %v1420
    %v1423 = vadd.f32 %v1403, %v1420
    %v1424 = vadd.f32 %v1404, %v1420
    %v1425 = vadd.f32 %v1405, %v1420
    %v1426 = vadd.f32 %v1406, %v1420
    %v1427 = vadd.f32 %v1407, %v1420
    %v1428 = vadd.f32 %v1408, %v1420
    %v1429 = vadd.f32 %v1409, %v1420
    %v1430 = vadd.f32 %v1410, %v1420
    %v1431 = vadd.f32 %v1411, %v1420
    %v1432 = vadd.f32 %v1412, %v1420
    %v1433 = vadd.f32 %v1413, %v1420
    %v1434 = vadd.f32 %v1414, %v1420
    %v1435 = vadd.f32 %v1415, %v1420
    %v1436 = vadd.f32 %v1416, %v1420
    %v1437 = vmax.f32 %v1421, 0.0
    %v1438 = vmax.f32 %v1422, 0.0
    %v1439 = vmax.f32 %v1423, 0.0
    %v1440 = vmax.f32 %v1424, 0.0
    %v1441 = vmax.f32 %v1425, 0.0
    %v1442 = vmax.f32 %v1426, 0.0
    %v1443 = vmax.f32 %v1427, 0.0
    %v1444 = vmax.f32 %v1428, 0.0
    %v1445 = vmax.f32 %v1429, 0.0
    %v1446 = vmax.f32 %v1430, 0.0
    %v1447 = vmax.f32 %v1431, 0.0
    %v1448 = vmax.f32 %v1432, 0.0
    %v1449 = vmax.f32 %v1433, 0.0
    %v1450 = vmax.f32 %v1434, 0.0
    %v1451 = vmax.f32 %v1435, 0.0
    %v1452 = vmax.f32 %v1436, 0.0
    %v1453 = vadd.f32 %v1437, %v871
    %v1454 = vadd.f32 %v1438, %v872
    %v1455 = vadd.f32 %v1439, %v873
    %v1456 = vadd.f32 %v1440, %v874
    %v1457 = vadd.f32 %v1441, %v875
    %v1458 = vadd.f32 %v1442, %v876
    %v1459 = vadd.f32 %v1443, %v877
    %v1460 = vadd.f32 %v1444, %v878
    %v1461 = vadd.f32 %v1445, %v879
    %v1462 = vadd.f32 %v1446, %v880
    %v1463 = vadd.f32 %v1447, %v881
    %v1464 = vadd.f32 %v1448, %v882
    %v1465 = vadd.f32 %v1449, %v883
    %v1466 = vadd.f32 %v1450, %v884
    %v1467 = vadd.f32 %v1451, %v885
    %v1468 = vadd.f32 %v1452, %v886
    %s1469 = scalar_lea.vmem [#allocation11], 384
    %v1470 = vld [vmem:[%s1469] sm:$0xff]
    %v1471 = vld [vmem:[%s1469 + $0x8] sm:$0xff]
    %v1472 = vld [vmem:[%s1469 + $0x10] sm:$0xff]
    %v1473 = vld [vmem:[%s1469 + $0x18] sm:$0xff]
    %v1474 = vld [vmem:[%s1469 + $0x20] sm:$0xff]
    %v1475 = vld [vmem:[%s1469 + $0x28] sm:$0xff]
    %v1476 = vld [vmem:[%s1469 + $0x30] sm:$0xff]
    %v1477 = vld [vmem:[%s1469 + $0x38] sm:$0xff]
    %v1478 = vld [vmem:[%s1469 + $0x40] sm:$0xff]
    %v1479 = vld [vmem:[%s1469 + $0x48] sm:$0xff]
    %v1480 = vld [vmem:[%s1469 + $0x50] sm:$0xff]
    %v1481 = vld [vmem:[%s1469 + $0x58] sm:$0xff]
    %v1482 = vld [vmem:[%s1469 + $0x60] sm:$0xff]
    %v1483 = vld [vmem:[%s1469 + $0x68] sm:$0xff]
    %v1484 = vld [vmem:[%s1469 + $0x70] sm:$0xff]
    %v1485 = vld [vmem:[%s1469 + $0x78] sm:$0xff]
    %v1486 = vld [vmem:[%s1469 + $0x80] sm:$0xff]
    %v1487 = vld [vmem:[%s1469 + $0x88] sm:$0xff]
    %v1488 = vld [vmem:[%s1469 + $0x90] sm:$0xff]
    %v1489 = vld [vmem:[%s1469 + $0x98] sm:$0xff]
    %v1490 = vld [vmem:[%s1469 + $0xa0] sm:$0xff]
    %v1491 = vld [vmem:[%s1469 + $0xa8] sm:$0xff]
    %v1492 = vld [vmem:[%s1469 + $0xb0] sm:$0xff]
    %v1493 = vld [vmem:[%s1469 + $0xb8] sm:$0xff]
    %v1494 = vld [vmem:[%s1469 + $0xc0] sm:$0xff]
    %v1495 = vld [vmem:[%s1469 + $0xc8] sm:$0xff]
    %v1496 = vld [vmem:[%s1469 + $0xd0] sm:$0xff]
    %v1497 = vld [vmem:[%s1469 + $0xd8] sm:$0xff]
    %v1498 = vld [vmem:[%s1469 + $0xe0] sm:$0xff]
    %v1499 = vld [vmem:[%s1469 + $0xe8] sm:$0xff]
    %v1500 = vld [vmem:[%s1469 + $0xf0] sm:$0xff]
    %v1501 = vld [vmem:[%s1469 + $0xf8] sm:$0xff]
    %v1502 = vld [vmem:[%s1469 + $0x100] sm:$0xff]
    %v1503 = vld [vmem:[%s1469 + $0x108] sm:$0xff]
    %v1504 = vld [vmem:[%s1469 + $0x110] sm:$0xff]
    %v1505 = vld [vmem:[%s1469 + $0x118] sm:$0xff]
    %v1506 = vld [vmem:[%s1469 + $0x120] sm:$0xff]
    %v1507 = vld [vmem:[%s1469 + $0x128] sm:$0xff]
    %v1508 = vld [vmem:[%s1469 + $0x130] sm:$0xff]
    %v1509 = vld [vmem:[%s1469 + $0x138] sm:$0xff]
    %v1510 = vld [vmem:[%s1469 + $0x140] sm:$0xff]
    %v1511 = vld [vmem:[%s1469 + $0x148] sm:$0xff]
    %v1512 = vld [vmem:[%s1469 + $0x150] sm:$0xff]
    %v1513 = vld [vmem:[%s1469 + $0x158] sm:$0xff]
    %v1514 = vld [vmem:[%s1469 + $0x160] sm:$0xff]
    %v1515 = vld [vmem:[%s1469 + $0x168] sm:$0xff]
    %v1516 = vld [vmem:[%s1469 + $0x170] sm:$0xff]
    %v1517 = vld [vmem:[%s1469 + $0x178] sm:$0xff]
    %s1518 = scalar_lea.vmem %s6, 8
    %v1519 = vld [vmem:[%s1518] sm:$0xff]
    %1520 = vmatprep.subr.mxu0 %v1471
    %1521 = vmatpush1.msra.mxu0 %v1470
    %1522 = vmatprep.subr.mxu0 %v1474
    %1523 = vmatpush1.msra.mxu0 %v1473
    %1524 = vmatprep.subr.mxu0 %v1477
    %1525 = vmatpush1.msra.mxu0 %v1476
    %1526 = vmatprep.subr.mxu0 %v1480
    %1527 = vmatpush1.msra.mxu0 %v1479
    %1528 = vmatprep.subr.mxu0 %v1483
    %1529 = vmatpush1.msra.mxu0 %v1482
    %1530 = vmatprep.subr.mxu0 %v1486
    %1531 = vmatpush1.msra.mxu0 %v1485
    %1532 = vmatprep.subr.mxu0 %v1489
    %1533 = vmatpush1.msra.mxu0 %v1488
    %1534 = vmatprep.subr.mxu0 %v1492
    %1535 = vmatpush1.msra.mxu0 %v1491
    %1536 = vmatprep.subr.mxu0 %v1495
    %1537 = vmatpush1.msra.mxu0 %v1494
    %1538 = vmatprep.subr.mxu0 %v1498
    %1539 = vmatpush1.msra.mxu0 %v1497
    %1540 = vmatprep.subr.mxu0 %v1501
    %1541 = vmatpush1.msra.mxu0 %v1500
    %1542 = vmatprep.subr.mxu0 %v1504
    %1543 = vmatpush1.msra.mxu0 %v1503
    %1544 = vmatprep.subr.mxu0 %v1507
    %1545 = vmatpush1.msra.mxu0 %v1506
    %1546 = vmatprep.subr.mxu0 %v1510
    %1547 = vmatpush1.msra.mxu0 %v1509
    %1548 = vmatprep.subr.mxu0 %v1513
    %1549 = vmatpush1.msra.mxu0 %v1512
    %1550 = vmatprep.subr.mxu0 %v1516
    %1551 = vmatpush1.msra.mxu0 %v1515
    %1552 = vmatprep.subr.mxu0 0.0
    %1553 = vmatpush1.msra.mxu0 0.0
    %1554 = vmatprep.subr.mxu0 0.0
    %1555 = vmatpush1.msra.mxu0 0.0
    %1556 = vmatprep.subr.mxu0 0.0
    %1557 = vmatpush1.msra.mxu0 0.0
    %1558 = vmatprep.subr.mxu0 0.0
    %1559 = vmatpush1.msra.mxu0 0.0
    %1560 = vmatprep.subr.mxu0 0.0
    %1561 = vmatpush1.msra.mxu0 0.0
    %1562 = vmatprep.subr.mxu0 0.0
    %1563 = vmatpush1.msra.mxu0 0.0
    %1564 = vmatprep.subr.mxu0 0.0
    %1565 = vmatpush1.msra.mxu0 0.0
    %1566 = vmatprep.subr.mxu0 0.0
    %1567 = vmatpush1.msra.mxu0 0.0
    %1568 = vmatprep.subr.mxu0 0.0
    %1569 = vmatpush1.msra.mxu0 0.0
    %1570 = vmatprep.subr.mxu0 0.0
    %1571 = vmatpush1.msra.mxu0 0.0
    %1572 = vmatprep.subr.mxu0 0.0
    %1573 = vmatpush1.msra.mxu0 0.0
    %1574 = vmatprep.subr.mxu0 0.0
    %1575 = vmatpush1.msra.mxu0 0.0
    %1576 = vmatprep.subr.mxu0 0.0
    %1577 = vmatpush1.msra.mxu0 0.0
    %1578 = vmatprep.subr.mxu0 0.0
    %1579 = vmatpush1.msra.mxu0 0.0
    %1580 = vmatprep.subr.mxu0 0.0
    %1581 = vmatpush1.msra.mxu0 0.0
    %1582 = vmatprep.subr.mxu0 0.0
    %1583 = vmatpush1.msra.mxu0 0.0
    %1584 = vmatprep.mubr.f32.mxu0 0.0
    %1585 = vmatmul.mubr.f32.gmra.mrb[0].mxu0 %v1453
    %v1586 = vpop.f32.mrb[0].mxu0
    %v1587 = vadd.f32 0.0, %v1586
    %v1588 = vpop.f32.mrb[0].mxu0
    %v1589 = vadd.f32 0.0, %v1588
    %1590 = vmatprep.mubr.f32.mxu0 0.0
    %1591 = vmatmul.mubr.f32.gmra.mrb[0].mxu0 %v1454
    %v1592 = vpop.f32.mrb[0].mxu0
    %v1593 = vadd.f32 0.0, %v1592
    %v1594 = vpop.f32.mrb[0].mxu0
    %v1595 = vadd.f32 0.0, %v1594
    %1596 = vmatprep.mubr.f32.mxu0 0.0
    %1597 = vmatmul.mubr.f32.gmra.mrb[0].mxu0 %v1455
    %v1598 = vpop.f32.mrb[0].mxu0
    %v1599 = vadd.f32 0.0, %v1598
    %v1600 = vpop.f32.mrb[0].mxu0
    %v1601 = vadd.f32 0.0, %v1600
    %1602 = vmatprep.mubr.f32.mxu0 0.0
    %1603 = vmatmul.mubr.f32.gmra.mrb[0].mxu0 %v1456
    %v1604 = vpop.f32.mrb[0].mxu0
    %v1605 = vadd.f32 0.0, %v1604
    %v1606 = vpop.f32.mrb[0].mxu0
    %v1607 = vadd.f32 0.0, %v1606
    %1608 = vmatprep.mubr.f32.mxu0 0.0
    %1609 = vmatmul.mubr.f32.gmra.mrb[0].mxu0 %v1457
    %v1610 = vpop.f32.mrb[0].mxu0
    %v1611 = vadd.f32 0.0, %v1610
    %v1612 = vpop.f32.mrb[0].mxu0
    %v1613 = vadd.f32 0.0, %v1612
    %1614 = vmatprep.mubr.f32.mxu0 0.0
    %1615 = vmatmul.mubr.f32.gmra.mrb[0].mxu0 %v1458
    %v1616 = vpop.f32.mrb[0].mxu0
    %v1617 = vadd.f32 0.0, %v1616
    %v1618 = vpop.f32.mrb[0].mxu0
    %v1619 = vadd.f32 0.0, %v1618
    %1620 = vmatprep.mubr.f32.mxu0 0.0
    %1621 = vmatmul.mubr.f32.gmra.mrb[0].mxu0 %v1459
    %v1622 = vpop.f32.mrb[0].mxu0
    %v1623 = vadd.f32 0.0, %v1622
    %v1624 = vpop.f32.mrb[0].mxu0
    %v1625 = vadd.f32 0.0, %v1624
    %1626 = vmatprep.mubr.f32.mxu0 0.0
    %1627 = vmatmul.mubr.f32.gmra.mrb[0].mxu0 %v1460
    %v1628 = vpop.f32.mrb[0].mxu0
    %v1629 = vadd.f32 0.0, %v1628
    %v1630 = vpop.f32.mrb[0].mxu0
    %v1631 = vadd.f32 0.0, %v1630
    %1632 = vmatprep.mubr.f32.mxu0 0.0
    %1633 = vmatmul.mubr.f32.gmra.mrb[0].mxu0 %v1461
    %v1634 = vpop.f32.mrb[0].mxu0
    %v1635 = vadd.f32 0.0, %v1634
    %v1636 = vpop.f32.mrb[0].mxu0
    %v1637 = vadd.f32 0.0, %v1636
    %1638 = vmatprep.mubr.f32.mxu0 0.0
    %1639 = vmatmul.mubr.f32.gmra.mrb[0].mxu0 %v1462
    %v1640 = vpop.f32.mrb[0].mxu0
    %v1641 = vadd.f32 0.0, %v1640
    %v1642 = vpop.f32.mrb[0].mxu0
    %v1643 = vadd.f32 0.0, %v1642
    %1644 = vmatprep.mubr.f32.mxu0 0.0
    %1645 = vmatmul.mubr.f32.gmra.mrb[0].mxu0 %v1463
    %v1646 = vpop.f32.mrb[0].mxu0
    %v1647 = vadd.f32 0.0, %v1646
    %v1648 = vpop.f32.mrb[0].mxu0
    %v1649 = vadd.f32 0.0, %v1648
    %1650 = vmatprep.mubr.f32.mxu0 0.0
    %1651 = vmatmul.mubr.f32.gmra.mrb[0].mxu0 %v1464
    %v1652 = vpop.f32.mrb[0].mxu0
    %v1653 = vadd.f32 0.0, %v1652
    %v1654 = vpop.f32.mrb[0].mxu0
    %v1655 = vadd.f32 0.0, %v1654
    %1656 = vmatprep.mubr.f32.mxu0 0.0
    %1657 = vmatmul.mubr.f32.gmra.mrb[0].mxu0 %v1465
    %v1658 = vpop.f32.mrb[0].mxu0
    %v1659 = vadd.f32 0.0, %v1658
    %v1660 = vpop.f32.mrb[0].mxu0
    %v1661 = vadd.f32 0.0, %v1660
    %1662 = vmatprep.mubr.f32.mxu0 0.0
    %1663 = vmatmul.mubr.f32.gmra.mrb[0].mxu0 %v1466
    %v1664 = vpop.f32.mrb[0].mxu0
    %v1665 = vadd.f32 0.0, %v1664
    %v1666 = vpop.f32.mrb[0].mxu0
    %v1667 = vadd.f32 0.0, %v1666
    %1668 = vmatprep.mubr.f32.mxu0 0.0
    %1669 = vmatmul.mubr.f32.gmra.mrb[0].mxu0 %v1467
    %v1670 = vpop.f32.mrb[0].mxu0
    %v1671 = vadd.f32 0.0, %v1670
    %v1672 = vpop.f32.mrb[0].mxu0
    %v1673 = vadd.f32 0.0, %v1672
    %1674 = vmatprep.mubr.f32.mxu0 0.0
    %1675 = vmatmul.mubr.f32.gmra.mrb[0].mxu0 %v1468
    %v1676 = vpop.f32.mrb[0].mxu0
    %v1677 = vadd.f32 0.0, %v1676
    %v1678 = vpop.f32.mrb[0].mxu0
    %v1679 = vadd.f32 0.0, %v1678
    %1680 = vdwg.mxu0
    %1681 = vmatprep.subr.mxu0 %v1589
    %1682 = vmatpush1.msra.mxu0 %v1587
    %1683 = vmatprep.subr.mxu0 %v1595
    %1684 = vmatpush1.msra.mxu0 %v1593
    %1685 = vmatprep.subr.mxu0 %v1601
    %1686 = vmatpush1.msra.mxu0 %v1599
    %1687 = vmatprep.subr.mxu0 %v1607
    %1688 = vmatpush1.msra.mxu0 %v1605
    %1689 = vmatprep.subr.mxu0 %v1613
    %1690 = vmatpush1.msra.mxu0 %v1611
    %1691 = vmatprep.subr.mxu0 %v1619
    %1692 = vmatpush1.msra.mxu0 %v1617
    %1693 = vmatprep.subr.mxu0 %v1625
    %1694 = vmatpush1.msra.mxu0 %v1623
    %1695 = vmatprep.subr.mxu0 %v1631
    %1696 = vmatpush1.msra.mxu0 %v1629
    %1697 = vmatprep.subr.mxu0 %v1637
    %1698 = vmatpush1.msra.mxu0 %v1635
    %1699 = vmatprep.subr.mxu0 %v1643
    %1700 = vmatpush1.msra.mxu0 %v1641
    %1701 = vmatprep.subr.mxu0 %v1649
    %1702 = vmatpush1.msra.mxu0 %v1647
    %1703 = vmatprep.subr.mxu0 %v1655
    %1704 = vmatpush1.msra.mxu0 %v1653
    %1705 = vmatprep.subr.mxu0 %v1661
    %1706 = vmatpush1.msra.mxu0 %v1659
    %1707 = vmatprep.subr.mxu0 %v1667
    %1708 = vmatpush1.msra.mxu0 %v1665
    %1709 = vmatprep.subr.mxu0 %v1673
    %1710 = vmatpush1.msra.mxu0 %v1671
    %1711 = vmatprep.subr.mxu0 %v1679
    %1712 = vmatpush1.msra.mxu0 %v1677
    %1713 = vmatprep.subr.mxu0 0.0
    %1714 = vmatpush1.msra.mxu0 0.0
    %1715 = vmatprep.subr.mxu0 0.0
    %1716 = vmatpush1.msra.mxu0 0.0
    %1717 = vmatprep.subr.mxu0 0.0
    %1718 = vmatpush1.msra.mxu0 0.0
    %1719 = vmatprep.subr.mxu0 0.0
    %1720 = vmatpush1.msra.mxu0 0.0
    %1721 = vmatprep.subr.mxu0 0.0
    %1722 = vmatpush1.msra.mxu0 0.0
    %1723 = vmatprep.subr.mxu0 0.0
    %1724 = vmatpush1.msra.mxu0 0.0
    %1725 = vmatprep.subr.mxu0 0.0
    %1726 = vmatpush1.msra.mxu0 0.0
    %1727 = vmatprep.subr.mxu0 0.0
    %1728 = vmatpush1.msra.mxu0 0.0
    %1729 = vmatprep.subr.mxu0 0.0
    %1730 = vmatpush1.msra.mxu0 0.0
    %1731 = vmatprep.subr.mxu0 0.0
    %1732 = vmatpush1.msra.mxu0 0.0
    %1733 = vmatprep.subr.mxu0 0.0
    %1734 = vmatpush1.msra.mxu0 0.0
    %1735 = vmatprep.subr.mxu0 0.0
    %1736 = vmatpush1.msra.mxu0 0.0
    %1737 = vmatprep.subr.mxu0 0.0
    %1738 = vmatpush1.msra.mxu0 0.0
    %1739 = vmatprep.subr.mxu0 0.0
    %1740 = vmatpush1.msra.mxu0 0.0
    %1741 = vmatprep.subr.mxu0 0.0
    %1742 = vmatpush1.msra.mxu0 0.0
    %1743 = vmatprep.subr.mxu0 0.0
    %1744 = vmatpush1.msra.mxu0 0.0
    %1745 = vmatprep.mubr.f32.mxu0 0.0
    %1746 = vmatmul.mubr.f32.gmra.mrb[0].mxu0 %v105
    %v1747 = vpop.f32.mrb[0].mxu0
    %v1748 = vadd.f32 0.0, %v1747
    %v1749 = vpop.f32.mrb[0].mxu0
    %v1750 = vadd.f32 0.0, %v1749
    %1751 = vmatprep.mubr.f32.mxu0 0.0
    %1752 = vmatmul.mubr.f32.gmra.mrb[0].mxu0 %v106
    %v1753 = vpop.f32.mrb[0].mxu0
    %v1754 = vadd.f32 0.0, %v1753
    %v1755 = vpop.f32.mrb[0].mxu0
    %v1756 = vadd.f32 0.0, %v1755
    %1757 = vmatprep.mubr.f32.mxu0 0.0
    %1758 = vmatmul.mubr.f32.gmra.mrb[0].mxu0 %v107
    %v1759 = vpop.f32.mrb[0].mxu0
    %v1760 = vadd.f32 0.0, %v1759
    %v1761 = vpop.f32.mrb[0].mxu0
    %v1762 = vadd.f32 0.0, %v1761
    %1763 = vmatprep.mubr.f32.mxu0 0.0
    %1764 = vmatmul.mubr.f32.gmra.mrb[0].mxu0 %v108
    %v1765 = vpop.f32.mrb[0].mxu0
    %v1766 = vadd.f32 0.0, %v1765
    %v1767 = vpop.f32.mrb[0].mxu0
    %v1768 = vadd.f32 0.0, %v1767
    %1769 = vmatprep.mubr.f32.mxu0 0.0
    %1770 = vmatmul.mubr.f32.gmra.mrb[0].mxu0 %v109
    %v1771 = vpop.f32.mrb[0].mxu0
    %v1772 = vadd.f32 0.0, %v1771
    %v1773 = vpop.f32.mrb[0].mxu0
    %v1774 = vadd.f32 0.0, %v1773
    %1775 = vmatprep.mubr.f32.mxu0 0.0
    %1776 = vmatmul.mubr.f32.gmra.mrb[0].mxu0 %v110
    %v1777 = vpop.f32.mrb[0].mxu0
    %v1778 = vadd.f32 0.0, %v1777
    %v1779 = vpop.f32.mrb[0].mxu0
    %v1780 = vadd.f32 0.0, %v1779
    %1781 = vmatprep.mubr.f32.mxu0 0.0
    %1782 = vmatmul.mubr.f32.gmra.mrb[0].mxu0 %v111
    %v1783 = vpop.f32.mrb[0].mxu0
    %v1784 = vadd.f32 0.0, %v1783
    %v1785 = vpop.f32.mrb[0].mxu0
    %v1786 = vadd.f32 0.0, %v1785
    %1787 = vmatprep.mubr.f32.mxu0 0.0
    %1788 = vmatmul.mubr.f32.gmra.mrb[0].mxu0 %v112
    %v1789 = vpop.f32.mrb[0].mxu0
    %v1790 = vadd.f32 0.0, %v1789
    %v1791 = vpop.f32.mrb[0].mxu0
    %v1792 = vadd.f32 0.0, %v1791
    %1793 = vmatprep.mubr.f32.mxu0 0.0
    %1794 = vmatmul.mubr.f32.gmra.mrb[0].mxu0 %v113
    %v1795 = vpop.f32.mrb[0].mxu0
    %v1796 = vadd.f32 0.0, %v1795
    %v1797 = vpop.f32.mrb[0].mxu0
    %v1798 = vadd.f32 0.0, %v1797
    %1799 = vmatprep.mubr.f32.mxu0 0.0
    %1800 = vmatmul.mubr.f32.gmra.mrb[0].mxu0 %v114
    %v1801 = vpop.f32.mrb[0].mxu0
    %v1802 = vadd.f32 0.0, %v1801
    %v1803 = vpop.f32.mrb[0].mxu0
    %v1804 = vadd.f32 0.0, %v1803
    %1805 = vmatprep.mubr.f32.mxu0 0.0
    %1806 = vmatmul.mubr.f32.gmra.mrb[0].mxu0 %v115
    %v1807 = vpop.f32.mrb[0].mxu0
    %v1808 = vadd.f32 0.0, %v1807
    %v1809 = vpop.f32.mrb[0].mxu0
    %v1810 = vadd.f32 0.0, %v1809
    %1811 = vmatprep.mubr.f32.mxu0 0.0
    %1812 = vmatmul.mubr.f32.gmra.mrb[0].mxu0 %v116
    %v1813 = vpop.f32.mrb[0].mxu0
    %v1814 = vadd.f32 0.0, %v1813
    %v1815 = vpop.f32.mrb[0].mxu0
    %v1816 = vadd.f32 0.0, %v1815
    %1817 = vmatprep.mubr.f32.mxu0 0.0
    %1818 = vmatmul.mubr.f32.gmra.mrb[0].mxu0 %v117
    %v1819 = vpop.f32.mrb[0].mxu0
    %v1820 = vadd.f32 0.0, %v1819
    %v1821 = vpop.f32.mrb[0].mxu0
    %v1822 = vadd.f32 0.0, %v1821
    %1823 = vmatprep.mubr.f32.mxu0 0.0
    %1824 = vmatmul.mubr.f32.gmra.mrb[0].mxu0 %v118
    %v1825 = vpop.f32.mrb[0].mxu0
    %v1826 = vadd.f32 0.0, %v1825
    %v1827 = vpop.f32.mrb[0].mxu0
    %v1828 = vadd.f32 0.0, %v1827
    %1829 = vmatprep.mubr.f32.mxu0 0.0
    %1830 = vmatmul.mubr.f32.gmra.mrb[0].mxu0 %v119
    %v1831 = vpop.f32.mrb[0].mxu0
    %v1832 = vadd.f32 0.0, %v1831
    %v1833 = vpop.f32.mrb[0].mxu0
    %v1834 = vadd.f32 0.0, %v1833
    %1835 = vmatprep.mubr.f32.mxu0 0.0
    %1836 = vmatmul.mubr.f32.gmra.mrb[0].mxu0 %v120
    %v1837 = vpop.f32.mrb[0].mxu0
    %v1838 = vadd.f32 0.0, %v1837
    %v1839 = vpop.f32.mrb[0].mxu0
    %v1840 = vadd.f32 0.0, %v1839
    %1841 = vdwg.mxu0
    %v1842 = vlaneseq
    %v1843 = vshrl.u32 %v1842, 7
    %v1844 = vsub.s32 0, %v1843
    %v1845 = vrot.slane %v1519, %v1844
    %v1846 = vadd.f32 %v1750, %v1845
    %v1847 = vadd.f32 %v1756, %v1845
    %v1848 = vadd.f32 %v1762, %v1845
    %v1849 = vadd.f32 %v1768, %v1845
    %v1850 = vadd.f32 %v1774, %v1845
    %v1851 = vadd.f32 %v1780, %v1845
    %v1852 = vadd.f32 %v1786, %v1845
    %v1853 = vadd.f32 %v1792, %v1845
    %v1854 = vadd.f32 %v1798, %v1845
    %v1855 = vadd.f32 %v1804, %v1845
    %v1856 = vadd.f32 %v1810, %v1845
    %v1857 = vadd.f32 %v1816, %v1845
    %v1858 = vadd.f32 %v1822, %v1845
    %v1859 = vadd.f32 %v1828, %v1845
    %v1860 = vadd.f32 %v1834, %v1845
    %v1861 = vadd.f32 %v1840, %v1845
    %v1862 = vadd.f32 %v1748, %v1754
    %v1863 = vadd.f32 %v1862, %v1760
    %v1864 = vadd.f32 %v1863, %v1766
    %v1865 = vadd.f32 %v1864, %v1772
    %v1866 = vadd.f32 %v1865, %v1778
    %v1867 = vadd.f32 %v1866, %v1784
    %v1868 = vadd.f32 %v1867, %v1790
    %v1869 = vadd.f32 %v1868, %v1796
    %v1870 = vadd.f32 %v1869, %v1802
    %v1871 = vadd.f32 %v1870, %v1808
    %v1872 = vadd.f32 %v1871, %v1814
    %v1873 = vadd.f32 %v1872, %v1820
    %v1874 = vadd.f32 %v1873, %v1826
    %v1875 = vadd.f32 %v1874, %v1832
    %v1876 = vadd.f32 %v1875, %v1838
    %v1877 = vrot.slane %v1876, 4
    %v1878 = vadd.f32 %v1876, %v1877
    %v1879 = vrot.slane %v1878, 2
    %v1880 = vadd.f32 %v1878, %v1879
    %v1881 = vrot.slane %v1880, 1
    %v1882 = vadd.f32 %v1880, %v1881
    %v1883 = vmul.f32 %v1882, 0.083333336
    %v1884 = vmul.f32 %v1748, %v1748
    %v1885 = vmul.f32 %v1754, %v1754
    %v1886 = vmul.f32 %v1760, %v1760
    %v1887 = vmul.f32 %v1766, %v1766
    %v1888 = vmul.f32 %v1772, %v1772
    %v1889 = vmul.f32 %v1778, %v1778
    %v1890 = vmul.f32 %v1784, %v1784
    %v1891 = vmul.f32 %v1790, %v1790
    %v1892 = vmul.f32 %v1796, %v1796
    %v1893 = vmul.f32 %v1802, %v1802
    %v1894 = vmul.f32 %v1808, %v1808
    %v1895 = vmul.f32 %v1814, %v1814
    %v1896 = vmul.f32 %v1820, %v1820
    %v1897 = vmul.f32 %v1826, %v1826
    %v1898 = vmul.f32 %v1832, %v1832
    %v1899 = vmul.f32 %v1838, %v1838
    %v1900 = vadd.f32 %v1884, %v1885
    %v1901 = vadd.f32 %v1900, %v1886
    %v1902 = vadd.f32 %v1901, %v1887
    %v1903 = vadd.f32 %v1902, %v1888
    %v1904 = vadd.f32 %v1903, %v1889
    %v1905 = vadd.f32 %v1904, %v1890
    %v1906 = vadd.f32 %v1905, %v1891
    %v1907 = vadd.f32 %v1906, %v1892
    %v1908 = vadd.f32 %v1907, %v1893
    %v1909 = vadd.f32 %v1908, %v1894
    %v1910 = vadd.f32 %v1909, %v1895
    %v1911 = vadd.f32 %v1910, %v1896
    %v1912 = vadd.f32 %v1911, %v1897
    %v1913 = vadd.f32 %v1912, %v1898
    %v1914 = vadd.f32 %v1913, %v1899
    %v1915 = vrot.slane %v1914, 4
    %v1916 = vadd.f32 %v1914, %v1915
    %v1917 = vrot.slane %v1916, 2
    %v1918 = vadd.f32 %v1916, %v1917
    %v1919 = vrot.slane %v1918, 1
    %v1920 = vadd.f32 %v1918, %v1919
    %v1921 = vmul.f32 %v1920, 0.083333336
    %v1922 = vmul.f32 %v1883, %v1883
    %v1923 = vsub.f32 %v1921, %v1922
    %v1924 = vmax.f32 %v1923, 0.0
    %v1925 = vsub.f32 %v1748, %v1883
    %v1926 = vsub.f32 %v1754, %v1883
    %v1927 = vsub.f32 %v1760, %v1883
    %v1928 = vsub.f32 %v1766, %v1883
    %v1929 = vsub.f32 %v1772, %v1883
    %v1930 = vsub.f32 %v1778, %v1883
    %v1931 = vsub.f32 %v1784, %v1883
    %v1932 = vsub.f32 %v1790, %v1883
    %v1933 = vsub.f32 %v1796, %v1883
    %v1934 = vsub.f32 %v1802, %v1883
    %v1935 = vsub.f32 %v1808, %v1883
    %v1936 = vsub.f32 %v1814, %v1883
    %v1937 = vsub.f32 %v1820, %v1883
    %v1938 = vsub.f32 %v1826, %v1883
    %v1939 = vsub.f32 %v1832, %v1883
    %v1940 = vsub.f32 %v1838, %v1883
    %v1941 = vadd.f32 %v1924, 1e-05
    %v1942 = vrsqrt.pop %v1941
    %v1943 = vmul.f32 %v1942, %v1519
    %v1944 = vlaneseq
    %v1945 = vshrl.u32 %v1944, 7
    %v1946 = vsub.s32 1, %v1945
    %v1947 = vrot.slane %v1943, %v1946
    %v1948 = vmul.f32 %v1925, %v1947
    %v1949 = vmul.f32 %v1926, %v1947
    %v1950 = vmul.f32 %v1927, %v1947
    %v1951 = vmul.f32 %v1928, %v1947
    %v1952 = vmul.f32 %v1929, %v1947
    %v1953 = vmul.f32 %v1930, %v1947
    %v1954 = vmul.f32 %v1931, %v1947
    %v1955 = vmul.f32 %v1932, %v1947
    %v1956 = vmul.f32 %v1933, %v1947
    %v1957 = vmul.f32 %v1934, %v1947
    %v1958 = vmul.f32 %v1935, %v1947
    %v1959 = vmul.f32 %v1936, %v1947
    %v1960 = vmul.f32 %v1937, %v1947
    %v1961 = vmul.f32 %v1938, %v1947
    %v1962 = vmul.f32 %v1939, %v1947
    %v1963 = vmul.f32 %v1940, %v1947
    %v1964 = vlaneseq
    %v1965 = vshrl.u32 %v1964, 7
    %v1966 = vsub.s32 2, %v1965
    %v1967 = vrot.slane %v1519, %v1966
    %v1968 = vadd.f32 %v1948, %v1967
    %v1969 = vadd.f32 %v1949, %v1967
    %v1970 = vadd.f32 %v1950, %v1967
    %v1971 = vadd.f32 %v1951, %v1967
    %v1972 = vadd.f32 %v1952, %v1967
    %v1973 = vadd.f32 %v1953, %v1967
    %v1974 = vadd.f32 %v1954, %v1967
    %v1975 = vadd.f32 %v1955, %v1967
    %v1976 = vadd.f32 %v1956, %v1967
    %v1977 = vadd.f32 %v1957, %v1967
    %v1978 = vadd.f32 %v1958, %v1967
    %v1979 = vadd.f32 %v1959, %v1967
    %v1980 = vadd.f32 %v1960, %v1967
    %v1981 = vadd.f32 %v1961, %v1967
    %v1982 = vadd.f32 %v1962, %v1967
    %v1983 = vadd.f32 %v1963, %v1967
    %v1984 = vmax.f32 %v1968, 0.0
    %v1985 = vmax.f32 %v1969, 0.0
    %v1986 = vmax.f32 %v1970, 0.0
    %v1987 = vmax.f32 %v1971, 0.0
    %v1988 = vmax.f32 %v1972, 0.0
    %v1989 = vmax.f32 %v1973, 0.0
    %v1990 = vmax.f32 %v1974, 0.0
    %v1991 = vmax.f32 %v1975, 0.0
    %v1992 = vmax.f32 %v1976, 0.0
    %v1993 = vmax.f32 %v1977, 0.0
    %v1994 = vmax.f32 %v1978, 0.0
    %v1995 = vmax.f32 %v1979, 0.0
    %v1996 = vmax.f32 %v1980, 0.0
    %v1997 = vmax.f32 %v1981, 0.0
    %v1998 = vmax.f32 %v1982, 0.0
    %v1999 = vmax.f32 %v1983, 0.0
    %2000 = vmatprep.subr.mxu0 0.0
    %2001 = vmatpush1.msra.mxu0 %v1472
    %2002 = vmatprep.subr.mxu0 0.0
    %2003 = vmatpush1.msra.mxu0 %v1475
    %2004 = vmatprep.subr.mxu0 0.0
    %2005 = vmatpush1.msra.mxu0 %v1478
    %2006 = vmatprep.subr.mxu0 0.0
    %2007 = vmatpush1.msra.mxu0 %v1481
    %2008 = vmatprep.subr.mxu0 0.0
    %2009 = vmatpush1.msra.mxu0 %v1484
    %2010 = vmatprep.subr.mxu0 0.0
    %2011 = vmatpush1.msra.mxu0 %v1487
    %2012 = vmatprep.subr.mxu0 0.0
    %2013 = vmatpush1.msra.mxu0 %v1490
    %2014 = vmatprep.subr.mxu0 0.0
    %2015 = vmatpush1.msra.mxu0 %v1493
    %2016 = vmatprep.subr.mxu0 0.0
    %2017 = vmatpush1.msra.mxu0 %v1496
    %2018 = vmatprep.subr.mxu0 0.0
    %2019 = vmatpush1.msra.mxu0 %v1499
    %2020 = vmatprep.subr.mxu0 0.0
    %2021 = vmatpush1.msra.mxu0 %v1502
    %2022 = vmatprep.subr.mxu0 0.0
    %2023 = vmatpush1.msra.mxu0 %v1505
    %2024 = vmatprep.subr.mxu0 0.0
    %2025 = vmatpush1.msra.mxu0 %v1508
    %2026 = vmatprep.subr.mxu0 0.0
    %2027 = vmatpush1.msra.mxu0 %v1511
    %2028 = vmatprep.subr.mxu0 0.0
    %2029 = vmatpush1.msra.mxu0 %v1514
    %2030 = vmatprep.subr.mxu0 0.0
    %2031 = vmatpush1.msra.mxu0 %v1517
    %2032 = vmatprep.subr.mxu0 0.0
    %2033 = vmatpush1.msra.mxu0 0.0
    %2034 = vmatprep.subr.mxu0 0.0
    %2035 = vmatpush1.msra.mxu0 0.0
    %2036 = vmatprep.subr.mxu0 0.0
    %2037 = vmatpush1.msra.mxu0 0.0
    %2038 = vmatprep.subr.mxu0 0.0
    %2039 = vmatpush1.msra.mxu0 0.0
    %2040 = vmatprep.subr.mxu0 0.0
    %2041 = vmatpush1.msra.mxu0 0.0
    %2042 = vmatprep.subr.mxu0 0.0
    %2043 = vmatpush1.msra.mxu0 0.0
    %2044 = vmatprep.subr.mxu0 0.0
    %2045 = vmatpush1.msra.mxu0 0.0
    %2046 = vmatprep.subr.mxu0 0.0
    %2047 = vmatpush1.msra.mxu0 0.0
    %2048 = vmatprep.subr.mxu0 0.0
    %2049 = vmatpush1.msra.mxu0 0.0
    %2050 = vmatprep.subr.mxu0 0.0
    %2051 = vmatpush1.msra.mxu0 0.0
    %2052 = vmatprep.subr.mxu0 0.0
    %2053 = vmatpush1.msra.mxu0 0.0
    %2054 = vmatprep.subr.mxu0 0.0
    %2055 = vmatpush1.msra.mxu0 0.0
    %2056 = vmatprep.subr.mxu0 0.0
    %2057 = vmatpush1.msra.mxu0 0.0
    %2058 = vmatprep.subr.mxu0 0.0
    %2059 = vmatpush1.msra.mxu0 0.0
    %2060 = vmatprep.subr.mxu0 0.0
    %2061 = vmatpush1.msra.mxu0 0.0
    %2062 = vmatprep.subr.mxu0 0.0
    %2063 = vmatpush1.msra.mxu0 0.0
    %2064 = vmatprep.mubr.f32.mxu0 0.0
    %2065 = vmatmul.mubr.f32.gmra.mrb[0].mxu0 %v1984
    %v2066 = vpop.f32.mrb[0].mxu0
    %v2067 = vadd.f32 0.0, %v2066
    %v2068 = vpop.f32.mrb[0].mxu0
    %2069 = vmatprep.mubr.f32.mxu0 0.0
    %2070 = vmatmul.mubr.f32.gmra.mrb[0].mxu0 %v1985
    %v2071 = vpop.f32.mrb[0].mxu0
    %v2072 = vadd.f32 0.0, %v2071
    %v2073 = vpop.f32.mrb[0].mxu0
    %2074 = vmatprep.mubr.f32.mxu0 0.0
    %2075 = vmatmul.mubr.f32.gmra.mrb[0].mxu0 %v1986
    %v2076 = vpop.f32.mrb[0].mxu0
    %v2077 = vadd.f32 0.0, %v2076
    %v2078 = vpop.f32.mrb[0].mxu0
    %2079 = vmatprep.mubr.f32.mxu0 0.0
    %2080 = vmatmul.mubr.f32.gmra.mrb[0].mxu0 %v1987
    %v2081 = vpop.f32.mrb[0].mxu0
    %v2082 = vadd.f32 0.0, %v2081
    %v2083 = vpop.f32.mrb[0].mxu0
    %2084 = vmatprep.mubr.f32.mxu0 0.0
    %2085 = vmatmul.mubr.f32.gmra.mrb[0].mxu0 %v1988
    %v2086 = vpop.f32.mrb[0].mxu0
    %v2087 = vadd.f32 0.0, %v2086
    %v2088 = vpop.f32.mrb[0].mxu0
    %2089 = vmatprep.mubr.f32.mxu0 0.0
    %2090 = vmatmul.mubr.f32.gmra.mrb[0].mxu0 %v1989
    %v2091 = vpop.f32.mrb[0].mxu0
    %v2092 = vadd.f32 0.0, %v2091
    %v2093 = vpop.f32.mrb[0].mxu0
    %2094 = vmatprep.mubr.f32.mxu0 0.0
    %2095 = vmatmul.mubr.f32.gmra.mrb[0].mxu0 %v1990
    %v2096 = vpop.f32.mrb[0].mxu0
    %v2097 = vadd.f32 0.0, %v2096
    %v2098 = vpop.f32.mrb[0].mxu0
    %2099 = vmatprep.mubr.f32.mxu0 0.0
    %2100 = vmatmul.mubr.f32.gmra.mrb[0].mxu0 %v1991
    %v2101 = vpop.f32.mrb[0].mxu0
    %v2102 = vadd.f32 0.0, %v2101
    %v2103 = vpop.f32.mrb[0].mxu0
    %2104 = vmatprep.mubr.f32.mxu0 0.0
    %2105 = vmatmul.mubr.f32.gmra.mrb[0].mxu0 %v1992
    %v2106 = vpop.f32.mrb[0].mxu0
    %v2107 = vadd.f32 0.0, %v2106
    %v2108 = vpop.f32.mrb[0].mxu0
    %2109 = vmatprep.mubr.f32.mxu0 0.0
    %2110 = vmatmul.mubr.f32.gmra.mrb[0].mxu0 %v1993
    %v2111 = vpop.f32.mrb[0].mxu0
    %v2112 = vadd.f32 0.0, %v2111
    %v2113 = vpop.f32.mrb[0].mxu0
    %2114 = vmatprep.mubr.f32.mxu0 0.0
    %2115 = vmatmul.mubr.f32.gmra.mrb[0].mxu0 %v1994
    %v2116 = vpop.f32.mrb[0].mxu0
    %v2117 = vadd.f32 0.0, %v2116
    %v2118 = vpop.f32.mrb[0].mxu0
    %2119 = vmatprep.mubr.f32.mxu0 0.0
    %2120 = vmatmul.mubr.f32.gmra.mrb[0].mxu0 %v1995
    %v2121 = vpop.f32.mrb[0].mxu0
    %v2122 = vadd.f32 0.0, %v2121
    %v2123 = vpop.f32.mrb[0].mxu0
    %2124 = vmatprep.mubr.f32.mxu0 0.0
    %2125 = vmatmul.mubr.f32.gmra.mrb[0].mxu0 %v1996
    %v2126 = vpop.f32.mrb[0].mxu0
    %v2127 = vadd.f32 0.0, %v2126
    %v2128 = vpop.f32.mrb[0].mxu0
    %2129 = vmatprep.mubr.f32.mxu0 0.0
    %2130 = vmatmul.mubr.f32.gmra.mrb[0].mxu0 %v1997
    %v2131 = vpop.f32.mrb[0].mxu0
    %v2132 = vadd.f32 0.0, %v2131
    %v2133 = vpop.f32.mrb[0].mxu0
    %2134 = vmatprep.mubr.f32.mxu0 0.0
    %2135 = vmatmul.mubr.f32.gmra.mrb[0].mxu0 %v1998
    %v2136 = vpop.f32.mrb[0].mxu0
    %v2137 = vadd.f32 0.0, %v2136
    %v2138 = vpop.f32.mrb[0].mxu0
    %2139 = vmatprep.mubr.f32.mxu0 0.0
    %2140 = vmatmul.mubr.f32.gmra.mrb[0].mxu0 %v1999
    %v2141 = vpop.f32.mrb[0].mxu0
    %v2142 = vadd.f32 0.0, %v2141
    %v2143 = vpop.f32.mrb[0].mxu0
    %2144 = vdwg.mxu0
    %2145 = vmatprep.subr.mxu0 0.0
    %2146 = vmatpush1.msra.mxu0 %v2067
    %2147 = vmatprep.subr.mxu0 0.0
    %2148 = vmatpush1.msra.mxu0 %v2072
    %2149 = vmatprep.subr.mxu0 0.0
    %2150 = vmatpush1.msra.mxu0 %v2077
    %2151 = vmatprep.subr.mxu0 0.0
    %2152 = vmatpush1.msra.mxu0 %v2082
    %2153 = vmatprep.subr.mxu0 0.0
    %2154 = vmatpush1.msra.mxu0 %v2087
    %2155 = vmatprep.subr.mxu0 0.0
    %2156 = vmatpush1.msra.mxu0 %v2092
    %2157 = vmatprep.subr.mxu0 0.0
    %2158 = vmatpush1.msra.mxu0 %v2097
    %2159 = vmatprep.subr.mxu0 0.0
    %2160 = vmatpush1.msra.mxu0 %v2102
    %2161 = vmatprep.subr.mxu0 0.0
    %2162 = vmatpush1.msra.mxu0 %v2107
    %2163 = vmatprep.subr.mxu0 0.0
    %2164 = vmatpush1.msra.mxu0 %v2112
    %2165 = vmatprep.subr.mxu0 0.0
    %2166 = vmatpush1.msra.mxu0 %v2117
    %2167 = vmatprep.subr.mxu0 0.0
    %2168 = vmatpush1.msra.mxu0 %v2122
    %2169 = vmatprep.subr.mxu0 0.0
    %2170 = vmatpush1.msra.mxu0 %v2127
    %2171 = vmatprep.subr.mxu0 0.0
    %2172 = vmatpush1.msra.mxu0 %v2132
    %2173 = vmatprep.subr.mxu0 0.0
    %2174 = vmatpush1.msra.mxu0 %v2137
    %2175 = vmatprep.subr.mxu0 0.0
    %2176 = vmatpush1.msra.mxu0 %v2142
    %2177 = vmatprep.subr.mxu0 0.0
    %2178 = vmatpush1.msra.mxu0 0.0
    %2179 = vmatprep.subr.mxu0 0.0
    %2180 = vmatpush1.msra.mxu0 0.0
    %2181 = vmatprep.subr.mxu0 0.0
    %2182 = vmatpush1.msra.mxu0 0.0
    %2183 = vmatprep.subr.mxu0 0.0
    %2184 = vmatpush1.msra.mxu0 0.0
    %2185 = vmatprep.subr.mxu0 0.0
    %2186 = vmatpush1.msra.mxu0 0.0
    %2187 = vmatprep.subr.mxu0 0.0
    %2188 = vmatpush1.msra.mxu0 0.0
    %2189 = vmatprep.subr.mxu0 0.0
    %2190 = vmatpush1.msra.mxu0 0.0
    %2191 = vmatprep.subr.mxu0 0.0
    %2192 = vmatpush1.msra.mxu0 0.0
    %2193 = vmatprep.subr.mxu0 0.0
    %2194 = vmatpush1.msra.mxu0 0.0
    %2195 = vmatprep.subr.mxu0 0.0
    %2196 = vmatpush1.msra.mxu0 0.0
    %2197 = vmatprep.subr.mxu0 0.0
    %2198 = vmatpush1.msra.mxu0 0.0
    %2199 = vmatprep.subr.mxu0 0.0
    %2200 = vmatpush1.msra.mxu0 0.0
    %2201 = vmatprep.subr.mxu0 0.0
    %2202 = vmatpush1.msra.mxu0 0.0
    %2203 = vmatprep.subr.mxu0 0.0
    %2204 = vmatpush1.msra.mxu0 0.0
    %2205 = vmatprep.subr.mxu0 0.0
    %2206 = vmatpush1.msra.mxu0 0.0
    %2207 = vmatprep.subr.mxu0 0.0
    %2208 = vmatpush1.msra.mxu0 0.0
    %2209 = vmatprep.mubr.f32.mxu0 0.0
    %2210 = vmatmul.mubr.f32.gmra.mrb[0].mxu0 %v105
    %v2211 = vpop.f32.mrb[0].mxu0
    %v2212 = vadd.f32 0.0, %v2211
    %v2213 = vpop.f32.mrb[0].mxu0
    %2214 = vmatprep.mubr.f32.mxu0 0.0
    %2215 = vmatmul.mubr.f32.gmra.mrb[0].mxu0 %v106
    %v2216 = vpop.f32.mrb[0].mxu0
    %v2217 = vadd.f32 0.0, %v2216
    %v2218 = vpop.f32.mrb[0].mxu0
    %2219 = vmatprep.mubr.f32.mxu0 0.0
    %2220 = vmatmul.mubr.f32.gmra.mrb[0].mxu0 %v107
    %v2221 = vpop.f32.mrb[0].mxu0
    %v2222 = vadd.f32 0.0, %v2221
    %v2223 = vpop.f32.mrb[0].mxu0
    %2224 = vmatprep.mubr.f32.mxu0 0.0
    %2225 = vmatmul.mubr.f32.gmra.mrb[0].mxu0 %v108
    %v2226 = vpop.f32.mrb[0].mxu0
    %v2227 = vadd.f32 0.0, %v2226
    %v2228 = vpop.f32.mrb[0].mxu0
    %2229 = vmatprep.mubr.f32.mxu0 0.0
    %2230 = vmatmul.mubr.f32.gmra.mrb[0].mxu0 %v109
    %v2231 = vpop.f32.mrb[0].mxu0
    %v2232 = vadd.f32 0.0, %v2231
    %v2233 = vpop.f32.mrb[0].mxu0
    %2234 = vmatprep.mubr.f32.mxu0 0.0
    %2235 = vmatmul.mubr.f32.gmra.mrb[0].mxu0 %v110
    %v2236 = vpop.f32.mrb[0].mxu0
    %v2237 = vadd.f32 0.0, %v2236
    %v2238 = vpop.f32.mrb[0].mxu0
    %2239 = vmatprep.mubr.f32.mxu0 0.0
    %2240 = vmatmul.mubr.f32.gmra.mrb[0].mxu0 %v111
    %v2241 = vpop.f32.mrb[0].mxu0
    %v2242 = vadd.f32 0.0, %v2241
    %v2243 = vpop.f32.mrb[0].mxu0
    %2244 = vmatprep.mubr.f32.mxu0 0.0
    %2245 = vmatmul.mubr.f32.gmra.mrb[0].mxu0 %v112
    %v2246 = vpop.f32.mrb[0].mxu0
    %v2247 = vadd.f32 0.0, %v2246
    %v2248 = vpop.f32.mrb[0].mxu0
    %2249 = vmatprep.mubr.f32.mxu0 0.0
    %2250 = vmatmul.mubr.f32.gmra.mrb[0].mxu0 %v113
    %v2251 = vpop.f32.mrb[0].mxu0
    %v2252 = vadd.f32 0.0, %v2251
    %v2253 = vpop.f32.mrb[0].mxu0
    %2254 = vmatprep.mubr.f32.mxu0 0.0
    %2255 = vmatmul.mubr.f32.gmra.mrb[0].mxu0 %v114
    %v2256 = vpop.f32.mrb[0].mxu0
    %v2257 = vadd.f32 0.0, %v2256
    %v2258 = vpop.f32.mrb[0].mxu0
    %2259 = vmatprep.mubr.f32.mxu0 0.0
    %2260 = vmatmul.mubr.f32.gmra.mrb[0].mxu0 %v115
    %v2261 = vpop.f32.mrb[0].mxu0
    %v2262 = vadd.f32 0.0, %v2261
    %v2263 = vpop.f32.mrb[0].mxu0
    %2264 = vmatprep.mubr.f32.mxu0 0.0
    %2265 = vmatmul.mubr.f32.gmra.mrb[0].mxu0 %v116
    %v2266 = vpop.f32.mrb[0].mxu0
    %v2267 = vadd.f32 0.0, %v2266
    %v2268 = vpop.f32.mrb[0].mxu0
    %2269 = vmatprep.mubr.f32.mxu0 0.0
    %2270 = vmatmul.mubr.f32.gmra.mrb[0].mxu0 %v117
    %v2271 = vpop.f32.mrb[0].mxu0
    %v2272 = vadd.f32 0.0, %v2271
    %v2273 = vpop.f32.mrb[0].mxu0
    %2274 = vmatprep.mubr.f32.mxu0 0.0
    %2275 = vmatmul.mubr.f32.gmra.mrb[0].mxu0 %v118
    %v2276 = vpop.f32.mrb[0].mxu0
    %v2277 = vadd.f32 0.0, %v2276
    %v2278 = vpop.f32.mrb[0].mxu0
    %2279 = vmatprep.mubr.f32.mxu0 0.0
    %2280 = vmatmul.mubr.f32.gmra.mrb[0].mxu0 %v119
    %v2281 = vpop.f32.mrb[0].mxu0
    %v2282 = vadd.f32 0.0, %v2281
    %v2283 = vpop.f32.mrb[0].mxu0
    %2284 = vmatprep.mubr.f32.mxu0 0.0
    %2285 = vmatmul.mubr.f32.gmra.mrb[0].mxu0 %v120
    %v2286 = vpop.f32.mrb[0].mxu0
    %v2287 = vadd.f32 0.0, %v2286
    %v2288 = vpop.f32.mrb[0].mxu0
    %2289 = vdwg.mxu0
    %v2290 = vadd.f32 %v2212, %v2217
    %v2291 = vadd.f32 %v2290, %v2222
    %v2292 = vadd.f32 %v2291, %v2227
    %v2293 = vadd.f32 %v2292, %v2232
    %v2294 = vadd.f32 %v2293, %v2237
    %v2295 = vadd.f32 %v2294, %v2242
    %v2296 = vadd.f32 %v2295, %v2247
    %v2297 = vadd.f32 %v2296, %v2252
    %v2298 = vadd.f32 %v2297, %v2257
    %v2299 = vadd.f32 %v2298, %v2262
    %v2300 = vadd.f32 %v2299, %v2267
    %v2301 = vadd.f32 %v2300, %v2272
    %v2302 = vadd.f32 %v2301, %v2277
    %v2303 = vadd.f32 %v2302, %v2282
    %v2304 = vadd.f32 %v2303, %v2287
    %v2305 = vrot.slane %v2304, 4
    %v2306 = vadd.f32 %v2304, %v2305
    %v2307 = vrot.slane %v2306, 2
    %v2308 = vadd.f32 %v2306, %v2307
    %v2309 = vrot.slane %v2308, 1
    %v2310 = vadd.f32 %v2308, %v2309
    %v2311 = vmul.f32 %v2310, 0.083333336
    %v2312 = vmul.f32 %v2212, %v2212
    %v2313 = vmul.f32 %v2217, %v2217
    %v2314 = vmul.f32 %v2222, %v2222
    %v2315 = vmul.f32 %v2227, %v2227
    %v2316 = vmul.f32 %v2232, %v2232
    %v2317 = vmul.f32 %v2237, %v2237
    %v2318 = vmul.f32 %v2242, %v2242
    %v2319 = vmul.f32 %v2247, %v2247
    %v2320 = vmul.f32 %v2252, %v2252
    %v2321 = vmul.f32 %v2257, %v2257
    %v2322 = vmul.f32 %v2262, %v2262
    %v2323 = vmul.f32 %v2267, %v2267
    %v2324 = vmul.f32 %v2272, %v2272
    %v2325 = vmul.f32 %v2277, %v2277
    %v2326 = vmul.f32 %v2282, %v2282
    %v2327 = vmul.f32 %v2287, %v2287
    %v2328 = vadd.f32 %v2312, %v2313
    %v2329 = vadd.f32 %v2328, %v2314
    %v2330 = vadd.f32 %v2329, %v2315
    %v2331 = vadd.f32 %v2330, %v2316
    %v2332 = vadd.f32 %v2331, %v2317
    %v2333 = vadd.f32 %v2332, %v2318
    %v2334 = vadd.f32 %v2333, %v2319
    %v2335 = vadd.f32 %v2334, %v2320
    %v2336 = vadd.f32 %v2335, %v2321
    %v2337 = vadd.f32 %v2336, %v2322
    %v2338 = vadd.f32 %v2337, %v2323
    %v2339 = vadd.f32 %v2338, %v2324
    %v2340 = vadd.f32 %v2339, %v2325
    %v2341 = vadd.f32 %v2340, %v2326
    %v2342 = vadd.f32 %v2341, %v2327
    %v2343 = vrot.slane %v2342, 4
    %v2344 = vadd.f32 %v2342, %v2343
    %v2345 = vrot.slane %v2344, 2
    %v2346 = vadd.f32 %v2344, %v2345
    %v2347 = vrot.slane %v2346, 1
    %v2348 = vadd.f32 %v2346, %v2347
    %v2349 = vmul.f32 %v2348, 0.083333336
    %v2350 = vmul.f32 %v2311, %v2311
    %v2351 = vsub.f32 %v2349, %v2350
    %v2352 = vmax.f32 %v2351, 0.0
    %v2353 = vsub.f32 %v2212, %v2311
    %v2354 = vsub.f32 %v2217, %v2311
    %v2355 = vsub.f32 %v2222, %v2311
    %v2356 = vsub.f32 %v2227, %v2311
    %v2357 = vsub.f32 %v2232, %v2311
    %v2358 = vsub.f32 %v2237, %v2311
    %v2359 = vsub.f32 %v2242, %v2311
    %v2360 = vsub.f32 %v2247, %v2311
    %v2361 = vsub.f32 %v2252, %v2311
    %v2362 = vsub.f32 %v2257, %v2311
    %v2363 = vsub.f32 %v2262, %v2311
    %v2364 = vsub.f32 %v2267, %v2311
    %v2365 = vsub.f32 %v2272, %v2311
    %v2366 = vsub.f32 %v2277, %v2311
    %v2367 = vsub.f32 %v2282, %v2311
    %v2368 = vsub.f32 %v2287, %v2311
    %v2369 = vadd.f32 %v2352, 1e-05
    %v2370 = vrsqrt.pop %v2369
    %v2371 = vmul.f32 %v2370, %v1519
    %v2372 = vlaneseq
    %v2373 = vshrl.u32 %v2372, 7
    %v2374 = vsub.s32 3, %v2373
    %v2375 = vrot.slane %v2371, %v2374
    %v2376 = vmul.f32 %v2353, %v2375
    %v2377 = vmul.f32 %v2354, %v2375
    %v2378 = vmul.f32 %v2355, %v2375
    %v2379 = vmul.f32 %v2356, %v2375
    %v2380 = vmul.f32 %v2357, %v2375
    %v2381 = vmul.f32 %v2358, %v2375
    %v2382 = vmul.f32 %v2359, %v2375
    %v2383 = vmul.f32 %v2360, %v2375
    %v2384 = vmul.f32 %v2361, %v2375
    %v2385 = vmul.f32 %v2362, %v2375
    %v2386 = vmul.f32 %v2363, %v2375
    %v2387 = vmul.f32 %v2364, %v2375
    %v2388 = vmul.f32 %v2365, %v2375
    %v2389 = vmul.f32 %v2366, %v2375
    %v2390 = vmul.f32 %v2367, %v2375
    %v2391 = vmul.f32 %v2368, %v2375
    %v2392 = vlaneseq
    %v2393 = vshrl.u32 %v2392, 7
    %v2394 = vsub.s32 4, %v2393
    %v2395 = vrot.slane %v1519, %v2394
    %v2396 = vadd.f32 %v2376, %v2395
    %v2397 = vadd.f32 %v2377, %v2395
    %v2398 = vadd.f32 %v2378, %v2395
    %v2399 = vadd.f32 %v2379, %v2395
    %v2400 = vadd.f32 %v2380, %v2395
    %v2401 = vadd.f32 %v2381, %v2395
    %v2402 = vadd.f32 %v2382, %v2395
    %v2403 = vadd.f32 %v2383, %v2395
    %v2404 = vadd.f32 %v2384, %v2395
    %v2405 = vadd.f32 %v2385, %v2395
    %v2406 = vadd.f32 %v2386, %v2395
    %v2407 = vadd.f32 %v2387, %v2395
    %v2408 = vadd.f32 %v2388, %v2395
    %v2409 = vadd.f32 %v2389, %v2395
    %v2410 = vadd.f32 %v2390, %v2395
    %v2411 = vadd.f32 %v2391, %v2395
    %v2412 = vmax.f32 %v2396, 0.0
    %v2413 = vmax.f32 %v2397, 0.0
    %v2414 = vmax.f32 %v2398, 0.0
    %v2415 = vmax.f32 %v2399, 0.0
    %v2416 = vmax.f32 %v2400, 0.0
    %v2417 = vmax.f32 %v2401, 0.0
    %v2418 = vmax.f32 %v2402, 0.0
    %v2419 = vmax.f32 %v2403, 0.0
    %v2420 = vmax.f32 %v2404, 0.0
    %v2421 = vmax.f32 %v2405, 0.0
    %v2422 = vmax.f32 %v2406, 0.0
    %v2423 = vmax.f32 %v2407, 0.0
    %v2424 = vmax.f32 %v2408, 0.0
    %v2425 = vmax.f32 %v2409, 0.0
    %v2426 = vmax.f32 %v2410, 0.0
    %v2427 = vmax.f32 %v2411, 0.0
    %v2428 = vadd.f32 %v2412, %v1846
    %v2429 = vadd.f32 %v2413, %v1847
    %v2430 = vadd.f32 %v2414, %v1848
    %v2431 = vadd.f32 %v2415, %v1849
    %v2432 = vadd.f32 %v2416, %v1850
    %v2433 = vadd.f32 %v2417, %v1851
    %v2434 = vadd.f32 %v2418, %v1852
    %v2435 = vadd.f32 %v2419, %v1853
    %v2436 = vadd.f32 %v2420, %v1854
    %v2437 = vadd.f32 %v2421, %v1855
    %v2438 = vadd.f32 %v2422, %v1856
    %v2439 = vadd.f32 %v2423, %v1857
    %v2440 = vadd.f32 %v2424, %v1858
    %v2441 = vadd.f32 %v2425, %v1859
    %v2442 = vadd.f32 %v2426, %v1860
    %v2443 = vadd.f32 %v2427, %v1861
    %v2444 = vld [vmem:[#allocation5] sm:$0xff]
    %2445 = vmatprep.subr.mxu0 0.0
    %2446 = vmatpush1.msra.mxu0 %v2428
    %2447 = vmatprep.subr.mxu0 0.0
    %2448 = vmatpush1.msra.mxu0 %v2429
    %2449 = vmatprep.subr.mxu0 0.0
    %2450 = vmatpush1.msra.mxu0 %v2430
    %2451 = vmatprep.subr.mxu0 0.0
    %2452 = vmatpush1.msra.mxu0 %v2431
    %2453 = vmatprep.subr.mxu0 0.0
    %2454 = vmatpush1.msra.mxu0 %v2432
    %2455 = vmatprep.subr.mxu0 0.0
    %2456 = vmatpush1.msra.mxu0 %v2433
    %2457 = vmatprep.subr.mxu0 0.0
    %2458 = vmatpush1.msra.mxu0 %v2434
    %2459 = vmatprep.subr.mxu0 0.0
    %2460 = vmatpush1.msra.mxu0 %v2435
    %2461 = vmatprep.subr.mxu0 0.0
    %2462 = vmatpush1.msra.mxu0 %v2436
    %2463 = vmatprep.subr.mxu0 0.0
    %2464 = vmatpush1.msra.mxu0 %v2437
    %2465 = vmatprep.subr.mxu0 0.0
    %2466 = vmatpush1.msra.mxu0 %v2438
    %2467 = vmatprep.subr.mxu0 0.0
    %2468 = vmatpush1.msra.mxu0 %v2439
    %2469 = vmatprep.subr.mxu0 0.0
    %2470 = vmatpush1.msra.mxu0 %v2440
    %2471 = vmatprep.subr.mxu0 0.0
    %2472 = vmatpush1.msra.mxu0 %v2441
    %2473 = vmatprep.subr.mxu0 0.0
    %2474 = vmatpush1.msra.mxu0 %v2442
    %2475 = vmatprep.subr.mxu0 0.0
    %2476 = vmatpush1.msra.mxu0 %v2443
    %2477 = vmatprep.subr.mxu0 0.0
    %2478 = vmatpush1.msra.mxu0 0.0
    %2479 = vmatprep.subr.mxu0 0.0
    %2480 = vmatpush1.msra.mxu0 0.0
    %2481 = vmatprep.subr.mxu0 0.0
    %2482 = vmatpush1.msra.mxu0 0.0
    %2483 = vmatprep.subr.mxu0 0.0
    %2484 = vmatpush1.msra.mxu0 0.0
    %2485 = vmatprep.subr.mxu0 0.0
    %2486 = vmatpush1.msra.mxu0 0.0
    %2487 = vmatprep.subr.mxu0 0.0
    %2488 = vmatpush1.msra.mxu0 0.0
    %2489 = vmatprep.subr.mxu0 0.0
    %2490 = vmatpush1.msra.mxu0 0.0
    %2491 = vmatprep.subr.mxu0 0.0
    %2492 = vmatpush1.msra.mxu0 0.0
    %2493 = vmatprep.subr.mxu0 0.0
    %2494 = vmatpush1.msra.mxu0 0.0
    %2495 = vmatprep.subr.mxu0 0.0
    %2496 = vmatpush1.msra.mxu0 0.0
    %2497 = vmatprep.subr.mxu0 0.0
    %2498 = vmatpush1.msra.mxu0 0.0
    %2499 = vmatprep.subr.mxu0 0.0
    %2500 = vmatpush1.msra.mxu0 0.0
    %2501 = vmatprep.subr.mxu0 0.0
    %2502 = vmatpush1.msra.mxu0 0.0
    %2503 = vmatprep.subr.mxu0 0.0
    %2504 = vmatpush1.msra.mxu0 0.0
    %2505 = vmatprep.subr.mxu0 0.0
    %2506 = vmatpush1.msra.mxu0 0.0
    %2507 = vmatprep.subr.mxu0 0.0
    %2508 = vmatpush1.msra.mxu0 0.0
    %2509 = vmatprep.mubr.f32.mxu0 0.0
    %2510 = vmatmul.mubr.f32.gmra.mrb[0].mxu0 %v2444
    %v2511 = vpop.f32.mrb[0].mxu0
    %v2512 = vadd.f32 0.0, %v2511
    %v2513 = vpop.f32.mrb[0].mxu0
    %2514 = vdwg.mxu0
    %v2515 = vlaneseq
    %v2516 = vshrl.u32 %v2515, 7
    %v2517 = vsub.s32 1, %v2516
    %v2518 = vrot.slane %v169, %v2517
    %2519 = vmatprep.subr.mxu0 0.0
    %2520 = vmatpush1.msra.mxu0 %v122
    %2521 = vmatprep.subr.mxu0 0.0
    %2522 = vmatpush1.msra.mxu0 %v125
    %2523 = vmatprep.subr.mxu0 0.0
    %2524 = vmatpush1.msra.mxu0 %v128
    %2525 = vmatprep.subr.mxu0 0.0
    %2526 = vmatpush1.msra.mxu0 %v131
    %2527 = vmatprep.subr.mxu0 0.0
    %2528 = vmatpush1.msra.mxu0 %v134
    %2529 = vmatprep.subr.mxu0 0.0
    %2530 = vmatpush1.msra.mxu0 %v137
    %2531 = vmatprep.subr.mxu0 0.0
    %2532 = vmatpush1.msra.mxu0 %v140
    %2533 = vmatprep.subr.mxu0 0.0
    %2534 = vmatpush1.msra.mxu0 %v143
    %2535 = vmatprep.subr.mxu0 0.0
    %2536 = vmatpush1.msra.mxu0 %v146
    %2537 = vmatprep.subr.mxu0 0.0
    %2538 = vmatpush1.msra.mxu0 %v149
    %2539 = vmatprep.subr.mxu0 0.0
    %2540 = vmatpush1.msra.mxu0 %v152
    %2541 = vmatprep.subr.mxu0 0.0
    %2542 = vmatpush1.msra.mxu0 %v155
    %2543 = vmatprep.subr.mxu0 0.0
    %2544 = vmatpush1.msra.mxu0 %v158
    %2545 = vmatprep.subr.mxu0 0.0
    %2546 = vmatpush1.msra.mxu0 %v161
    %2547 = vmatprep.subr.mxu0 0.0
    %2548 = vmatpush1.msra.mxu0 %v164
    %2549 = vmatprep.subr.mxu0 0.0
    %2550 = vmatpush1.msra.mxu0 %v167
    %2551 = vmatprep.subr.mxu0 0.0
    %2552 = vmatpush1.msra.mxu0 0.0
    %2553 = vmatprep.subr.mxu0 0.0
    %2554 = vmatpush1.msra.mxu0 0.0
    %2555 = vmatprep.subr.mxu0 0.0
    %2556 = vmatpush1.msra.mxu0 0.0
    %2557 = vmatprep.subr.mxu0 0.0
    %2558 = vmatpush1.msra.mxu0 0.0
    %2559 = vmatprep.subr.mxu0 0.0
    %2560 = vmatpush1.msra.mxu0 0.0
    %2561 = vmatprep.subr.mxu0 0.0
    %2562 = vmatpush1.msra.mxu0 0.0
    %2563 = vmatprep.subr.mxu0 0.0
    %2564 = vmatpush1.msra.mxu0 0.0
    %2565 = vmatprep.subr.mxu0 0.0
    %2566 = vmatpush1.msra.mxu0 0.0
    %2567 = vmatprep.subr.mxu0 0.0
    %2568 = vmatpush1.msra.mxu0 0.0
    %2569 = vmatprep.subr.mxu0 0.0
    %2570 = vmatpush1.msra.mxu0 0.0
    %2571 = vmatprep.subr.mxu0 0.0
    %2572 = vmatpush1.msra.mxu0 0.0
    %2573 = vmatprep.subr.mxu0 0.0
    %2574 = vmatpush1.msra.mxu0 0.0
    %2575 = vmatprep.subr.mxu0 0.0
    %2576 = vmatpush1.msra.mxu0 0.0
    %2577 = vmatprep.subr.mxu0 0.0
    %2578 = vmatpush1.msra.mxu0 0.0
    %2579 = vmatprep.subr.mxu0 0.0
    %2580 = vmatpush1.msra.mxu0 0.0
    %2581 = vmatprep.subr.mxu0 0.0
    %2582 = vmatpush1.msra.mxu0 0.0
    %2583 = vmatprep.mubr.f32.mxu0 0.0
    %2584 = vmatmul.mubr.f32.gmra.mrb[0].mxu0 %v2512
    %v2585 = vpop.f32.mrb[0].mxu0
    %v2586 = vadd.f32 %v2518, %v2585
    %v2587 = vpop.f32.mrb[0].mxu0
    %2588 = vdwg.mxu0
    %v2589 = vmax.f32 %v2586, 0.0
    %v2590 = vlaneseq
    %v2591 = vshrl.u32 %v2590, 7
    %v2592 = vsub.s32 2, %v2591
    %v2593 = vrot.slane %v169, %v2592
    %2594 = vmatprep.subr.mxu0 0.0
    %2595 = vmatpush1.msra.mxu0 %v123
    %2596 = vmatprep.subr.mxu0 0.0
    %2597 = vmatpush1.msra.mxu0 %v126
    %2598 = vmatprep.subr.mxu0 0.0
    %2599 = vmatpush1.msra.mxu0 %v129
    %2600 = vmatprep.subr.mxu0 0.0
    %2601 = vmatpush1.msra.mxu0 %v132
    %2602 = vmatprep.subr.mxu0 0.0
    %2603 = vmatpush1.msra.mxu0 %v135
    %2604 = vmatprep.subr.mxu0 0.0
    %2605 = vmatpush1.msra.mxu0 %v138
    %2606 = vmatprep.subr.mxu0 0.0
    %2607 = vmatpush1.msra.mxu0 %v141
    %2608 = vmatprep.subr.mxu0 0.0
    %2609 = vmatpush1.msra.mxu0 %v144
    %2610 = vmatprep.subr.mxu0 0.0
    %2611 = vmatpush1.msra.mxu0 %v147
    %2612 = vmatprep.subr.mxu0 0.0
    %2613 = vmatpush1.msra.mxu0 %v150
    %2614 = vmatprep.subr.mxu0 0.0
    %2615 = vmatpush1.msra.mxu0 %v153
    %2616 = vmatprep.subr.mxu0 0.0
    %2617 = vmatpush1.msra.mxu0 %v156
    %2618 = vmatprep.subr.mxu0 0.0
    %2619 = vmatpush1.msra.mxu0 %v159
    %2620 = vmatprep.subr.mxu0 0.0
    %2621 = vmatpush1.msra.mxu0 %v162
    %2622 = vmatprep.subr.mxu0 0.0
    %2623 = vmatpush1.msra.mxu0 %v165
    %2624 = vmatprep.subr.mxu0 0.0
    %2625 = vmatpush1.msra.mxu0 %v168
    %2626 = vmatprep.subr.mxu0 0.0
    %2627 = vmatpush1.msra.mxu0 0.0
    %2628 = vmatprep.subr.mxu0 0.0
    %2629 = vmatpush1.msra.mxu0 0.0
    %2630 = vmatprep.subr.mxu0 0.0
    %2631 = vmatpush1.msra.mxu0 0.0
    %2632 = vmatprep.subr.mxu0 0.0
    %2633 = vmatpush1.msra.mxu0 0.0
    %2634 = vmatprep.subr.mxu0 0.0
    %2635 = vmatpush1.msra.mxu0 0.0
    %2636 = vmatprep.subr.mxu0 0.0
    %2637 = vmatpush1.msra.mxu0 0.0
    %2638 = vmatprep.subr.mxu0 0.0
    %2639 = vmatpush1.msra.mxu0 0.0
    %2640 = vmatprep.subr.mxu0 0.0
    %2641 = vmatpush1.msra.mxu0 0.0
    %2642 = vmatprep.subr.mxu0 0.0
    %2643 = vmatpush1.msra.mxu0 0.0
    %2644 = vmatprep.subr.mxu0 0.0
    %2645 = vmatpush1.msra.mxu0 0.0
    %2646 = vmatprep.subr.mxu0 0.0
    %2647 = vmatpush1.msra.mxu0 0.0
    %2648 = vmatprep.subr.mxu0 0.0
    %2649 = vmatpush1.msra.mxu0 0.0
    %2650 = vmatprep.subr.mxu0 0.0
    %2651 = vmatpush1.msra.mxu0 0.0
    %2652 = vmatprep.subr.mxu0 0.0
    %2653 = vmatpush1.msra.mxu0 0.0
    %2654 = vmatprep.subr.mxu0 0.0
    %2655 = vmatpush1.msra.mxu0 0.0
    %2656 = vmatprep.subr.mxu0 0.0
    %2657 = vmatpush1.msra.mxu0 0.0
    %2658 = vmatprep.mubr.f32.mxu0 0.0
    %2659 = vmatmul.mubr.f32.gmra.mrb[0].mxu0 %v2589
    %v2660 = vpop.f32.mrb[0].mxu0
    %v2661 = vadd.f32 %v2593, %v2660
    %v2662 = vpop.f32.mrb[0].mxu0
    %2663 = vdwg.mxu0
    %2664 = vst [vmem:[#allocation13] sm:$0xff] %v2661
    // Predicated region
    $region54: #{tpu_custom_call.1} parent=1 // pred_check
      _
    $region55: #{tpu_custom_call.1} parent=1 // pred_check_branch
      %2666 = sbr.rel (0) target = $region57
    $region56: #{tpu_custom_call.1} parent=1 // pred_region
      %s2668 = ssub.s32 128, 128
      %2669 = vsyncadd [#allocation4], %s2668
      %s2671 = sshll.u32 [#allocation13], 4
      %s2672 = int_to_ptr.vmem [resolvable:$true] %s2671
      %2674 = dma.vmem_to_hbm [thread:$0]  %s2672, 128, %s7, [#allocation4]
    $region57: #{tpu_custom_call.1} parent=1 // pred_fallthru
      _
    // Predicated region
    $region58: #{tpu_custom_call.1} parent=1 // pred_check
      _
    $region59: #{tpu_custom_call.1} parent=1 // pred_check_branch
      %2676 = sbr.rel (0) target = $region61
    $region60: #{tpu_custom_call.1} parent=1 // pred_region
      %2677 = dma.done [#allocation4], 128
    $region61: #{tpu_custom_call.1} parent=1 // pred_fallthru
      _
    %2678 = vsyncpa [#allocation3], 1
    %2679 = vsyncpa [#allocation6], 1
    %2680 = vsyncpa [#allocation9], 1
    %2681 = vsyncpa [#allocation12], 1
    %2682 = vsyncpa [#allocation4], 1

</llo_original>
